<compile_context>
chip_gen: v6e
topology: v6e:2x2x1
jax: 0.10.0
libtpu: 0.0.40
codegen_flags: <defaults>
</compile_context>

<pallas_src>
import math
import functools

import jax
import jax.numpy as jnp
import numpy as np
from jax.experimental import pallas as pl
from jax.experimental.pallas import tpu as pltpu


# ---------------------------------------------------------------------------
# Pallas kernel: one grid step = one batch element, full transformer block.
# ---------------------------------------------------------------------------
def _block_kernel(n_head,
                  x_ref, mask_ref,
                  ln1g_ref, ln1b_ref,
                  wqkv_ref, bqkv_ref, wo_ref, bo_ref,
                  ln2g_ref, ln2b_ref,
                  wfc_ref, bfc_ref, wproj_ref, bproj_ref,
                  out_ref):
    x = x_ref[0].astype(jnp.float32)          # (L, D) residual stream, f32
    mask = mask_ref[0].astype(jnp.float32)    # (L, L) additive mask

    L, D = x.shape
    H = n_head
    hd = D // H
    cdt = wqkv_ref.dtype                      # MXU operand dtype (bf16)

    def layernorm(v, g, b):
        # PyTorch LayerNorm (eps=1e-5), statistics in float32 like the module.
        mu = jnp.mean(v, axis=-1, keepdims=True)
        var = jnp.mean((v - mu) ** 2, axis=-1, keepdims=True)
        return (v - mu) * jax.lax.rsqrt(var + 1e-5) * g + b

    # ---- attention branch:  x + out_proj(MHA(ln_1(x))) ---------------------
    h1 = layernorm(x, ln1g_ref[0], ln1b_ref[0])
    # NOTE: 1/sqrt(hd) is already folded into the Q columns of w_qkv / b_qkv.
    qkv = jnp.dot(h1.astype(cdt), wqkv_ref[...],
                  preferred_element_type=jnp.float32) + bqkv_ref[0]    # (L,3D)

    def heads(t):  # (L, D) -> (H, L, hd); head h <- columns [h*hd, (h+1)*hd)
        return t.reshape(L, H, hd).transpose(1, 0, 2)

    q = heads(qkv[:, 0 * D:1 * D]).astype(cdt)
    k = heads(qkv[:, 1 * D:2 * D]).astype(cdt)
    v = heads(qkv[:, 2 * D:3 * D]).astype(cdt)

    s = jnp.einsum("hqd,hkd->hqk", q, k,
                   preferred_element_type=jnp.float32) + mask[None, :, :]
    s = s - jnp.max(s, axis=-1, keepdims=True)
    p = jnp.exp(s)                                          # (H, L, L), <= 1
    denom = jnp.sum(p, axis=-1, keepdims=True)              # (H, L, 1)
    o = jnp.einsum("hqk,hkd->hqd", p.astype(cdt), v,
                   preferred_element_type=jnp.float32)      # (H, L, hd)
    o = o * pl.reciprocal(denom, approx=True)               # normalize PV
    attn = o.transpose(1, 0, 2).reshape(L, D)               # (L, D)
    attn = jnp.dot(attn.astype(cdt), wo_ref[...],
                   preferred_element_type=jnp.float32) + bo_ref[0]
    x = x + attn

    # ---- MLP branch:  x + c_proj(QuickGELU(c_fc(ln_2(x)))) -----------------
    h2 = layernorm(x, ln2g_ref[0], ln2b_ref[0])
    fc = jnp.dot(h2.astype(cdt), wfc_ref[...],
                 preferred_element_type=jnp.float32) + bfc_ref[0]      # (L,4D)
    fc = fc * jax.nn.sigmoid(1.702 * fc)                     # QuickGELU (f32)
    proj = jnp.dot(fc.astype(cdt), wproj_ref[...],
                   preferred_element_type=jnp.float32) + bproj_ref[0]
    x = x + proj

    out_ref[0] = x.astype(out_ref.dtype)


# ---------------------------------------------------------------------------
# Parameter preparation: fold softmax scale into Q, cast weights to bf16.
# ---------------------------------------------------------------------------
def _prepare_params(params, n_head, compute_dtype=jnp.bfloat16):
    D = params["w_out"].shape[0]
    hd = D // n_head
    scale = 1.0 / math.sqrt(hd)
    col_scale = jnp.concatenate(
        [jnp.full((D,), scale, jnp.float32), jnp.ones((2 * D,), jnp.float32)])
    w_qkv = params["w_qkv"].astype(jnp.float32) * col_scale[None, :]
    b_qkv = params["b_qkv"].astype(jnp.float32) * col_scale[None, :]
    return dict(
        ln1_g=params["ln1_g"].astype(jnp.float32),
        ln1_b=params["ln1_b"].astype(jnp.float32),
        w_qkv=w_qkv.astype(compute_dtype),
        b_qkv=b_qkv,                                   # biases stay f32
        w_out=params["w_out"].astype(compute_dtype),
        b_out=params["b_out"].astype(jnp.float32),
        ln2_g=params["ln2_g"].astype(jnp.float32),
        ln2_b=params["ln2_b"].astype(jnp.float32),
        w_fc=params["w_fc"].astype(compute_dtype),
        b_fc=params["b_fc"].astype(jnp.float32),
        w_proj=params["w_proj"].astype(compute_dtype),
        b_proj=params["b_proj"].astype(jnp.float32),
    )


# ---------------------------------------------------------------------------
# pallas_call wrapper
# ---------------------------------------------------------------------------
def _invoke(x_nld, attn_mask, p, n_head, single_buffer_weights):
    N, L, D = x_nld.shape

    def const_spec(shape):
        # Weights/biases: same block for every grid step.  Single-buffer them
        # so the constant operands are not double-buffered in VMEM.
        idx = lambda b: (0,) * len(shape)
        if single_buffer_weights:
            return pl.BlockSpec(shape, idx, pipeline_mode=pl.Buffered(1))
        return pl.BlockSpec(shape, idx)

    per_batch = lambda shape: pl.BlockSpec(shape, lambda b: (b, 0, 0))

    in_specs = [
        per_batch((1, L, D)),                            # x
        per_batch((1, L, L)),                            # mask
        const_spec((1, D)), const_spec((1, D)),          # ln_1 gamma/beta
        const_spec((D, 3 * D)), const_spec((1, 3 * D)),  # in_proj W (in,out), b
        const_spec((D, D)), const_spec((1, D)),          # out_proj W, b
        const_spec((1, D)), const_spec((1, D)),          # ln_2 gamma/beta
        const_spec((D, 4 * D)), const_spec((1, 4 * D)),  # c_fc W, b
        const_spec((4 * D, D)), const_spec((1, D)),      # c_proj W, b
    ]

    # Explicit VMEM budget: weights (x1 or x2 buffers) + double-buffered
    # activations/mask + f32 in-kernel intermediates + headroom, clamped so it
    # stays under v7x's 64 MiB physical ceiling.
    wbufs = 1 if single_buffer_weights else 2
    weight_bytes = wbufs * 12 * D * D * p["w_qkv"].dtype.itemsize
    act_bytes = 2 * (2 * L * D + L * L) * 4
    interm_bytes = (3 * L * D + 2 * n_head * L * L + 9 * L * D) * 4
    vmem_limit = int(min(max(weight_bytes + act_bytes + interm_bytes + (4 << 20),
                             32 << 20), 56 << 20))

    return pl.pallas_call(
        functools.partial(_block_kernel, n_head),
        out_shape=jax.ShapeDtypeStruct((N, L, D), x_nld.dtype),
        grid_spec=pltpu.PrefetchScalarGridSpec(
            num_scalar_prefetch=0,
            grid=(N,),
            in_specs=in_specs,
            out_specs=per_batch((1, L, D)),
        ),
        compiler_params=pltpu.CompilerParams(
            dimension_semantics=("parallel",),
            vmem_limit_bytes=vmem_limit),
    )(x_nld, attn_mask,
      p["ln1_g"], p["ln1_b"],
      p["w_qkv"], p["b_qkv"],
      p["w_out"], p["b_out"],
      p["ln2_g"], p["ln2_b"],
      p["w_fc"], p["b_fc"],
      p["w_proj"], p["b_proj"])


def residual_attention_block_clip(x_nld, attn_mask, params, n_head):
    """x_nld: (N, L, D).  attn_mask: (N, L, L) additive float mask.
    Returns (x_out (N, L, D), attn_mask) — same tuple contract as the module."""
    p = _prepare_params(params, n_head)
    try:
        out = jax.block_until_ready(
            _invoke(x_nld, attn_mask, p, n_head, single_buffer_weights=True))
    except Exception:
        # Fallback if this JAX build rejects pl.Buffered(1) single-buffering.
        out = _invoke(x_nld, attn_mask, p, n_head, single_buffer_weights=False)
    return out, attn_mask


# ---------------------------------------------------------------------------
# Pure-JAX reference (mirrors the PyTorch forward) for verification.
# ---------------------------------------------------------------------------
def reference_block(x_nld, attn_mask, p, n_head):
    N, L, D = x_nld.shape
    hd = D // n_head
    scale = 1.0 / math.sqrt(hd)

    def ln(v, g, b):
        mu = jnp.mean(v, axis=-1, keepdims=True)
        var = jnp.mean((v - mu) ** 2, axis=-1, keepdims=True)
        return (v - mu) / jnp.sqrt(var + 1e-5) * g + b

    h1 = ln(x_nld, p["ln1_g"][0], p["ln1_b"][0])
    qkv = h1 @ p["w_qkv"] + p["b_qkv"][0]
    q, k, v = qkv[..., :D], qkv[..., D:2 * D], qkv[..., 2 * D:]

    def split(t):  # (N,L,D) -> (N,H,L,hd)
        return t.reshape(N, L, n_head, hd).transpose(0, 2, 1, 3)

    qh, kh, vh = split(q), split(k), split(v)
    s = jnp.einsum("nhqd,nhkd->nhqk", qh * scale, kh) + attn_mask[:, None, :, :]
    pmat = jax.nn.softmax(s, axis=-1)
    o = jnp.einsum("nhqk,nhkd->nhqd", pmat, vh)
    o = o.transpose(0, 2, 1, 3).reshape(N, L, D)
    o = o @ p["w_out"] + p["b_out"][0]
    x = x_nld + o

    h2 = ln(x, p["ln2_g"][0], p["ln2_b"][0])
    fc = h2 @ p["w_fc"] + p["b_fc"][0]
    fc = fc * jax.nn.sigmoid(1.702 * fc)
    x = x + fc @ p["w_proj"] + p["b_proj"][0]
    return x, attn_mask


# ---------------------------------------------------------------------------
if __name__ == "__main__":
    # Small shapes consistent with the module: seq=8, batch=2, d_model=32, heads=4
    L, N, D, H = 8, 2, 32, 4

    key = jax.random.PRNGKey(0)
    ks = jax.random.split(key, 12)

    def init(k, shape, scale=0.05):
        return (scale * jax.random.normal(k, shape)).astype(jnp.float32)

    params = {
        "ln1_g": jnp.ones((1, D), jnp.float32),
        "ln1_b": jnp.zeros((1, D), jnp.float32),
        "w_qkv": init(ks[0], (D, 3 * D)),
        "b_qkv": init(ks[1], (1, 3 * D)),
        "w_out": init(ks[2], (D, D)),
        "b_out": init(ks[3], (1, D)),
        "ln2_g": jnp.ones((1, D), jnp.float32),
        "ln2_b": jnp.zeros((1, D), jnp.float32),
        "w_fc": init(ks[4], (D, 4 * D)),
        "b_fc": init(ks[5], (1, 4 * D)),
        "w_proj": init(ks[6], (4 * D, D)),
        "b_proj": init(ks[7], (1, D)),
    }

    # Inputs: PyTorch layout is (L, N, D); kernel layout is (N, L, D).
    x_lnd = jax.random.normal(ks[8], (L, N, D), jnp.float32)
    x_nld = jnp.transpose(x_lnd, (1, 0, 2))
    # Additive float attn_mask of shape (N, L, L) (repeat_interleave over heads
    # is handled by broadcasting the same per-batch mask to every head).
    causal = jnp.where(
        jnp.arange(L)[:, None] >= jnp.arange(L)[None, :], 0.0, -1e9
    ).astype(jnp.float32)
    attn_mask = jnp.broadcast_to(causal, (N, L, L))

    out, mask_out = residual_attention_block_clip(x_nld, attn_mask, params, H)
    out = jax.block_until_ready(out)

    ref_out, _ = reference_block(x_nld, attn_mask, params, H)
    # bf16 MXU operands (f32 accumulation) + approx softmax reciprocal: compare
    # against the f32 reference at a bf16-appropriate tolerance.
    np.testing.assert_allclose(np.asarray(out), np.asarray(ref_out),
                               rtol=2e-2, atol=2e-2)

    print("KERNEL_OK")
</pallas_src>

<mosaic_0001>
module attributes {stable_mosaic.version = 11 : i64} {
  func.func @_block_kernel(%arg0: i32, %arg1: memref<1x8x32xf32, #tpu.memory_space<vmem>>, %arg2: memref<1x8x8xf32, #tpu.memory_space<vmem>>, %arg3: memref<1x32xf32, #tpu.memory_space<vmem>>, %arg4: memref<1x32xf32, #tpu.memory_space<vmem>>, %arg5: memref<32x96xbf16, #tpu.memory_space<vmem>>, %arg6: memref<1x96xf32, #tpu.memory_space<vmem>>, %arg7: memref<32x32xbf16, #tpu.memory_space<vmem>>, %arg8: memref<1x32xf32, #tpu.memory_space<vmem>>, %arg9: memref<1x32xf32, #tpu.memory_space<vmem>>, %arg10: memref<1x32xf32, #tpu.memory_space<vmem>>, %arg11: memref<32x128xbf16, #tpu.memory_space<vmem>>, %arg12: memref<1x128xf32, #tpu.memory_space<vmem>>, %arg13: memref<128x32xbf16, #tpu.memory_space<vmem>>, %arg14: memref<1x32xf32, #tpu.memory_space<vmem>>, %arg15: memref<1x8x32xf32, #tpu.memory_space<vmem>>) attributes {dimension_semantics = [#tpu.dimension_semantics<parallel>], iteration_bounds = array<i64: 2>, scalar_prefetch = 0 : i64, scratch_operands = 0 : i64, tpu.core_type = #tpu.core_type<tc>, window_params = [{transform_indices = @transform_0, window_bounds = array<i64: 1, 8, 32>}, {transform_indices = @transform_1, window_bounds = array<i64: 1, 8, 8>}, {pipeline_mode = #tpu.pipeline_mode<synchronous>, transform_indices = @transform_2, window_bounds = array<i64: 1, 32>}, {pipeline_mode = #tpu.pipeline_mode<synchronous>, transform_indices = @transform_3, window_bounds = array<i64: 1, 32>}, {pipeline_mode = #tpu.pipeline_mode<synchronous>, transform_indices = @transform_4, window_bounds = array<i64: 32, 96>}, {pipeline_mode = #tpu.pipeline_mode<synchronous>, transform_indices = @transform_5, window_bounds = array<i64: 1, 96>}, {pipeline_mode = #tpu.pipeline_mode<synchronous>, transform_indices = @transform_6, window_bounds = array<i64: 32, 32>}, {pipeline_mode = #tpu.pipeline_mode<synchronous>, transform_indices = @transform_7, window_bounds = array<i64: 1, 32>}, {pipeline_mode = #tpu.pipeline_mode<synchronous>, transform_indices = @transform_8, window_bounds = array<i64: 1, 32>}, {pipeline_mode = #tpu.pipeline_mode<synchronous>, transform_indices = @transform_9, window_bounds = array<i64: 1, 32>}, {pipeline_mode = #tpu.pipeline_mode<synchronous>, transform_indices = @transform_10, window_bounds = array<i64: 32, 128>}, {pipeline_mode = #tpu.pipeline_mode<synchronous>, transform_indices = @transform_11, window_bounds = array<i64: 1, 128>}, {pipeline_mode = #tpu.pipeline_mode<synchronous>, transform_indices = @transform_12, window_bounds = array<i64: 128, 32>}, {pipeline_mode = #tpu.pipeline_mode<synchronous>, transform_indices = @transform_13, window_bounds = array<i64: 1, 32>}, {transform_indices = @transform_14, window_bounds = array<i64: 1, 8, 32>}]} {
    %c0 = arith.constant 0 : index
    %c0_0 = arith.constant 0 : index
    %c0_1 = arith.constant 0 : index
    %0 = vector.load %arg1[%c0, %c0_0, %c0_1] : memref<1x8x32xf32, #tpu.memory_space<vmem>>, vector<1x8x32xf32>
    %1 = vector.shape_cast %0 : vector<1x8x32xf32> to vector<8x32xf32>
    %c0_2 = arith.constant 0 : index
    %c0_3 = arith.constant 0 : index
    %c0_4 = arith.constant 0 : index
    %2 = vector.load %arg2[%c0_2, %c0_3, %c0_4] : memref<1x8x8xf32, #tpu.memory_space<vmem>>, vector<1x8x8xf32>
    %3 = vector.shape_cast %2 : vector<1x8x8xf32> to vector<8x8xf32>
    %c0_5 = arith.constant 0 : index
    %c0_6 = arith.constant 0 : index
    %4 = vector.load %arg3[%c0_5, %c0_6] : memref<1x32xf32, #tpu.memory_space<vmem>>, vector<1x32xf32>
    %5 = vector.shape_cast %4 : vector<1x32xf32> to vector<32xf32>
    %c0_7 = arith.constant 0 : index
    %c0_8 = arith.constant 0 : index
    %6 = vector.load %arg4[%c0_7, %c0_8] : memref<1x32xf32, #tpu.memory_space<vmem>>, vector<1x32xf32>
    %7 = vector.shape_cast %6 : vector<1x32xf32> to vector<32xf32>
    %cst = arith.constant dense<0.000000e+00> : vector<8xf32>
    %8 = vector.multi_reduction <add>, %1, %cst [1] : vector<8x32xf32> to vector<8xf32>
    %9 = vector.shape_cast %8 : vector<8xf32> to vector<8x1xf32>
    %cst_9 = arith.constant 3.200000e+01 : f32
    %10 = vector.broadcast %cst_9 : f32 to vector<8x1xf32>
    %11 = arith.divf %9, %10 : vector<8x1xf32>
    %12 = vector.broadcast %11 : vector<8x1xf32> to vector<8x32xf32>
    %13 = arith.subf %1, %12 : vector<8x32xf32>
    %14 = arith.mulf %13, %13 : vector<8x32xf32>
    %cst_10 = arith.constant dense<0.000000e+00> : vector<8xf32>
    %15 = vector.multi_reduction <add>, %14, %cst_10 [1] : vector<8x32xf32> to vector<8xf32>
    %16 = vector.shape_cast %15 : vector<8xf32> to vector<8x1xf32>
    %cst_11 = arith.constant 3.200000e+01 : f32
    %17 = vector.broadcast %cst_11 : f32 to vector<8x1xf32>
    %18 = arith.divf %16, %17 : vector<8x1xf32>
    %19 = vector.broadcast %11 : vector<8x1xf32> to vector<8x32xf32>
    %20 = arith.subf %1, %19 : vector<8x32xf32>
    %cst_12 = arith.constant 9.99999974E-6 : f32
    %21 = vector.broadcast %cst_12 : f32 to vector<8x1xf32>
    %22 = arith.addf %18, %21 : vector<8x1xf32>
    %23 = math.rsqrt %22 : vector<8x1xf32>
    %24 = vector.broadcast %23 : vector<8x1xf32> to vector<8x32xf32>
    %25 = arith.mulf %20, %24 : vector<8x32xf32>
    %26 = vector.shape_cast %5 : vector<32xf32> to vector<1x32xf32>
    %27 = vector.broadcast %26 : vector<1x32xf32> to vector<8x32xf32>
    %28 = arith.mulf %25, %27 : vector<8x32xf32>
    %29 = vector.shape_cast %7 : vector<32xf32> to vector<1x32xf32>
    %30 = vector.broadcast %29 : vector<1x32xf32> to vector<8x32xf32>
    %31 = arith.addf %28, %30 : vector<8x32xf32>
    %32 = arith.truncf %31 : vector<8x32xf32> to vector<8x32xbf16>
    %c0_13 = arith.constant 0 : index
    %c0_14 = arith.constant 0 : index
    %33 = vector.load %arg5[%c0_13, %c0_14] : memref<32x96xbf16, #tpu.memory_space<vmem>>, vector<32x96xbf16>
    %cst_15 = arith.constant dense<0.000000e+00> : vector<8x96xf32>
    %34 = tpu.matmul %32, %33, %cst_15 {dimension_numbers = #tpu.dot_dimension_numbers<[1], [0], [0], [1], [0, 0, 1, 1], [], []>} : vector<8x32xbf16>, vector<32x96xbf16>, vector<8x96xf32> -> vector<8x96xf32>
    %c0_16 = arith.constant 0 : index
    %c0_17 = arith.constant 0 : index
    %35 = vector.load %arg6[%c0_16, %c0_17] : memref<1x96xf32, #tpu.memory_space<vmem>>, vector<1x96xf32>
    %36 = vector.shape_cast %35 : vector<1x96xf32> to vector<96xf32>
    %37 = vector.shape_cast %36 : vector<96xf32> to vector<1x96xf32>
    %38 = vector.broadcast %37 : vector<1x96xf32> to vector<8x96xf32>
    %39 = arith.addf %34, %38 : vector<8x96xf32>
    %40 = vector.extract_strided_slice %39 {offsets = [0, 0], sizes = [8, 32], strides = [1, 1]} : vector<8x96xf32> to vector<8x32xf32>
    %41 = vector.shape_cast %40 : vector<8x32xf32> to vector<8x4x8xf32>
    %42 = tpu.transpose %41, [1, 0, 2] : vector<8x4x8xf32> -> vector<4x8x8xf32>
    %43 = arith.truncf %42 : vector<4x8x8xf32> to vector<4x8x8xbf16>
    %44 = vector.extract_strided_slice %39 {offsets = [0, 32], sizes = [8, 32], strides = [1, 1]} : vector<8x96xf32> to vector<8x32xf32>
    %45 = vector.shape_cast %44 : vector<8x32xf32> to vector<8x4x8xf32>
    %46 = tpu.transpose %45, [1, 0, 2] : vector<8x4x8xf32> -> vector<4x8x8xf32>
    %47 = arith.truncf %46 : vector<4x8x8xf32> to vector<4x8x8xbf16>
    %48 = vector.extract_strided_slice %39 {offsets = [0, 64], sizes = [8, 32], strides = [1, 1]} : vector<8x96xf32> to vector<8x32xf32>
    %49 = vector.shape_cast %48 : vector<8x32xf32> to vector<8x4x8xf32>
    %50 = tpu.transpose %49, [1, 0, 2] : vector<8x4x8xf32> -> vector<4x8x8xf32>
    %51 = arith.truncf %50 : vector<4x8x8xf32> to vector<4x8x8xbf16>
    "tpu.trace_start"() <{level = 10 : i32, message = "hqd,hkd->hqk"}> : () -> ()
    %cst_18 = arith.constant dense<0.000000e+00> : vector<4x8x8xf32>
    %52 = tpu.matmul %43, %47, %cst_18 {dimension_numbers = #tpu.dot_dimension_numbers<[2], [2], [1], [1], [0, 0, 0, 1, 1, 1], [0], [0]>} : vector<4x8x8xbf16>, vector<4x8x8xbf16>, vector<4x8x8xf32> -> vector<4x8x8xf32>
    "tpu.trace_stop"() : () -> ()
    %53 = vector.shape_cast %3 : vector<8x8xf32> to vector<1x8x8xf32>
    %54 = vector.broadcast %53 : vector<1x8x8xf32> to vector<4x8x8xf32>
    %55 = arith.addf %52, %54 : vector<4x8x8xf32>
    %cst_19 = arith.constant dense<0xFF800000> : vector<4x8xf32>
    %56 = vector.multi_reduction <maximumf>, %55, %cst_19 [2] : vector<4x8x8xf32> to vector<4x8xf32>
    %57 = vector.shape_cast %56 : vector<4x8xf32> to vector<4x8x1xf32>
    %58 = vector.broadcast %57 : vector<4x8x1xf32> to vector<4x8x8xf32>
    %59 = arith.subf %55, %58 : vector<4x8x8xf32>
    %60 = math.exp %59 : vector<4x8x8xf32>
    %cst_20 = arith.constant dense<0.000000e+00> : vector<4x8xf32>
    %61 = vector.multi_reduction <add>, %60, %cst_20 [2] : vector<4x8x8xf32> to vector<4x8xf32>
    %62 = vector.shape_cast %61 : vector<4x8xf32> to vector<4x8x1xf32>
    %63 = arith.truncf %60 : vector<4x8x8xf32> to vector<4x8x8xbf16>
    "tpu.trace_start"() <{level = 10 : i32, message = "hqk,hkd->hqd"}> : () -> ()
    %cst_21 = arith.constant dense<0.000000e+00> : vector<4x8x8xf32>
    %64 = tpu.matmul %63, %51, %cst_21 {dimension_numbers = #tpu.dot_dimension_numbers<[2], [1], [1], [2], [0, 0, 0, 1, 1, 2], [0], [0]>} : vector<4x8x8xbf16>, vector<4x8x8xbf16>, vector<4x8x8xf32> -> vector<4x8x8xf32>
    "tpu.trace_stop"() : () -> ()
    %65 = tpu.reciprocal %62 {approx = true} : vector<4x8x1xf32> -> vector<4x8x1xf32>
    %66 = vector.broadcast %65 : vector<4x8x1xf32> to vector<4x8x8xf32>
    %67 = arith.mulf %64, %66 : vector<4x8x8xf32>
    %68 = tpu.transpose %67, [1, 0, 2] : vector<4x8x8xf32> -> vector<8x4x8xf32>
    %69 = vector.shape_cast %68 : vector<8x4x8xf32> to vector<8x32xf32>
    %70 = arith.truncf %69 : vector<8x32xf32> to vector<8x32xbf16>
    %c0_22 = arith.constant 0 : index
    %c0_23 = arith.constant 0 : index
    %71 = vector.load %arg7[%c0_22, %c0_23] : memref<32x32xbf16, #tpu.memory_space<vmem>>, vector<32x32xbf16>
    %cst_24 = arith.constant dense<0.000000e+00> : vector<8x32xf32>
    %72 = tpu.matmul %70, %71, %cst_24 {dimension_numbers = #tpu.dot_dimension_numbers<[1], [0], [0], [1], [0, 0, 1, 1], [], []>} : vector<8x32xbf16>, vector<32x32xbf16>, vector<8x32xf32> -> vector<8x32xf32>
    %c0_25 = arith.constant 0 : index
    %c0_26 = arith.constant 0 : index
    %73 = vector.load %arg8[%c0_25, %c0_26] : memref<1x32xf32, #tpu.memory_space<vmem>>, vector<1x32xf32>
    %74 = vector.shape_cast %73 : vector<1x32xf32> to vector<32xf32>
    %75 = vector.shape_cast %74 : vector<32xf32> to vector<1x32xf32>
    %76 = vector.broadcast %75 : vector<1x32xf32> to vector<8x32xf32>
    %77 = arith.addf %72, %76 : vector<8x32xf32>
    %78 = arith.addf %1, %77 : vector<8x32xf32>
    %c0_27 = arith.constant 0 : index
    %c0_28 = arith.constant 0 : index
    %79 = vector.load %arg9[%c0_27, %c0_28] : memref<1x32xf32, #tpu.memory_space<vmem>>, vector<1x32xf32>
    %80 = vector.shape_cast %79 : vector<1x32xf32> to vector<32xf32>
    %c0_29 = arith.constant 0 : index
    %c0_30 = arith.constant 0 : index
    %81 = vector.load %arg10[%c0_29, %c0_30] : memref<1x32xf32, #tpu.memory_space<vmem>>, vector<1x32xf32>
    %82 = vector.shape_cast %81 : vector<1x32xf32> to vector<32xf32>
    %cst_31 = arith.constant dense<0.000000e+00> : vector<8xf32>
    %83 = vector.multi_reduction <add>, %78, %cst_31 [1] : vector<8x32xf32> to vector<8xf32>
    %84 = vector.shape_cast %83 : vector<8xf32> to vector<8x1xf32>
    %cst_32 = arith.constant 3.200000e+01 : f32
    %85 = vector.broadcast %cst_32 : f32 to vector<8x1xf32>
    %86 = arith.divf %84, %85 : vector<8x1xf32>
    %87 = vector.broadcast %86 : vector<8x1xf32> to vector<8x32xf32>
    %88 = arith.subf %78, %87 : vector<8x32xf32>
    %89 = arith.mulf %88, %88 : vector<8x32xf32>
    %cst_33 = arith.constant dense<0.000000e+00> : vector<8xf32>
    %90 = vector.multi_reduction <add>, %89, %cst_33 [1] : vector<8x32xf32> to vector<8xf32>
    %91 = vector.shape_cast %90 : vector<8xf32> to vector<8x1xf32>
    %cst_34 = arith.constant 3.200000e+01 : f32
    %92 = vector.broadcast %cst_34 : f32 to vector<8x1xf32>
    %93 = arith.divf %91, %92 : vector<8x1xf32>
    %94 = vector.broadcast %86 : vector<8x1xf32> to vector<8x32xf32>
    %95 = arith.subf %78, %94 : vector<8x32xf32>
    %cst_35 = arith.constant 9.99999974E-6 : f32
    %96 = vector.broadcast %cst_35 : f32 to vector<8x1xf32>
    %97 = arith.addf %93, %96 : vector<8x1xf32>
    %98 = math.rsqrt %97 : vector<8x1xf32>
    %99 = vector.broadcast %98 : vector<8x1xf32> to vector<8x32xf32>
    %100 = arith.mulf %95, %99 : vector<8x32xf32>
    %101 = vector.shape_cast %80 : vector<32xf32> to vector<1x32xf32>
    %102 = vector.broadcast %101 : vector<1x32xf32> to vector<8x32xf32>
    %103 = arith.mulf %100, %102 : vector<8x32xf32>
    %104 = vector.shape_cast %82 : vector<32xf32> to vector<1x32xf32>
    %105 = vector.broadcast %104 : vector<1x32xf32> to vector<8x32xf32>
    %106 = arith.addf %103, %105 : vector<8x32xf32>
    %107 = arith.truncf %106 : vector<8x32xf32> to vector<8x32xbf16>
    %c0_36 = arith.constant 0 : index
    %c0_37 = arith.constant 0 : index
    %108 = vector.load %arg11[%c0_36, %c0_37] : memref<32x128xbf16, #tpu.memory_space<vmem>>, vector<32x128xbf16>
    %cst_38 = arith.constant dense<0.000000e+00> : vector<8x128xf32>
    %109 = tpu.matmul %107, %108, %cst_38 {dimension_numbers = #tpu.dot_dimension_numbers<[1], [0], [0], [1], [0, 0, 1, 1], [], []>} : vector<8x32xbf16>, vector<32x128xbf16>, vector<8x128xf32> -> vector<8x128xf32>
    %c0_39 = arith.constant 0 : index
    %c0_40 = arith.constant 0 : index
    %110 = vector.load %arg12[%c0_39, %c0_40] : memref<1x128xf32, #tpu.memory_space<vmem>>, vector<1x128xf32>
    %111 = vector.shape_cast %110 : vector<1x128xf32> to vector<128xf32>
    %112 = vector.shape_cast %111 : vector<128xf32> to vector<1x128xf32>
    %113 = vector.broadcast %112 : vector<1x128xf32> to vector<8x128xf32>
    %114 = arith.addf %109, %113 : vector<8x128xf32>
    %cst_41 = arith.constant 1.702000e+00 : f32
    %115 = vector.broadcast %cst_41 : f32 to vector<8x128xf32>
    %116 = arith.mulf %115, %114 : vector<8x128xf32>
    %117 = arith.negf %116 : vector<8x128xf32>
    %118 = math.exp %117 : vector<8x128xf32>
    %cst_42 = arith.constant 1.000000e+00 : f32
    %119 = vector.broadcast %cst_42 : f32 to vector<8x128xf32>
    %120 = arith.addf %119, %118 : vector<8x128xf32>
    %121 = arith.divf %119, %120 : vector<8x128xf32>
    %122 = arith.mulf %114, %121 : vector<8x128xf32>
    %123 = arith.truncf %122 : vector<8x128xf32> to vector<8x128xbf16>
    %c0_43 = arith.constant 0 : index
    %c0_44 = arith.constant 0 : index
    %124 = vector.load %arg13[%c0_43, %c0_44] : memref<128x32xbf16, #tpu.memory_space<vmem>>, vector<128x32xbf16>
    %cst_45 = arith.constant dense<0.000000e+00> : vector<8x32xf32>
    %125 = tpu.matmul %123, %124, %cst_45 {dimension_numbers = #tpu.dot_dimension_numbers<[1], [0], [0], [1], [0, 0, 1, 1], [], []>} : vector<8x128xbf16>, vector<128x32xbf16>, vector<8x32xf32> -> vector<8x32xf32>
    %c0_46 = arith.constant 0 : index
    %c0_47 = arith.constant 0 : index
    %126 = vector.load %arg14[%c0_46, %c0_47] : memref<1x32xf32, #tpu.memory_space<vmem>>, vector<1x32xf32>
    %127 = vector.shape_cast %126 : vector<1x32xf32> to vector<32xf32>
    %128 = vector.shape_cast %127 : vector<32xf32> to vector<1x32xf32>
    %129 = vector.broadcast %128 : vector<1x32xf32> to vector<8x32xf32>
    %130 = arith.addf %125, %129 : vector<8x32xf32>
    %131 = arith.addf %78, %130 : vector<8x32xf32>
    %c0_48 = arith.constant 0 : index
    %c0_49 = arith.constant 0 : index
    %c0_50 = arith.constant 0 : index
    %132 = vector.load %arg15[%c0_48, %c0_49, %c0_50] : memref<1x8x32xf32, #tpu.memory_space<vmem>>, vector<1x8x32xf32>
    %133 = vector.shape_cast %132 : vector<1x8x32xf32> to vector<8x32xf32>
    %134 = vector.shape_cast %131 : vector<8x32xf32> to vector<1x8x32xf32>
    tpu.vector_store %arg15[%c0_48, %c0_49, %c0_50], %134 {strides = array<i32>} : memref<1x8x32xf32, #tpu.memory_space<vmem>>, vector<1x8x32xf32>,
    return
  }
  func.func @transform_0(%arg0: i32) -> (i32, i32, i32) {
    %c0_i32 = arith.constant 0 : i32
    %c0_i32_0 = arith.constant 0 : i32
    %c0_i32_1 = arith.constant 0 : i32
    return %arg0, %c0_i32, %c0_i32_0 : i32, i32, i32
  }
  func.func @transform_1(%arg0: i32) -> (i32, i32, i32) {
    %c0_i32 = arith.constant 0 : i32
    %c0_i32_0 = arith.constant 0 : i32
    %c0_i32_1 = arith.constant 0 : i32
    return %arg0, %c0_i32, %c0_i32_0 : i32, i32, i32
  }
  func.func @transform_2(%arg0: i32) -> (i32, i32) {
    %c0_i32 = arith.constant 0 : i32
    %c0_i32_0 = arith.constant 0 : i32
    %c0_i32_1 = arith.constant 0 : i32
    return %c0_i32, %c0_i32_0 : i32, i32
  }
  func.func @transform_3(%arg0: i32) -> (i32, i32) {
    %c0_i32 = arith.constant 0 : i32
    %c0_i32_0 = arith.constant 0 : i32
    %c0_i32_1 = arith.constant 0 : i32
    return %c0_i32, %c0_i32_0 : i32, i32
  }
  func.func @transform_4(%arg0: i32) -> (i32, i32) {
    %c0_i32 = arith.constant 0 : i32
    %c0_i32_0 = arith.constant 0 : i32
    %c0_i32_1 = arith.constant 0 : i32
    return %c0_i32, %c0_i32_0 : i32, i32
  }
  func.func @transform_5(%arg0: i32) -> (i32, i32) {
    %c0_i32 = arith.constant 0 : i32
    %c0_i32_0 = arith.constant 0 : i32
    %c0_i32_1 = arith.constant 0 : i32
    return %c0_i32, %c0_i32_0 : i32, i32
  }
  func.func @transform_6(%arg0: i32) -> (i32, i32) {
    %c0_i32 = arith.constant 0 : i32
    %c0_i32_0 = arith.constant 0 : i32
    %c0_i32_1 = arith.constant 0 : i32
    return %c0_i32, %c0_i32_0 : i32, i32
  }
  func.func @transform_7(%arg0: i32) -> (i32, i32) {
    %c0_i32 = arith.constant 0 : i32
    %c0_i32_0 = arith.constant 0 : i32
    %c0_i32_1 = arith.constant 0 : i32
    return %c0_i32, %c0_i32_0 : i32, i32
  }
  func.func @transform_8(%arg0: i32) -> (i32, i32) {
    %c0_i32 = arith.constant 0 : i32
    %c0_i32_0 = arith.constant 0 : i32
    %c0_i32_1 = arith.constant 0 : i32
    return %c0_i32, %c0_i32_0 : i32, i32
  }
  func.func @transform_9(%arg0: i32) -> (i32, i32) {
    %c0_i32 = arith.constant 0 : i32
    %c0_i32_0 = arith.constant 0 : i32
    %c0_i32_1 = arith.constant 0 : i32
    return %c0_i32, %c0_i32_0 : i32, i32
  }
  func.func @transform_10(%arg0: i32) -> (i32, i32) {
    %c0_i32 = arith.constant 0 : i32
    %c0_i32_0 = arith.constant 0 : i32
    %c0_i32_1 = arith.constant 0 : i32
    return %c0_i32, %c0_i32_0 : i32, i32
  }
  func.func @transform_11(%arg0: i32) -> (i32, i32) {
    %c0_i32 = arith.constant 0 : i32
    %c0_i32_0 = arith.constant 0 : i32
    %c0_i32_1 = arith.constant 0 : i32
    return %c0_i32, %c0_i32_0 : i32, i32
  }
  func.func @transform_12(%arg0: i32) -> (i32, i32) {
    %c0_i32 = arith.constant 0 : i32
    %c0_i32_0 = arith.constant 0 : i32
    %c0_i32_1 = arith.constant 0 : i32
    return %c0_i32, %c0_i32_0 : i32, i32
  }
  func.func @transform_13(%arg0: i32) -> (i32, i32) {
    %c0_i32 = arith.constant 0 : i32
    %c0_i32_0 = arith.constant 0 : i32
    %c0_i32_1 = arith.constant 0 : i32
    return %c0_i32, %c0_i32_0 : i32, i32
  }
  func.func @transform_14(%arg0: i32) -> (i32, i32, i32) {
    %c0_i32 = arith.constant 0 : i32
    %c0_i32_0 = arith.constant 0 : i32
    %c0_i32_1 = arith.constant 0 : i32
    return %arg0, %c0_i32, %c0_i32_0 : i32, i32, i32
  }
}

module attributes {stable_mosaic.version = 11 : i64} {
  func.func @_block_kernel(%arg0: i32, %arg1: memref<1x8x32xf32, #tpu.memory_space<vmem>>, %arg2: memref<1x8x8xf32, #tpu.memory_space<vmem>>, %arg3: memref<1x32xf32, #tpu.memory_space<vmem>>, %arg4: memref<1x32xf32, #tpu.memory_space<vmem>>, %arg5: memref<32x96xbf16, #tpu.memory_space<vmem>>, %arg6: memref<1x96xf32, #tpu.memory_space<vmem>>, %arg7: memref<32x32xbf16, #tpu.memory_space<vmem>>, %arg8: memref<1x32xf32, #tpu.memory_space<vmem>>, %arg9: memref<1x32xf32, #tpu.memory_space<vmem>>, %arg10: memref<1x32xf32, #tpu.memory_space<vmem>>, %arg11: memref<32x128xbf16, #tpu.memory_space<vmem>>, %arg12: memref<1x128xf32, #tpu.memory_space<vmem>>, %arg13: memref<128x32xbf16, #tpu.memory_space<vmem>>, %arg14: memref<1x32xf32, #tpu.memory_space<vmem>>, %arg15: memref<1x8x32xf32, #tpu.memory_space<vmem>>) attributes {dimension_semantics = [#tpu.dimension_semantics<parallel>], iteration_bounds = array<i64: 2>, scalar_prefetch = 0 : i64, scratch_operands = 0 : i64, tpu.core_type = #tpu.core_type<tc>, window_params = [{transform_indices = @transform_0, window_bounds = array<i64: 1, 8, 32>}, {transform_indices = @transform_1, window_bounds = array<i64: 1, 8, 8>}, {pipeline_mode = #tpu.pipeline_mode<synchronous>, transform_indices = @transform_2, window_bounds = array<i64: 1, 32>}, {pipeline_mode = #tpu.pipeline_mode<synchronous>, transform_indices = @transform_3, window_bounds = array<i64: 1, 32>}, {pipeline_mode = #tpu.pipeline_mode<synchronous>, transform_indices = @transform_4, window_bounds = array<i64: 32, 96>}, {pipeline_mode = #tpu.pipeline_mode<synchronous>, transform_indices = @transform_5, window_bounds = array<i64: 1, 96>}, {pipeline_mode = #tpu.pipeline_mode<synchronous>, transform_indices = @transform_6, window_bounds = array<i64: 32, 32>}, {pipeline_mode = #tpu.pipeline_mode<synchronous>, transform_indices = @transform_7, window_bounds = array<i64: 1, 32>}, {pipeline_mode = #tpu.pipeline_mode<synchronous>, transform_indices = @transform_8, window_bounds = array<i64: 1, 32>}, {pipeline_mode = #tpu.pipeline_mode<synchronous>, transform_indices = @transform_9, window_bounds = array<i64: 1, 32>}, {pipeline_mode = #tpu.pipeline_mode<synchronous>, transform_indices = @transform_10, window_bounds = array<i64: 32, 128>}, {pipeline_mode = #tpu.pipeline_mode<synchronous>, transform_indices = @transform_11, window_bounds = array<i64: 1, 128>}, {pipeline_mode = #tpu.pipeline_mode<synchronous>, transform_indices = @transform_12, window_bounds = array<i64: 128, 32>}, {pipeline_mode = #tpu.pipeline_mode<synchronous>, transform_indices = @transform_13, window_bounds = array<i64: 1, 32>}, {transform_indices = @transform_14, window_bounds = array<i64: 1, 8, 32>}]} {
    %c0 = arith.constant 0 : index
    %c0_0 = arith.constant 0 : index
    %c0_1 = arith.constant 0 : index
    %0 = vector.load %arg1[%c0, %c0_0, %c0_1] : memref<1x8x32xf32, #tpu.memory_space<vmem>>, vector<1x8x32xf32>
    %1 = vector.shape_cast %0 : vector<1x8x32xf32> to vector<8x32xf32>
    %c0_2 = arith.constant 0 : index
    %c0_3 = arith.constant 0 : index
    %c0_4 = arith.constant 0 : index
    %2 = vector.load %arg2[%c0_2, %c0_3, %c0_4] : memref<1x8x8xf32, #tpu.memory_space<vmem>>, vector<1x8x8xf32>
    %3 = vector.shape_cast %2 : vector<1x8x8xf32> to vector<8x8xf32>
    %c0_5 = arith.constant 0 : index
    %c0_6 = arith.constant 0 : index
    %4 = vector.load %arg3[%c0_5, %c0_6] : memref<1x32xf32, #tpu.memory_space<vmem>>, vector<1x32xf32>
    %5 = vector.shape_cast %4 : vector<1x32xf32> to vector<32xf32>
    %c0_7 = arith.constant 0 : index
    %c0_8 = arith.constant 0 : index
    %6 = vector.load %arg4[%c0_7, %c0_8] : memref<1x32xf32, #tpu.memory_space<vmem>>, vector<1x32xf32>
    %7 = vector.shape_cast %6 : vector<1x32xf32> to vector<32xf32>
    %cst = arith.constant dense<0.000000e+00> : vector<8xf32>
    %8 = vector.multi_reduction <add>, %1, %cst [1] : vector<8x32xf32> to vector<8xf32>
    %9 = vector.shape_cast %8 : vector<8xf32> to vector<8x1xf32>
    %cst_9 = arith.constant 3.200000e+01 : f32
    %10 = vector.broadcast %cst_9 : f32 to vector<8x1xf32>
    %11 = arith.divf %9, %10 : vector<8x1xf32>
    %12 = vector.broadcast %11 : vector<8x1xf32> to vector<8x32xf32>
    %13 = arith.subf %1, %12 : vector<8x32xf32>
    %14 = arith.mulf %13, %13 : vector<8x32xf32>
    %cst_10 = arith.constant dense<0.000000e+00> : vector<8xf32>
    %15 = vector.multi_reduction <add>, %14, %cst_10 [1] : vector<8x32xf32> to vector<8xf32>
    %16 = vector.shape_cast %15 : vector<8xf32> to vector<8x1xf32>
    %cst_11 = arith.constant 3.200000e+01 : f32
    %17 = vector.broadcast %cst_11 : f32 to vector<8x1xf32>
    %18 = arith.divf %16, %17 : vector<8x1xf32>
    %19 = vector.broadcast %11 : vector<8x1xf32> to vector<8x32xf32>
    %20 = arith.subf %1, %19 : vector<8x32xf32>
    %cst_12 = arith.constant 9.99999974E-6 : f32
    %21 = vector.broadcast %cst_12 : f32 to vector<8x1xf32>
    %22 = arith.addf %18, %21 : vector<8x1xf32>
    %23 = math.rsqrt %22 : vector<8x1xf32>
    %24 = vector.broadcast %23 : vector<8x1xf32> to vector<8x32xf32>
    %25 = arith.mulf %20, %24 : vector<8x32xf32>
    %26 = vector.shape_cast %5 : vector<32xf32> to vector<1x32xf32>
    %27 = vector.broadcast %26 : vector<1x32xf32> to vector<8x32xf32>
    %28 = arith.mulf %25, %27 : vector<8x32xf32>
    %29 = vector.shape_cast %7 : vector<32xf32> to vector<1x32xf32>
    %30 = vector.broadcast %29 : vector<1x32xf32> to vector<8x32xf32>
    %31 = arith.addf %28, %30 : vector<8x32xf32>
    %32 = arith.truncf %31 : vector<8x32xf32> to vector<8x32xbf16>
    %c0_13 = arith.constant 0 : index
    %c0_14 = arith.constant 0 : index
    %33 = vector.load %arg5[%c0_13, %c0_14] : memref<32x96xbf16, #tpu.memory_space<vmem>>, vector<32x96xbf16>
    %cst_15 = arith.constant dense<0.000000e+00> : vector<8x96xf32>
    %34 = tpu.matmul %32, %33, %cst_15 {dimension_numbers = #tpu.dot_dimension_numbers<[1], [0], [0], [1], [0, 0, 1, 1], [], []>} : vector<8x32xbf16>, vector<32x96xbf16>, vector<8x96xf32> -> vector<8x96xf32>
    %c0_16 = arith.constant 0 : index
    %c0_17 = arith.constant 0 : index
    %35 = vector.load %arg6[%c0_16, %c0_17] : memref<1x96xf32, #tpu.memory_space<vmem>>, vector<1x96xf32>
    %36 = vector.shape_cast %35 : vector<1x96xf32> to vector<96xf32>
    %37 = vector.shape_cast %36 : vector<96xf32> to vector<1x96xf32>
    %38 = vector.broadcast %37 : vector<1x96xf32> to vector<8x96xf32>
    %39 = arith.addf %34, %38 : vector<8x96xf32>
    %40 = vector.extract_strided_slice %39 {offsets = [0, 0], sizes = [8, 32], strides = [1, 1]} : vector<8x96xf32> to vector<8x32xf32>
    %41 = vector.shape_cast %40 : vector<8x32xf32> to vector<8x4x8xf32>
    %42 = tpu.transpose %41, [1, 0, 2] : vector<8x4x8xf32> -> vector<4x8x8xf32>
    %43 = arith.truncf %42 : vector<4x8x8xf32> to vector<4x8x8xbf16>
    %44 = vector.extract_strided_slice %39 {offsets = [0, 32], sizes = [8, 32], strides = [1, 1]} : vector<8x96xf32> to vector<8x32xf32>
    %45 = vector.shape_cast %44 : vector<8x32xf32> to vector<8x4x8xf32>
    %46 = tpu.transpose %45, [1, 0, 2] : vector<8x4x8xf32> -> vector<4x8x8xf32>
    %47 = arith.truncf %46 : vector<4x8x8xf32> to vector<4x8x8xbf16>
    %48 = vector.extract_strided_slice %39 {offsets = [0, 64], sizes = [8, 32], strides = [1, 1]} : vector<8x96xf32> to vector<8x32xf32>
    %49 = vector.shape_cast %48 : vector<8x32xf32> to vector<8x4x8xf32>
    %50 = tpu.transpose %49, [1, 0, 2] : vector<8x4x8xf32> -> vector<4x8x8xf32>
    %51 = arith.truncf %50 : vector<4x8x8xf32> to vector<4x8x8xbf16>
    "tpu.trace_start"() <{level = 10 : i32, message = "hqd,hkd->hqk"}> : () -> ()
    %cst_18 = arith.constant dense<0.000000e+00> : vector<4x8x8xf32>
    %52 = tpu.matmul %43, %47, %cst_18 {dimension_numbers = #tpu.dot_dimension_numbers<[2], [2], [1], [1], [0, 0, 0, 1, 1, 1], [0], [0]>} : vector<4x8x8xbf16>, vector<4x8x8xbf16>, vector<4x8x8xf32> -> vector<4x8x8xf32>
    "tpu.trace_stop"() : () -> ()
    %53 = vector.shape_cast %3 : vector<8x8xf32> to vector<1x8x8xf32>
    %54 = vector.broadcast %53 : vector<1x8x8xf32> to vector<4x8x8xf32>
    %55 = arith.addf %52, %54 : vector<4x8x8xf32>
    %cst_19 = arith.constant dense<0xFF800000> : vector<4x8xf32>
    %56 = vector.multi_reduction <maximumf>, %55, %cst_19 [2] : vector<4x8x8xf32> to vector<4x8xf32>
    %57 = vector.shape_cast %56 : vector<4x8xf32> to vector<4x8x1xf32>
    %58 = vector.broadcast %57 : vector<4x8x1xf32> to vector<4x8x8xf32>
    %59 = arith.subf %55, %58 : vector<4x8x8xf32>
    %60 = math.exp %59 : vector<4x8x8xf32>
    %cst_20 = arith.constant dense<0.000000e+00> : vector<4x8xf32>
    %61 = vector.multi_reduction <add>, %60, %cst_20 [2] : vector<4x8x8xf32> to vector<4x8xf32>
    %62 = vector.shape_cast %61 : vector<4x8xf32> to vector<4x8x1xf32>
    %63 = arith.truncf %60 : vector<4x8x8xf32> to vector<4x8x8xbf16>
    "tpu.trace_start"() <{level = 10 : i32, message = "hqk,hkd->hqd"}> : () -> ()
    %cst_21 = arith.constant dense<0.000000e+00> : vector<4x8x8xf32>
    %64 = tpu.matmul %63, %51, %cst_21 {dimension_numbers = #tpu.dot_dimension_numbers<[2], [1], [1], [2], [0, 0, 0, 1, 1, 2], [0], [0]>} : vector<4x8x8xbf16>, vector<4x8x8xbf16>, vector<4x8x8xf32> -> vector<4x8x8xf32>
    "tpu.trace_stop"() : () -> ()
    %65 = tpu.reciprocal %62 {approx = true} : vector<4x8x1xf32> -> vector<4x8x1xf32>
    %66 = vector.broadcast %65 : vector<4x8x1xf32> to vector<4x8x8xf32>
    %67 = arith.mulf %64, %66 : vector<4x8x8xf32>
    %68 = tpu.transpose %67, [1, 0, 2] : vector<4x8x8xf32> -> vector<8x4x8xf32>
    %69 = vector.shape_cast %68 : vector<8x4x8xf32> to vector<8x32xf32>
    %70 = arith.truncf %69 : vector<8x32xf32> to vector<8x32xbf16>
    %c0_22 = arith.constant 0 : index
    %c0_23 = arith.constant 0 : index
    %71 = vector.load %arg7[%c0_22, %c0_23] : memref<32x32xbf16, #tpu.memory_space<vmem>>, vector<32x32xbf16>
    %cst_24 = arith.constant dense<0.000000e+00> : vector<8x32xf32>
    %72 = tpu.matmul %70, %71, %cst_24 {dimension_numbers = #tpu.dot_dimension_numbers<[1], [0], [0], [1], [0, 0, 1, 1], [], []>} : vector<8x32xbf16>, vector<32x32xbf16>, vector<8x32xf32> -> vector<8x32xf32>
    %c0_25 = arith.constant 0 : index
    %c0_26 = arith.constant 0 : index
    %73 = vector.load %arg8[%c0_25, %c0_26] : memref<1x32xf32, #tpu.memory_space<vmem>>, vector<1x32xf32>
    %74 = vector.shape_cast %73 : vector<1x32xf32> to vector<32xf32>
    %75 = vector.shape_cast %74 : vector<32xf32> to vector<1x32xf32>
    %76 = vector.broadcast %75 : vector<1x32xf32> to vector<8x32xf32>
    %77 = arith.addf %72, %76 : vector<8x32xf32>
    %78 = arith.addf %1, %77 : vector<8x32xf32>
    %c0_27 = arith.constant 0 : index
    %c0_28 = arith.constant 0 : index
    %79 = vector.load %arg9[%c0_27, %c0_28] : memref<1x32xf32, #tpu.memory_space<vmem>>, vector<1x32xf32>
    %80 = vector.shape_cast %79 : vector<1x32xf32> to vector<32xf32>
    %c0_29 = arith.constant 0 : index
    %c0_30 = arith.constant 0 : index
    %81 = vector.load %arg10[%c0_29, %c0_30] : memref<1x32xf32, #tpu.memory_space<vmem>>, vector<1x32xf32>
    %82 = vector.shape_cast %81 : vector<1x32xf32> to vector<32xf32>
    %cst_31 = arith.constant dense<0.000000e+00> : vector<8xf32>
    %83 = vector.multi_reduction <add>, %78, %cst_31 [1] : vector<8x32xf32> to vector<8xf32>
    %84 = vector.shape_cast %83 : vector<8xf32> to vector<8x1xf32>
    %cst_32 = arith.constant 3.200000e+01 : f32
    %85 = vector.broadcast %cst_32 : f32 to vector<8x1xf32>
    %86 = arith.divf %84, %85 : vector<8x1xf32>
    %87 = vector.broadcast %86 : vector<8x1xf32> to vector<8x32xf32>
    %88 = arith.subf %78, %87 : vector<8x32xf32>
    %89 = arith.mulf %88, %88 : vector<8x32xf32>
    %cst_33 = arith.constant dense<0.000000e+00> : vector<8xf32>
    %90 = vector.multi_reduction <add>, %89, %cst_33 [1] : vector<8x32xf32> to vector<8xf32>
    %91 = vector.shape_cast %90 : vector<8xf32> to vector<8x1xf32>
    %cst_34 = arith.constant 3.200000e+01 : f32
    %92 = vector.broadcast %cst_34 : f32 to vector<8x1xf32>
    %93 = arith.divf %91, %92 : vector<8x1xf32>
    %94 = vector.broadcast %86 : vector<8x1xf32> to vector<8x32xf32>
    %95 = arith.subf %78, %94 : vector<8x32xf32>
    %cst_35 = arith.constant 9.99999974E-6 : f32
    %96 = vector.broadcast %cst_35 : f32 to vector<8x1xf32>
    %97 = arith.addf %93, %96 : vector<8x1xf32>
    %98 = math.rsqrt %97 : vector<8x1xf32>
    %99 = vector.broadcast %98 : vector<8x1xf32> to vector<8x32xf32>
    %100 = arith.mulf %95, %99 : vector<8x32xf32>
    %101 = vector.shape_cast %80 : vector<32xf32> to vector<1x32xf32>
    %102 = vector.broadcast %101 : vector<1x32xf32> to vector<8x32xf32>
    %103 = arith.mulf %100, %102 : vector<8x32xf32>
    %104 = vector.shape_cast %82 : vector<32xf32> to vector<1x32xf32>
    %105 = vector.broadcast %104 : vector<1x32xf32> to vector<8x32xf32>
    %106 = arith.addf %103, %105 : vector<8x32xf32>
    %107 = arith.truncf %106 : vector<8x32xf32> to vector<8x32xbf16>
    %c0_36 = arith.constant 0 : index
    %c0_37 = arith.constant 0 : index
    %108 = vector.load %arg11[%c0_36, %c0_37] : memref<32x128xbf16, #tpu.memory_space<vmem>>, vector<32x128xbf16>
    %cst_38 = arith.constant dense<0.000000e+00> : vector<8x128xf32>
    %109 = tpu.matmul %107, %108, %cst_38 {dimension_numbers = #tpu.dot_dimension_numbers<[1], [0], [0], [1], [0, 0, 1, 1], [], []>} : vector<8x32xbf16>, vector<32x128xbf16>, vector<8x128xf32> -> vector<8x128xf32>
    %c0_39 = arith.constant 0 : index
    %c0_40 = arith.constant 0 : index
    %110 = vector.load %arg12[%c0_39, %c0_40] : memref<1x128xf32, #tpu.memory_space<vmem>>, vector<1x128xf32>
    %111 = vector.shape_cast %110 : vector<1x128xf32> to vector<128xf32>
    %112 = vector.shape_cast %111 : vector<128xf32> to vector<1x128xf32>
    %113 = vector.broadcast %112 : vector<1x128xf32> to vector<8x128xf32>
    %114 = arith.addf %109, %113 : vector<8x128xf32>
    %cst_41 = arith.constant 1.702000e+00 : f32
    %115 = vector.broadcast %cst_41 : f32 to vector<8x128xf32>
    %116 = arith.mulf %115, %114 : vector<8x128xf32>
    %117 = arith.negf %116 : vector<8x128xf32>
    %118 = math.exp %117 : vector<8x128xf32>
    %cst_42 = arith.constant 1.000000e+00 : f32
    %119 = vector.broadcast %cst_42 : f32 to vector<8x128xf32>
    %120 = arith.addf %119, %118 : vector<8x128xf32>
    %121 = arith.divf %119, %120 : vector<8x128xf32>
    %122 = arith.mulf %114, %121 : vector<8x128xf32>
    %123 = arith.truncf %122 : vector<8x128xf32> to vector<8x128xbf16>
    %c0_43 = arith.constant 0 : index
    %c0_44 = arith.constant 0 : index
    %124 = vector.load %arg13[%c0_43, %c0_44] : memref<128x32xbf16, #tpu.memory_space<vmem>>, vector<128x32xbf16>
    %cst_45 = arith.constant dense<0.000000e+00> : vector<8x32xf32>
    %125 = tpu.matmul %123, %124, %cst_45 {dimension_numbers = #tpu.dot_dimension_numbers<[1], [0], [0], [1], [0, 0, 1, 1], [], []>} : vector<8x128xbf16>, vector<128x32xbf16>, vector<8x32xf32> -> vector<8x32xf32>
    %c0_46 = arith.constant 0 : index
    %c0_47 = arith.constant 0 : index
    %126 = vector.load %arg14[%c0_46, %c0_47] : memref<1x32xf32, #tpu.memory_space<vmem>>, vector<1x32xf32>
    %127 = vector.shape_cast %126 : vector<1x32xf32> to vector<32xf32>
    %128 = vector.shape_cast %127 : vector<32xf32> to vector<1x32xf32>
    %129 = vector.broadcast %128 : vector<1x32xf32> to vector<8x32xf32>
    %130 = arith.addf %125, %129 : vector<8x32xf32>
    %131 = arith.addf %78, %130 : vector<8x32xf32>
    %c0_48 = arith.constant 0 : index
    %c0_49 = arith.constant 0 : index
    %c0_50 = arith.constant 0 : index
    %132 = vector.load %arg15[%c0_48, %c0_49, %c0_50] : memref<1x8x32xf32, #tpu.memory_space<vmem>>, vector<1x8x32xf32>
    %133 = vector.shape_cast %132 : vector<1x8x32xf32> to vector<8x32xf32>
    %134 = vector.shape_cast %131 : vector<8x32xf32> to vector<1x8x32xf32>
    tpu.vector_store %arg15[%c0_48, %c0_49, %c0_50], %134 {strides = array<i32>} : memref<1x8x32xf32, #tpu.memory_space<vmem>>, vector<1x8x32xf32>,
    return
  }
  func.func @transform_0(%arg0: i32) -> (i32, i32, i32) {
    %c0_i32 = arith.constant 0 : i32
    %c0_i32_0 = arith.constant 0 : i32
    %c0_i32_1 = arith.constant 0 : i32
    return %arg0, %c0_i32, %c0_i32_0 : i32, i32, i32
  }
  func.func @transform_1(%arg0: i32) -> (i32, i32, i32) {
    %c0_i32 = arith.constant 0 : i32
    %c0_i32_0 = arith.constant 0 : i32
    %c0_i32_1 = arith.constant 0 : i32
    return %arg0, %c0_i32, %c0_i32_0 : i32, i32, i32
  }
  func.func @transform_2(%arg0: i32) -> (i32, i32) {
    %c0_i32 = arith.constant 0 : i32
    %c0_i32_0 = arith.constant 0 : i32
    %c0_i32_1 = arith.constant 0 : i32
    return %c0_i32, %c0_i32_0 : i32, i32
  }
  func.func @transform_3(%arg0: i32) -> (i32, i32) {
    %c0_i32 = arith.constant 0 : i32
    %c0_i32_0 = arith.constant 0 : i32
    %c0_i32_1 = arith.constant 0 : i32
    return %c0_i32, %c0_i32_0 : i32, i32
  }
  func.func @transform_4(%arg0: i32) -> (i32, i32) {
    %c0_i32 = arith.constant 0 : i32
    %c0_i32_0 = arith.constant 0 : i32
    %c0_i32_1 = arith.constant 0 : i32
    return %c0_i32, %c0_i32_0 : i32, i32
  }
  func.func @transform_5(%arg0: i32) -> (i32, i32) {
    %c0_i32 = arith.constant 0 : i32
    %c0_i32_0 = arith.constant 0 : i32
    %c0_i32_1 = arith.constant 0 : i32
    return %c0_i32, %c0_i32_0 : i32, i32
  }
  func.func @transform_6(%arg0: i32) -> (i32, i32) {
    %c0_i32 = arith.constant 0 : i32
    %c0_i32_0 = arith.constant 0 : i32
    %c0_i32_1 = arith.constant 0 : i32
    return %c0_i32, %c0_i32_0 : i32, i32
  }
  func.func @transform_7(%arg0: i32) -> (i32, i32) {
    %c0_i32 = arith.constant 0 : i32
    %c0_i32_0 = arith.constant 0 : i32
    %c0_i32_1 = arith.constant 0 : i32
    return %c0_i32, %c0_i32_0 : i32, i32
  }
  func.func @transform_8(%arg0: i32) -> (i32, i32) {
    %c0_i32 = arith.constant 0 : i32
    %c0_i32_0 = arith.constant 0 : i32
    %c0_i32_1 = arith.constant 0 : i32
    return %c0_i32, %c0_i32_0 : i32, i32
  }
  func.func @transform_9(%arg0: i32) -> (i32, i32) {
    %c0_i32 = arith.constant 0 : i32
    %c0_i32_0 = arith.constant 0 : i32
    %c0_i32_1 = arith.constant 0 : i32
    return %c0_i32, %c0_i32_0 : i32, i32
  }
  func.func @transform_10(%arg0: i32) -> (i32, i32) {
    %c0_i32 = arith.constant 0 : i32
    %c0_i32_0 = arith.constant 0 : i32
    %c0_i32_1 = arith.constant 0 : i32
    return %c0_i32, %c0_i32_0 : i32, i32
  }
  func.func @transform_11(%arg0: i32) -> (i32, i32) {
    %c0_i32 = arith.constant 0 : i32
    %c0_i32_0 = arith.constant 0 : i32
    %c0_i32_1 = arith.constant 0 : i32
    return %c0_i32, %c0_i32_0 : i32, i32
  }
  func.func @transform_12(%arg0: i32) -> (i32, i32) {
    %c0_i32 = arith.constant 0 : i32
    %c0_i32_0 = arith.constant 0 : i32
    %c0_i32_1 = arith.constant 0 : i32
    return %c0_i32, %c0_i32_0 : i32, i32
  }
  func.func @transform_13(%arg0: i32) -> (i32, i32) {
    %c0_i32 = arith.constant 0 : i32
    %c0_i32_0 = arith.constant 0 : i32
    %c0_i32_1 = arith.constant 0 : i32
    return %c0_i32, %c0_i32_0 : i32, i32
  }
  func.func @transform_14(%arg0: i32) -> (i32, i32, i32) {
    %c0_i32 = arith.constant 0 : i32
    %c0_i32_0 = arith.constant 0 : i32
    %c0_i32_1 = arith.constant 0 : i32
    return %arg0, %c0_i32, %c0_i32_0 : i32, i32, i32
  }
}

</mosaic_0001>

<llo_original>
// kernel: tpu_custom_call.1
$region0: #{tpu_custom_call.1}
  #allocation0 [shape = 'u32[]', space=smem, size = 0x4, offset = 0x4, fixed_abs, tag = 'smem constant byte address 0x4 - core index']
  #allocation1 [shape = 'u32[144,128]{1,0:T(1,128)}', space=vmem, size = 0x12000, scoped, tag = 'internal scratch']
  %s0 = inlined_call_operand.vmem [shape: f32[2,8,32], index: 0, kind: input, shape index: {}]
  %s1 = inlined_call_operand.vmem [shape: f32[2,8,8], index: 1, kind: input, shape index: {}]
  %s2 = inlined_call_operand.vmem [shape: f32[1,32], index: 2, kind: input, shape index: {}]
  %s3 = inlined_call_operand.vmem [shape: f32[1,32], index: 3, kind: input, shape index: {}]
  %s4 = inlined_call_operand.vmem [shape: bf16[32,96], index: 4, kind: input, shape index: {}]
  %s5 = inlined_call_operand.vmem [shape: f32[1,96], index: 5, kind: input, shape index: {}]
  %s6 = inlined_call_operand.vmem [shape: bf16[32,32], index: 6, kind: input, shape index: {}]
  %s7 = inlined_call_operand.vmem [shape: f32[1,32], index: 7, kind: input, shape index: {}]
  %s8 = inlined_call_operand.vmem [shape: f32[1,32], index: 8, kind: input, shape index: {}]
  %s9 = inlined_call_operand.hbm [shape: f32[1,32], index: 9, kind: input, shape index: {}]
  %s10 = inlined_call_operand.vmem [shape: bf16[32,128], index: 10, kind: input, shape index: {}]
  %s11 = inlined_call_operand.hbm [shape: f32[1,128], index: 11, kind: input, shape index: {}]
  %s12 = inlined_call_operand.vmem [shape: bf16[128,32], index: 12, kind: input, shape index: {}]
  %s13 = inlined_call_operand.vmem [shape: f32[1,32], index: 13, kind: input, shape index: {}]
  %s14 = inlined_call_operand.hbm [shape: f32[2,8,32], index: 14, kind: output, shape index: {}]
  %s15 = sld [smem:[#allocation0]]
  $region97: #{tpu_custom_call.1} parent=0
    _
  %s17 = ssub.s32 1, %s15
  %s18 = scalar_select 0, %s17, %s15
  $region1: #{tpu_custom_call.1} parent=0
    #allocation2 [shape = 'u8[512]{0}', space=vmem, size = 0x400, scoped, tag = 'input window, operand 9, single buffered']
    #allocation3 [shape = 's32[2]{0}', space=sflag, size = 0x8, scoped, tag = 'scoped memory for tpu_custom_call.1']
    #allocation4 [shape = 's32[2]{0}', space=sflag, size = 0x8, scoped, tag = 'scoped memory for tpu_custom_call.1']
    #allocation5 [shape = 'u8[512]{0}', space=vmem, size = 0x400, scoped, tag = 'input window, operand 11, single buffered']
    #allocation6 [shape = 's32[1]{0}', space=sflag, size = 0x4, scoped, tag = 'scoped memory for tpu_custom_call.1']
    #allocation7 [shape = 'u8[8192]{0}', space=vmem, size = 0x2000, scoped, tag = 'output window, operand 0']
    %19 = vsyncpa [#allocation3], 0
    %20 = vsyncpa [#allocation6], 0
    %21 = vsyncpa [#allocation4], 0
    %s22 = scalar_lea.sflag [#allocation4], 1
    %23 = vsyncpa %s22, 0
    loop: start=0, step=1, limit=4
    $region2: #{tpu_custom_call.1} parent=1 // loop_pre_header
      _
    $region3: #{tpu_custom_call.1} parent=1 // loop_header
      %s25 = sphi 0, %s29
      %p26 = scmp.ge.s32.totalorder %s25, 4
      %s35 = sphi 0, %s37
      %s38 = sphi 0, %s35
      %s39 = sphi 0, %s38
      %s55 = sphi 0, %s39
      %s61 = sphi 0, %s63
      %s64 = sphi 0, %s61
      %s65 = sphi 0, %s64
      %s81 = sphi 0, %s65
      %s85 = sphi 0, %s85
      %s87 = sphi 0, %s85
      %s88 = sphi 0, %s87
      %s102 = sphi 0, %s88
      %s106 = sphi 0, %s106
      %s108 = sphi 0, %s106
      %s109 = sphi 0, %s108
      %s123 = sphi 0, %s109
      %s127 = sphi 0, %s127
      %s129 = sphi 0, %s127
      %s130 = sphi 0, %s129
      %s144 = sphi 0, %s130
      %s148 = sphi 0, %s148
      %s150 = sphi 0, %s148
      %s151 = sphi 0, %s150
      %s165 = sphi 0, %s151
      %s169 = sphi 0, %s169
      %s171 = sphi 0, %s169
      %s172 = sphi 0, %s171
      %s186 = sphi 0, %s172
      %s190 = sphi 0, %s190
      %s192 = sphi 0, %s190
      %s193 = sphi 0, %s192
      %s207 = sphi 0, %s193
      %s211 = sphi 0, %s211
      %s213 = sphi 0, %s211
      %s214 = sphi 0, %s213
      %s228 = sphi 0, %s214
      %s232 = sphi 0, %s232
      %s234 = sphi 0, %s232
      %s235 = sphi 0, %s234
      %s249 = sphi 0, %s235
      %s253 = sphi 0, %s253
      %s255 = sphi 0, %s253
      %s256 = sphi 0, %s255
      %s270 = sphi 0, %s256
      %s274 = sphi 0, %s274
      %s276 = sphi 0, %s274
      %s277 = sphi 0, %s276
      %s291 = sphi 0, %s277
      %s295 = sphi 0, %s295
      %s297 = sphi 0, %s295
      %s298 = sphi 0, %s297
      %s312 = sphi 0, %s298
      %s316 = sphi 0, %s316
      %s318 = sphi 0, %s316
      %s319 = sphi 0, %s318
      %s333 = sphi 0, %s319
      %s339 = sphi 0, %s341
      %s342 = sphi 0, %s339
      %s343 = sphi 0, %s342
      %s359 = sphi 0, %s343
    $region4: #{tpu_custom_call.1} parent=1 // loop_header_branch
      %28 = sbr.rel (%p26) target = $region8
    $region5: #{tpu_custom_call.1} parent=1 // loop_body
      %s30 = ssub.s32 %s25, 1
      %s31 = ssub.s32 %s25, 2
      %s32 = sadd.s32 %s25, 1
      %s33 = ssub.s32 %s25, %s32
      %p34 = scmp.eq.s32.totalorder %s33, 0
      %s36 = sadd.s32 %s35, 1
      %s37 = scalar_select %p34, %s35, %s36
      %p40 = pneg %p34
      %p41 = scmp.eq.s32.totalorder %s25, 1
      %p42 = por %p40, %p41
      %p43 = scmp.ne.s32.totalorder %s35, %s38
      %p44 = scmp.eq.s32.totalorder %s25, 0
      %p45 = por %p43, %p44
      %p46 = scmp.ne.s32.totalorder %s35, %s38
      %p47 = scmp.eq.s32.totalorder %s30, 1
      %p48 = por %p46, %p47
      %p49 = scmp.ne.s32.totalorder %s38, %s39
      %p50 = scmp.eq.s32.totalorder %s30, 0
      %p51 = por %p49, %p50
      %p52 = scmp.ne.s32.totalorder %s38, %s39
      %p53 = scmp.eq.s32.totalorder %s31, 1
      %p54 = por %p52, %p53
      %p56 = scmp.ne.s32.totalorder %s39, %s55
      %p57 = scmp.eq.s32.totalorder %s31, 0
      %p58 = por %p56, %p57
      %s59 = ssub.s32 %s25, %s32
      %p60 = scmp.eq.s32.totalorder %s59, 0
      %s62 = sadd.s32 %s61, 1
      %s63 = scalar_select %p60, %s61, %s62
      %p66 = pneg %p60
      %p67 = scmp.eq.s32.totalorder %s25, 1
      %p68 = por %p66, %p67
      %p69 = scmp.ne.s32.totalorder %s61, %s64
      %p70 = scmp.eq.s32.totalorder %s25, 0
      %p71 = por %p69, %p70
      %p72 = scmp.ne.s32.totalorder %s61, %s64
      %p73 = scmp.eq.s32.totalorder %s30, 1
      %p74 = por %p72, %p73
      %p75 = scmp.ne.s32.totalorder %s64, %s65
      %p76 = scmp.eq.s32.totalorder %s30, 0
      %p77 = por %p75, %p76
      %p78 = scmp.ne.s32.totalorder %s64, %s65
      %p79 = scmp.eq.s32.totalorder %s31, 1
      %p80 = por %p78, %p79
      %p82 = scmp.ne.s32.totalorder %s65, %s81
      %p83 = scmp.eq.s32.totalorder %s31, 0
      %p84 = por %p82, %p83
      %s86 = sadd.s32 %s85, 1
      %p89 = scmp.eq.s32.totalorder %s25, 1
      %p90 = scmp.ne.s32.totalorder %s85, %s87
      %p91 = scmp.eq.s32.totalorder %s25, 0
      %p92 = por %p90, %p91
      %p93 = scmp.ne.s32.totalorder %s85, %s87
      %p94 = scmp.eq.s32.totalorder %s30, 1
      %p95 = por %p93, %p94
      %p96 = scmp.ne.s32.totalorder %s87, %s88
      %p97 = scmp.eq.s32.totalorder %s30, 0
      %p98 = por %p96, %p97
      %p99 = scmp.ne.s32.totalorder %s87, %s88
      %p100 = scmp.eq.s32.totalorder %s31, 1
      %p101 = por %p99, %p100
      %p103 = scmp.ne.s32.totalorder %s88, %s102
      %p104 = scmp.eq.s32.totalorder %s31, 0
      %p105 = por %p103, %p104
      %s107 = sadd.s32 %s106, 1
      %p110 = scmp.eq.s32.totalorder %s25, 1
      %p111 = scmp.ne.s32.totalorder %s106, %s108
      %p112 = scmp.eq.s32.totalorder %s25, 0
      %p113 = por %p111, %p112
      %p114 = scmp.ne.s32.totalorder %s106, %s108
      %p115 = scmp.eq.s32.totalorder %s30, 1
      %p116 = por %p114, %p115
      %p117 = scmp.ne.s32.totalorder %s108, %s109
      %p118 = scmp.eq.s32.totalorder %s30, 0
      %p119 = por %p117, %p118
      %p120 = scmp.ne.s32.totalorder %s108, %s109
      %p121 = scmp.eq.s32.totalorder %s31, 1
      %p122 = por %p120, %p121
      %p124 = scmp.ne.s32.totalorder %s109, %s123
      %p125 = scmp.eq.s32.totalorder %s31, 0
      %p126 = por %p124, %p125
      %s128 = sadd.s32 %s127, 1
      %p131 = scmp.eq.s32.totalorder %s25, 1
      %p132 = scmp.ne.s32.totalorder %s127, %s129
      %p133 = scmp.eq.s32.totalorder %s25, 0
      %p134 = por %p132, %p133
      %p135 = scmp.ne.s32.totalorder %s127, %s129
      %p136 = scmp.eq.s32.totalorder %s30, 1
      %p137 = por %p135, %p136
      %p138 = scmp.ne.s32.totalorder %s129, %s130
      %p139 = scmp.eq.s32.totalorder %s30, 0
      %p140 = por %p138, %p139
      %p141 = scmp.ne.s32.totalorder %s129, %s130
      %p142 = scmp.eq.s32.totalorder %s31, 1
      %p143 = por %p141, %p142
      %p145 = scmp.ne.s32.totalorder %s130, %s144
      %p146 = scmp.eq.s32.totalorder %s31, 0
      %p147 = por %p145, %p146
      %s149 = sadd.s32 %s148, 1
      %p152 = scmp.eq.s32.totalorder %s25, 1
      %p153 = scmp.ne.s32.totalorder %s148, %s150
      %p154 = scmp.eq.s32.totalorder %s25, 0
      %p155 = por %p153, %p154
      %p156 = scmp.ne.s32.totalorder %s148, %s150
      %p157 = scmp.eq.s32.totalorder %s30, 1
      %p158 = por %p156, %p157
      %p159 = scmp.ne.s32.totalorder %s150, %s151
      %p160 = scmp.eq.s32.totalorder %s30, 0
      %p161 = por %p159, %p160
      %p162 = scmp.ne.s32.totalorder %s150, %s151
      %p163 = scmp.eq.s32.totalorder %s31, 1
      %p164 = por %p162, %p163
      %p166 = scmp.ne.s32.totalorder %s151, %s165
      %p167 = scmp.eq.s32.totalorder %s31, 0
      %p168 = por %p166, %p167
      %s170 = sadd.s32 %s169, 1
      %p173 = scmp.eq.s32.totalorder %s25, 1
      %p174 = scmp.ne.s32.totalorder %s169, %s171
      %p175 = scmp.eq.s32.totalorder %s25, 0
      %p176 = por %p174, %p175
      %p177 = scmp.ne.s32.totalorder %s169, %s171
      %p178 = scmp.eq.s32.totalorder %s30, 1
      %p179 = por %p177, %p178
      %p180 = scmp.ne.s32.totalorder %s171, %s172
      %p181 = scmp.eq.s32.totalorder %s30, 0
      %p182 = por %p180, %p181
      %p183 = scmp.ne.s32.totalorder %s171, %s172
      %p184 = scmp.eq.s32.totalorder %s31, 1
      %p185 = por %p183, %p184
      %p187 = scmp.ne.s32.totalorder %s172, %s186
      %p188 = scmp.eq.s32.totalorder %s31, 0
      %p189 = por %p187, %p188
      %s191 = sadd.s32 %s190, 1
      %p194 = scmp.eq.s32.totalorder %s25, 1
      %p195 = scmp.ne.s32.totalorder %s190, %s192
      %p196 = scmp.eq.s32.totalorder %s25, 0
      %p197 = por %p195, %p196
      %p198 = scmp.ne.s32.totalorder %s190, %s192
      %p199 = scmp.eq.s32.totalorder %s30, 1
      %p200 = por %p198, %p199
      %p201 = scmp.ne.s32.totalorder %s192, %s193
      %p202 = scmp.eq.s32.totalorder %s30, 0
      %p203 = por %p201, %p202
      %p204 = scmp.ne.s32.totalorder %s192, %s193
      %p205 = scmp.eq.s32.totalorder %s31, 1
      %p206 = por %p204, %p205
      %p208 = scmp.ne.s32.totalorder %s193, %s207
      %p209 = scmp.eq.s32.totalorder %s31, 0
      %p210 = por %p208, %p209
      %s212 = sadd.s32 %s211, 1
      %p215 = scmp.eq.s32.totalorder %s25, 1
      %p216 = scmp.ne.s32.totalorder %s211, %s213
      %p217 = scmp.eq.s32.totalorder %s25, 0
      %p218 = por %p216, %p217
      %p219 = scmp.ne.s32.totalorder %s211, %s213
      %p220 = scmp.eq.s32.totalorder %s30, 1
      %p221 = por %p219, %p220
      %p222 = scmp.ne.s32.totalorder %s213, %s214
      %p223 = scmp.eq.s32.totalorder %s30, 0
      %p224 = por %p222, %p223
      %p225 = scmp.ne.s32.totalorder %s213, %s214
      %p226 = scmp.eq.s32.totalorder %s31, 1
      %p227 = por %p225, %p226
      %p229 = scmp.ne.s32.totalorder %s214, %s228
      %p230 = scmp.eq.s32.totalorder %s31, 0
      %p231 = por %p229, %p230
      %s233 = sadd.s32 %s232, 1
      %p236 = scmp.eq.s32.totalorder %s25, 1
      %p237 = scmp.ne.s32.totalorder %s232, %s234
      %p238 = scmp.eq.s32.totalorder %s25, 0
      %p239 = por %p237, %p238
      %p240 = scmp.ne.s32.totalorder %s232, %s234
      %p241 = scmp.eq.s32.totalorder %s30, 1
      %p242 = por %p240, %p241
      %p243 = scmp.ne.s32.totalorder %s234, %s235
      %p244 = scmp.eq.s32.totalorder %s30, 0
      %p245 = por %p243, %p244
      %p246 = scmp.ne.s32.totalorder %s234, %s235
      %p247 = scmp.eq.s32.totalorder %s31, 1
      %p248 = por %p246, %p247
      %p250 = scmp.ne.s32.totalorder %s235, %s249
      %p251 = scmp.eq.s32.totalorder %s31, 0
      %p252 = por %p250, %p251
      %s254 = sadd.s32 %s253, 1
      %p257 = scmp.eq.s32.totalorder %s25, 1
      %p258 = scmp.ne.s32.totalorder %s253, %s255
      %p259 = scmp.eq.s32.totalorder %s25, 0
      %p260 = por %p258, %p259
      %p261 = scmp.ne.s32.totalorder %s253, %s255
      %p262 = scmp.eq.s32.totalorder %s30, 1
      %p263 = por %p261, %p262
      %p264 = scmp.ne.s32.totalorder %s255, %s256
      %p265 = scmp.eq.s32.totalorder %s30, 0
      %p266 = por %p264, %p265
      %p267 = scmp.ne.s32.totalorder %s255, %s256
      %p268 = scmp.eq.s32.totalorder %s31, 1
      %p269 = por %p267, %p268
      %p271 = scmp.ne.s32.totalorder %s256, %s270
      %p272 = scmp.eq.s32.totalorder %s31, 0
      %p273 = por %p271, %p272
      %s275 = sadd.s32 %s274, 1
      %p278 = scmp.eq.s32.totalorder %s25, 1
      %p279 = scmp.ne.s32.totalorder %s274, %s276
      %p280 = scmp.eq.s32.totalorder %s25, 0
      %p281 = por %p279, %p280
      %p282 = scmp.ne.s32.totalorder %s274, %s276
      %p283 = scmp.eq.s32.totalorder %s30, 1
      %p284 = por %p282, %p283
      %p285 = scmp.ne.s32.totalorder %s276, %s277
      %p286 = scmp.eq.s32.totalorder %s30, 0
      %p287 = por %p285, %p286
      %p288 = scmp.ne.s32.totalorder %s276, %s277
      %p289 = scmp.eq.s32.totalorder %s31, 1
      %p290 = por %p288, %p289
      %p292 = scmp.ne.s32.totalorder %s277, %s291
      %p293 = scmp.eq.s32.totalorder %s31, 0
      %p294 = por %p292, %p293
      %s296 = sadd.s32 %s295, 1
      %p299 = scmp.eq.s32.totalorder %s25, 1
      %p300 = scmp.ne.s32.totalorder %s295, %s297
      %p301 = scmp.eq.s32.totalorder %s25, 0
      %p302 = por %p300, %p301
      %p303 = scmp.ne.s32.totalorder %s295, %s297
      %p304 = scmp.eq.s32.totalorder %s30, 1
      %p305 = por %p303, %p304
      %p306 = scmp.ne.s32.totalorder %s297, %s298
      %p307 = scmp.eq.s32.totalorder %s30, 0
      %p308 = por %p306, %p307
      %p309 = scmp.ne.s32.totalorder %s297, %s298
      %p310 = scmp.eq.s32.totalorder %s31, 1
      %p311 = por %p309, %p310
      %p313 = scmp.ne.s32.totalorder %s298, %s312
      %p314 = scmp.eq.s32.totalorder %s31, 0
      %p315 = por %p313, %p314
      %s317 = sadd.s32 %s316, 1
      %p320 = scmp.eq.s32.totalorder %s25, 1
      %p321 = scmp.ne.s32.totalorder %s316, %s318
      %p322 = scmp.eq.s32.totalorder %s25, 0
      %p323 = por %p321, %p322
      %p324 = scmp.ne.s32.totalorder %s316, %s318
      %p325 = scmp.eq.s32.totalorder %s30, 1
      %p326 = por %p324, %p325
      %p327 = scmp.ne.s32.totalorder %s318, %s319
      %p328 = scmp.eq.s32.totalorder %s30, 0
      %p329 = por %p327, %p328
      %p330 = scmp.ne.s32.totalorder %s318, %s319
      %p331 = scmp.eq.s32.totalorder %s31, 1
      %p332 = por %p330, %p331
      %p334 = scmp.ne.s32.totalorder %s319, %s333
      %p335 = scmp.eq.s32.totalorder %s31, 0
      %p336 = por %p334, %p335
      %s337 = ssub.s32 %s25, %s32
      %p338 = scmp.eq.s32.totalorder %s337, 0
      %s340 = sadd.s32 %s339, 1
      %s341 = scalar_select %p338, %s339, %s340
      %p344 = pneg %p338
      %p345 = scmp.eq.s32.totalorder %s25, 1
      %p346 = por %p344, %p345
      %p347 = scmp.ne.s32.totalorder %s339, %s342
      %p348 = scmp.eq.s32.totalorder %s25, 0
      %p349 = por %p347, %p348
      %p350 = scmp.ne.s32.totalorder %s339, %s342
      %p351 = scmp.eq.s32.totalorder %s30, 1
      %p352 = por %p350, %p351
      %p353 = scmp.ne.s32.totalorder %s342, %s343
      %p354 = scmp.eq.s32.totalorder %s30, 0
      %p355 = por %p353, %p354
      %p356 = scmp.ne.s32.totalorder %s342, %s343
      %p357 = scmp.eq.s32.totalorder %s31, 1
      %p358 = por %p356, %p357
      %p360 = scmp.ne.s32.totalorder %s343, %s359
      %p361 = scmp.eq.s32.totalorder %s31, 0
      %p362 = por %p360, %p361
      %p363 = scmp.le.s32.totalorder 1, %s25
      %p364 = scmp.lt.s32.totalorder %s25, 3
      %p365 = pnand %p363, %p364
      %p366 = pneg %p365
      // Predicated region
      $region9: #{tpu_custom_call.1} parent=5 // pred_check
        _
      $region10: #{tpu_custom_call.1} parent=5 // pred_check_branch
        %368 = sbr.rel (%p365) target = $region12
      $region11: #{tpu_custom_call.1} parent=5 // pred_region
        %s369 = ssub.s32 %s25, 1
        // Predicated region
        $region13: #{tpu_custom_call.1} parent=11 // pred_check
          %p370 = pneg %p98
        $region14: #{tpu_custom_call.1} parent=11 // pred_check_branch
          %372 = sbr.rel (%p370) target = $region16
        $region15: #{tpu_custom_call.1} parent=11 // pred_region
          _
        $region16: #{tpu_custom_call.1} parent=11 // pred_fallthru
          _
        // Predicated region
        $region17: #{tpu_custom_call.1} parent=11 // pred_check
          %p373 = pneg %p119
        $region18: #{tpu_custom_call.1} parent=11 // pred_check_branch
          %375 = sbr.rel (%p373) target = $region20
        $region19: #{tpu_custom_call.1} parent=11 // pred_region
          _
        $region20: #{tpu_custom_call.1} parent=11 // pred_fallthru
          _
        // Predicated region
        $region21: #{tpu_custom_call.1} parent=11 // pred_check
          %p376 = pneg %p140
        $region22: #{tpu_custom_call.1} parent=11 // pred_check_branch
          %378 = sbr.rel (%p376) target = $region24
        $region23: #{tpu_custom_call.1} parent=11 // pred_region
          _
        $region24: #{tpu_custom_call.1} parent=11 // pred_fallthru
          _
        // Predicated region
        $region25: #{tpu_custom_call.1} parent=11 // pred_check
          %p379 = pneg %p161
        $region26: #{tpu_custom_call.1} parent=11 // pred_check_branch
          %381 = sbr.rel (%p379) target = $region28
        $region27: #{tpu_custom_call.1} parent=11 // pred_region
          _
        $region28: #{tpu_custom_call.1} parent=11 // pred_fallthru
          _
        // Predicated region
        $region29: #{tpu_custom_call.1} parent=11 // pred_check
          %p382 = pneg %p182
        $region30: #{tpu_custom_call.1} parent=11 // pred_check_branch
          %384 = sbr.rel (%p382) target = $region32
        $region31: #{tpu_custom_call.1} parent=11 // pred_region
          _
        $region32: #{tpu_custom_call.1} parent=11 // pred_fallthru
          _
        // Predicated region
        $region33: #{tpu_custom_call.1} parent=11 // pred_check
          %p385 = pneg %p203
        $region34: #{tpu_custom_call.1} parent=11 // pred_check_branch
          %387 = sbr.rel (%p385) target = $region36
        $region35: #{tpu_custom_call.1} parent=11 // pred_region
          _
        $region36: #{tpu_custom_call.1} parent=11 // pred_fallthru
          _
        // Predicated region
        $region37: #{tpu_custom_call.1} parent=11 // pred_check
          %p388 = pneg %p224
        $region38: #{tpu_custom_call.1} parent=11 // pred_check_branch
          %390 = sbr.rel (%p388) target = $region40
        $region39: #{tpu_custom_call.1} parent=11 // pred_region
          _
        $region40: #{tpu_custom_call.1} parent=11 // pred_fallthru
          _
        // Predicated region
        $region41: #{tpu_custom_call.1} parent=11 // pred_check
          %p391 = pneg %p245
        $region42: #{tpu_custom_call.1} parent=11 // pred_check_branch
          %393 = sbr.rel (%p391) target = $region44
        $region43: #{tpu_custom_call.1} parent=11 // pred_region
          %s395 = ssub.s32 16, 16
          %396 = vsyncadd [#allocation3], %s395
          %s398 = sshll.u32 [#allocation2], 4
          %s399 = int_to_ptr.vmem [resolvable:$true] %s398
          %401 = dma.hbm_to_vmem [thread:$0]  %s9, 16, %s399, [#allocation3]
        $region44: #{tpu_custom_call.1} parent=11 // pred_fallthru
          _
        // Predicated region
        $region45: #{tpu_custom_call.1} parent=11 // pred_check
          %p402 = pneg %p266
        $region46: #{tpu_custom_call.1} parent=11 // pred_check_branch
          %404 = sbr.rel (%p402) target = $region48
        $region47: #{tpu_custom_call.1} parent=11 // pred_region
          _
        $region48: #{tpu_custom_call.1} parent=11 // pred_fallthru
          _
        // Predicated region
        $region49: #{tpu_custom_call.1} parent=11 // pred_check
          %p405 = pneg %p287
        $region50: #{tpu_custom_call.1} parent=11 // pred_check_branch
          %407 = sbr.rel (%p405) target = $region52
        $region51: #{tpu_custom_call.1} parent=11 // pred_region
          %s409 = ssub.s32 16, 16
          %410 = vsyncadd [#allocation6], %s409
          %s412 = sshll.u32 [#allocation5], 4
          %s413 = int_to_ptr.vmem [resolvable:$true] %s412
          %415 = dma.hbm_to_vmem [thread:$0]  %s11, 16, %s413, [#allocation6]
        $region52: #{tpu_custom_call.1} parent=11 // pred_fallthru
          _
        // Predicated region
        $region53: #{tpu_custom_call.1} parent=11 // pred_check
          %p416 = pneg %p308
        $region54: #{tpu_custom_call.1} parent=11 // pred_check_branch
          %418 = sbr.rel (%p416) target = $region56
        $region55: #{tpu_custom_call.1} parent=11 // pred_region
          _
        $region56: #{tpu_custom_call.1} parent=11 // pred_fallthru
          _
        // Predicated region
        $region57: #{tpu_custom_call.1} parent=11 // pred_check
          %p419 = pneg %p329
        $region58: #{tpu_custom_call.1} parent=11 // pred_check_branch
          %421 = sbr.rel (%p419) target = $region60
        $region59: #{tpu_custom_call.1} parent=11 // pred_region
          _
        $region60: #{tpu_custom_call.1} parent=11 // pred_fallthru
          _
      $region12: #{tpu_custom_call.1} parent=5 // pred_fallthru
        _
      %p422 = scmp.lt.s32.totalorder %s25, 2
      // Predicated region
      $region61: #{tpu_custom_call.1} parent=5 // pred_check
        %p423 = pneg %p422
      $region62: #{tpu_custom_call.1} parent=5 // pred_check_branch
        %425 = sbr.rel (%p423) target = $region64
      $region63: #{tpu_custom_call.1} parent=5 // pred_region
        // Predicated region
        $region65: #{tpu_custom_call.1} parent=63 // pred_check
          %p426 = pneg %p45
        $region66: #{tpu_custom_call.1} parent=63 // pred_check_branch
          %428 = sbr.rel (%p426) target = $region68
        $region67: #{tpu_custom_call.1} parent=63 // pred_region
          %p429 = scmp.lt.s32.totalorder %s25, 1
          %s430 = scalar_select %p429, %s25, 1
          %s431 = smul.addr %s430, 8
          %s432 = scalar_lea.vmem %s0, %s431
        $region68: #{tpu_custom_call.1} parent=63 // pred_fallthru
          _
        // Predicated region
        $region69: #{tpu_custom_call.1} parent=63 // pred_check
          %p433 = pneg %p71
        $region70: #{tpu_custom_call.1} parent=63 // pred_check_branch
          %435 = sbr.rel (%p433) target = $region72
        $region71: #{tpu_custom_call.1} parent=63 // pred_region
          %p436 = scmp.lt.s32.totalorder %s25, 1
          %s437 = scalar_select %p436, %s25, 1
          %s438 = smul.addr %s437, 8
          %s439 = scalar_lea.vmem %s1, %s438
        $region72: #{tpu_custom_call.1} parent=63 // pred_fallthru
          _
      $region64: #{tpu_custom_call.1} parent=5 // pred_fallthru
        _
      %p440 = scmp.le.s32.totalorder 1, %s25
      %p441 = scmp.lt.s32.totalorder %s25, 3
      %p442 = pnand %p440, %p441
      %p443 = pneg %p442
      // Predicated region
      $region73: #{tpu_custom_call.1} parent=5 // pred_check
        _
      $region74: #{tpu_custom_call.1} parent=5 // pred_check_branch
        %445 = sbr.rel (%p442) target = $region76
      $region75: #{tpu_custom_call.1} parent=5 // pred_region
        %s446 = ssub.s32 %s25, 1
        // Predicated region
        $region77: #{tpu_custom_call.1} parent=75 // pred_check
          %p447 = pneg %p245
        $region78: #{tpu_custom_call.1} parent=75 // pred_check_branch
          %449 = sbr.rel (%p447) target = $region80
        $region79: #{tpu_custom_call.1} parent=75 // pred_region
          %450 = dma.done [#allocation3], 16
        $region80: #{tpu_custom_call.1} parent=75 // pred_fallthru
          _
        // Predicated region
        $region81: #{tpu_custom_call.1} parent=75 // pred_check
          %p451 = pneg %p287
        $region82: #{tpu_custom_call.1} parent=75 // pred_check_branch
          %453 = sbr.rel (%p451) target = $region84
        $region83: #{tpu_custom_call.1} parent=75 // pred_region
          %454 = dma.done [#allocation6], 16
        $region84: #{tpu_custom_call.1} parent=75 // pred_fallthru
          _
        %p455 = scmp.lt.s32.totalorder %s30, 1
        %s456 = scalar_select %p455, %s30, 1
        %s457 = smul.addr %s456, 8
        %s458 = scalar_lea.vmem %s0, %s457
        %p459 = pneg %p51
        %p460 = pneg %p48
        %p461 = scmp.lt.s32.totalorder %s30, 1
        %s462 = scalar_select %p461, %s30, 1
        %s463 = smul.addr %s462, 8
        %s464 = scalar_lea.vmem %s1, %s463
        %p465 = pneg %p77
        %p466 = pneg %p74
        %p467 = pneg %p98
        %p468 = pneg %p95
        %p469 = pneg %p119
        %p470 = pneg %p116
        %p471 = pneg %p140
        %p472 = pneg %p137
        %p473 = pneg %p161
        %p474 = pneg %p158
        %p475 = pneg %p182
        %p476 = pneg %p179
        %p477 = pneg %p203
        %p478 = pneg %p200
        %p479 = pneg %p224
        %p480 = pneg %p221
        %p481 = pneg %p245
        %p482 = pneg %p242
        %p483 = pneg %p266
        %p484 = pneg %p263
        %p485 = pneg %p287
        %p486 = pneg %p284
        %p487 = pneg %p308
        %p488 = pneg %p305
        %p489 = pneg %p329
        %p490 = pneg %p326
        %p491 = pneg %p355
        %p492 = pneg %p352
        %s493 = sand.u32 %s342, 1
        %s494 = scalar_lea.sflag [#allocation4], %s493
        %s495 = sand.u32 %s342, 1
        %s496 = smul.addr %s495, 8
        %s497 = scalar_lea.vmem [#allocation7], %s496
        %p498 = scmp.lt.s32.totalorder %s30, 1
        %s499 = scalar_select %p498, %s30, 1
        %s500 = smul.addr %s499, 8
        %s501 = scalar_lea.vmem %s0, %s500
        %p502 = scmp.lt.s32.totalorder %s30, 1
        %s503 = scalar_select %p502, %s30, 1
        %s504 = smul.addr %s503, 8
        %s505 = scalar_lea.vmem %s1, %s504
        %v507 = vld [vmem:[%s501] sm:$0xff]
        %v508 = vld [vmem:[%s505] sm:$0xff]
        %v509 = vld [vmem:[%s2] sm:$0x1]
        %v510 = vld [vmem:[%s3] sm:$0x1]
        %vm511 = vcmask 261120
        %v512 = vsel %vm511, %v507, 0.0
        %513 = vadd.xlane.f32.xlu0 %v512
        %v514 = vpop.xlane.xlu0 %513
        %v515 = vrcp.pop 32.0
        %v516 = vmul.f32 %v514, %v515
        %v517 = vsub.f32 %v507, %v516
        %v518 = vmul.f32 %v517, %v517
        %v519 = vsel %vm511, %v518, 0.0
        %520 = vadd.xlane.f32.xlu0 %v519
        %v521 = vpop.xlane.xlu0 %520
        %v522 = vmul.f32 %v521, %v515
        %v523 = vadd.f32 %v522, 1e-05
        %v524 = vrsqrt.pop %v523
        %v525 = vmul.f32 %v517, %v524
        %v527 = vlaneseq
        %v528 = vshrl.u32 %v527, 7
        %v529 = vsub.s32 0, %v528
        %v530 = vrot.slane %v509, %v529
        %v532 = vmul.f32 %v525, %v530
        %v534 = vlaneseq
        %v535 = vshrl.u32 %v534, 7
        %v536 = vsub.s32 0, %v535
        %v537 = vrot.slane %v510, %v536
        %v539 = vadd.f32 %v532, %v537
        %v540 = vpack.c.bf16 %v539, %v539
        %v541 = vld [vmem:[%s4] sm:$0xf]
        %v542 = vld [vmem:[%s4 + $0x4] sm:$0xf]
        %v543 = vld [vmem:[%s4 + $0x8] sm:$0xf]
        %v544 = vld [vmem:[%s4 + $0xc] sm:$0xf]
        %v545 = vld [vmem:[%s5] sm:$0x1]
        %v547 = vlaneseq
        %v548 = vshrl.u32 %v547, 7
        %v549 = vsub.s32 0, %v548
        %v550 = vrot.slane %v545, %v549
        %v556 = vunpack.c.l.b16 %v541
        %v557 = vunpack.c.l.b16 %v542
        %v558 = vunpack.c.l.b16 %v543
        %v559 = vunpack.c.l.b16 %v544
        %v560 = vpack.c.b16 %v557, %v556
        %v561 = vpack.c.b16 %v559, %v558
        %v565 = vsel %vm511, %v540, 0
        %567 = vmatprep.subr.bf16.mxu0 0
        %568 = vmatpush1.bf16.msra.mxu0 0
        %569 = vmatprep.subr.bf16.mxu0 0
        %570 = vmatpush1.bf16.msra.mxu0 0
        %571 = vmatprep.subr.bf16.mxu0 0
        %572 = vmatpush1.bf16.msra.mxu0 0
        %573 = vmatprep.subr.bf16.mxu0 0
        %574 = vmatpush1.bf16.msra.mxu0 0
        %575 = vmatprep.subr.bf16.mxu0 0
        %576 = vmatpush1.bf16.msra.mxu0 0
        %577 = vmatprep.subr.bf16.mxu0 0
        %578 = vmatpush1.bf16.msra.mxu0 0
        %579 = vmatprep.subr.bf16.mxu0 0
        %580 = vmatpush1.bf16.msra.mxu0 %v561
        %581 = vmatprep.subr.bf16.mxu0 0
        %582 = vmatpush1.bf16.msra.mxu0 %v560
        %583 = vmatprep.subr.bf16.mxu0 0
        %584 = vmatpush2.bf16.msra.mxu0 0
        %585 = vmatprep.subr.bf16.mxu0 0
        %586 = vmatpush2.bf16.msra.mxu0 0
        %587 = vmatprep.subr.bf16.mxu0 0
        %588 = vmatpush2.bf16.msra.mxu0 0
        %589 = vmatprep.subr.bf16.mxu0 0
        %590 = vmatpush2.bf16.msra.mxu0 0
        %591 = vmatprep.subr.bf16.mxu0 0
        %592 = vmatpush2.bf16.msra.mxu0 0
        %593 = vmatprep.subr.bf16.mxu0 0
        %594 = vmatpush2.bf16.msra.mxu0 0
        %595 = vmatprep.subr.bf16.mxu0 0
        %596 = vmatpush2.bf16.msra.mxu0 0
        %597 = vmatprep.subr.bf16.mxu0 0
        %598 = vmatpush2.bf16.msra.mxu0 0
        %599 = vmatprep.mubr.bf16.mxu0 0
        %600 = vmatmul.mubr.bf16.gmra.mxu0 %v565
        %v601 = vpop.f32.mrf.mxu0
        %v602 = vadd.f32 %v550, %v601
        %v603 = vpop.f32.mrf.mxu0
        %v604 = vpop.f32.mrf.mxu0
        %v605 = vpop.f32.mrf.mxu0
        %606 = vdwg.mxu0
        %608 = vrot.lane.b32.xlu0 %v602, 120
        %v609 = vpop.permute.xlu0 %608
        %611 = vrot.lane.b32.xlu0 %v602, 112
        %v612 = vpop.permute.xlu0 %611
        %614 = vrot.lane.b32.xlu0 %v602, 104
        %v615 = vpop.permute.xlu0 %614
        %v617 = vcombine.low %v602, %v612
        %v618 = vcombine.high %v602, %v612
        %v620 = vunpack.c.l.s4 1983009808
        %v621 = vunpack.c.0.s8 %v620
        %v622 = vlaneseq
        %v623 = vshrl.u32 %v622, 7
        %v624 = vsub.s32 %v621, %v623
        %v625 = vrot.slane %v617, %v624
        %v627 = vunpack.c.l.s4 1983009808
        %v628 = vunpack.c.0.s8 %v627
        %v629 = vlaneseq
        %v630 = vshrl.u32 %v629, 7
        %v631 = vsub.s32 %v628, %v630
        %v632 = vrot.slane %v618, %v631
        %v633 = vcombine.low %v609, %v615
        %v634 = vcombine.high %v609, %v615
        %v636 = vunpack.c.l.s4 1983009808
        %v637 = vunpack.c.0.s8 %v636
        %v638 = vlaneseq
        %v639 = vshrl.u32 %v638, 7
        %v640 = vsub.s32 %v637, %v639
        %v641 = vrot.slane %v633, %v640
        %v643 = vunpack.c.l.s4 1983009808
        %v644 = vunpack.c.0.s8 %v643
        %v645 = vlaneseq
        %v646 = vshrl.u32 %v645, 7
        %v647 = vsub.s32 %v644, %v646
        %v648 = vrot.slane %v634, %v647
        %v649 = vcombine.low %v625, %v641
        %v650 = vcombine.high %v625, %v641
        %v652 = vunpack.c.l.s4 1934713408
        %v653 = vunpack.c.0.s8 %v652
        %v654 = vlaneseq
        %v655 = vshrl.u32 %v654, 7
        %v656 = vsub.s32 %v653, %v655
        %v657 = vrot.slane %v649, %v656
        %v659 = vunpack.c.l.s4 1934713408
        %v660 = vunpack.c.0.s8 %v659
        %v661 = vlaneseq
        %v662 = vshrl.u32 %v661, 7
        %v663 = vsub.s32 %v660, %v662
        %v664 = vrot.slane %v650, %v663
        %v665 = vcombine.low %v632, %v648
        %v666 = vcombine.high %v632, %v648
        %v668 = vunpack.c.l.s4 1934713408
        %v669 = vunpack.c.0.s8 %v668
        %v670 = vlaneseq
        %v671 = vshrl.u32 %v670, 7
        %v672 = vsub.s32 %v669, %v671
        %v673 = vrot.slane %v665, %v672
        %v675 = vunpack.c.l.s4 1934713408
        %v676 = vunpack.c.0.s8 %v675
        %v677 = vlaneseq
        %v678 = vshrl.u32 %v677, 7
        %v679 = vsub.s32 %v676, %v678
        %v680 = vrot.slane %v666, %v679
        %v681 = vcombine.high %v657, 0.0
        %v682 = vcombine.high %v664, 0.0
        %v683 = vcombine.high %v673, 0.0
        %v684 = vcombine.high %v680, 0.0
        %v685 = vcombine.low %v657, %v664
        %v687 = vunpack.c.l.s4 1983009808
        %v688 = vunpack.c.0.s8 %v687
        %v689 = vlaneseq
        %v690 = vshrl.u32 %v689, 7
        %v691 = vsub.s32 %v688, %v690
        %v692 = vrot.slane %v685, %v691
        %v693 = vcombine.low %v681, %v682
        %v695 = vunpack.c.l.s4 1983009808
        %v696 = vunpack.c.0.s8 %v695
        %v697 = vlaneseq
        %v698 = vshrl.u32 %v697, 7
        %v699 = vsub.s32 %v696, %v698
        %v700 = vrot.slane %v693, %v699
        %v701 = vcombine.low %v673, %v680
        %v703 = vunpack.c.l.s4 1983009808
        %v704 = vunpack.c.0.s8 %v703
        %v705 = vlaneseq
        %v706 = vshrl.u32 %v705, 7
        %v707 = vsub.s32 %v704, %v706
        %v708 = vrot.slane %v701, %v707
        %v709 = vcombine.low %v683, %v684
        %v711 = vunpack.c.l.s4 1983009808
        %v712 = vunpack.c.0.s8 %v711
        %v713 = vlaneseq
        %v714 = vshrl.u32 %v713, 7
        %v715 = vsub.s32 %v712, %v714
        %v716 = vrot.slane %v709, %v715
        %v717 = vcombine.low %v692, %v700
        %v718 = vcombine.high %v692, %v700
        %v720 = vunpack.c.l.s4 1934713408
        %v721 = vunpack.c.0.s8 %v720
        %v722 = vlaneseq
        %v723 = vshrl.u32 %v722, 7
        %v724 = vsub.s32 %v721, %v723
        %v725 = vrot.slane %v717, %v724
        %v727 = vunpack.c.l.s4 1934713408
        %v728 = vunpack.c.0.s8 %v727
        %v729 = vlaneseq
        %v730 = vshrl.u32 %v729, 7
        %v731 = vsub.s32 %v728, %v730
        %v732 = vrot.slane %v718, %v731
        %v733 = vcombine.low %v708, %v716
        %v734 = vcombine.high %v708, %v716
        %v736 = vunpack.c.l.s4 1934713408
        %v737 = vunpack.c.0.s8 %v736
        %v738 = vlaneseq
        %v739 = vshrl.u32 %v738, 7
        %v740 = vsub.s32 %v737, %v739
        %v741 = vrot.slane %v733, %v740
        %v743 = vunpack.c.l.s4 1934713408
        %v744 = vunpack.c.0.s8 %v743
        %v745 = vlaneseq
        %v746 = vshrl.u32 %v745, 7
        %v747 = vsub.s32 %v744, %v746
        %v748 = vrot.slane %v734, %v747
        %v749 = vcombine.low %v725, %v741
        %v750 = vcombine.high %v725, %v741
        %v751 = vcombine.low %v732, %v748
        %v752 = vcombine.high %v732, %v748
        %v753 = vpack.c.bf16 %v749, %v749
        %v754 = vpack.c.bf16 %v750, %v750
        %v755 = vpack.c.bf16 %v751, %v751
        %v756 = vpack.c.bf16 %v752, %v752
        %757 = vrot.lane.b32.xlu0 %v602, 96
        %v758 = vpop.permute.xlu0 %757
        %759 = vrot.lane.b32.xlu0 %v609, 96
        %v760 = vpop.permute.xlu0 %759
        %761 = vrot.lane.b32.xlu0 %v612, 96
        %v762 = vpop.permute.xlu0 %761
        %763 = vrot.lane.b32.xlu0 %v615, 96
        %v764 = vpop.permute.xlu0 %763
        %v769 = vcombine.low %v758, %v762
        %v770 = vcombine.high %v758, %v762
        %v772 = vunpack.c.l.s4 1983009808
        %v773 = vunpack.c.0.s8 %v772
        %v774 = vlaneseq
        %v775 = vshrl.u32 %v774, 7
        %v776 = vsub.s32 %v773, %v775
        %v777 = vrot.slane %v769, %v776
        %v779 = vunpack.c.l.s4 1983009808
        %v780 = vunpack.c.0.s8 %v779
        %v781 = vlaneseq
        %v782 = vshrl.u32 %v781, 7
        %v783 = vsub.s32 %v780, %v782
        %v784 = vrot.slane %v770, %v783
        %v785 = vcombine.low %v760, %v764
        %v786 = vcombine.high %v760, %v764
        %v788 = vunpack.c.l.s4 1983009808
        %v789 = vunpack.c.0.s8 %v788
        %v790 = vlaneseq
        %v791 = vshrl.u32 %v790, 7
        %v792 = vsub.s32 %v789, %v791
        %v793 = vrot.slane %v785, %v792
        %v795 = vunpack.c.l.s4 1983009808
        %v796 = vunpack.c.0.s8 %v795
        %v797 = vlaneseq
        %v798 = vshrl.u32 %v797, 7
        %v799 = vsub.s32 %v796, %v798
        %v800 = vrot.slane %v786, %v799
        %v801 = vcombine.low %v777, %v793
        %v802 = vcombine.high %v777, %v793
        %v804 = vunpack.c.l.s4 1934713408
        %v805 = vunpack.c.0.s8 %v804
        %v806 = vlaneseq
        %v807 = vshrl.u32 %v806, 7
        %v808 = vsub.s32 %v805, %v807
        %v809 = vrot.slane %v801, %v808
        %v811 = vunpack.c.l.s4 1934713408
        %v812 = vunpack.c.0.s8 %v811
        %v813 = vlaneseq
        %v814 = vshrl.u32 %v813, 7
        %v815 = vsub.s32 %v812, %v814
        %v816 = vrot.slane %v802, %v815
        %v817 = vcombine.low %v784, %v800
        %v818 = vcombine.high %v784, %v800
        %v820 = vunpack.c.l.s4 1934713408
        %v821 = vunpack.c.0.s8 %v820
        %v822 = vlaneseq
        %v823 = vshrl.u32 %v822, 7
        %v824 = vsub.s32 %v821, %v823
        %v825 = vrot.slane %v817, %v824
        %v827 = vunpack.c.l.s4 1934713408
        %v828 = vunpack.c.0.s8 %v827
        %v829 = vlaneseq
        %v830 = vshrl.u32 %v829, 7
        %v831 = vsub.s32 %v828, %v830
        %v832 = vrot.slane %v818, %v831
        %v833 = vcombine.high %v809, 0.0
        %v834 = vcombine.high %v816, 0.0
        %v835 = vcombine.high %v825, 0.0
        %v836 = vcombine.high %v832, 0.0
        %v837 = vcombine.low %v809, %v816
        %v839 = vunpack.c.l.s4 1983009808
        %v840 = vunpack.c.0.s8 %v839
        %v841 = vlaneseq
        %v842 = vshrl.u32 %v841, 7
        %v843 = vsub.s32 %v840, %v842
        %v844 = vrot.slane %v837, %v843
        %v845 = vcombine.low %v833, %v834
        %v847 = vunpack.c.l.s4 1983009808
        %v848 = vunpack.c.0.s8 %v847
        %v849 = vlaneseq
        %v850 = vshrl.u32 %v849, 7
        %v851 = vsub.s32 %v848, %v850
        %v852 = vrot.slane %v845, %v851
        %v853 = vcombine.low %v825, %v832
        %v855 = vunpack.c.l.s4 1983009808
        %v856 = vunpack.c.0.s8 %v855
        %v857 = vlaneseq
        %v858 = vshrl.u32 %v857, 7
        %v859 = vsub.s32 %v856, %v858
        %v860 = vrot.slane %v853, %v859
        %v861 = vcombine.low %v835, %v836
        %v863 = vunpack.c.l.s4 1983009808
        %v864 = vunpack.c.0.s8 %v863
        %v865 = vlaneseq
        %v866 = vshrl.u32 %v865, 7
        %v867 = vsub.s32 %v864, %v866
        %v868 = vrot.slane %v861, %v867
        %v869 = vcombine.low %v844, %v852
        %v870 = vcombine.high %v844, %v852
        %v872 = vunpack.c.l.s4 1934713408
        %v873 = vunpack.c.0.s8 %v872
        %v874 = vlaneseq
        %v875 = vshrl.u32 %v874, 7
        %v876 = vsub.s32 %v873, %v875
        %v877 = vrot.slane %v869, %v876
        %v879 = vunpack.c.l.s4 1934713408
        %v880 = vunpack.c.0.s8 %v879
        %v881 = vlaneseq
        %v882 = vshrl.u32 %v881, 7
        %v883 = vsub.s32 %v880, %v882
        %v884 = vrot.slane %v870, %v883
        %v885 = vcombine.low %v860, %v868
        %v886 = vcombine.high %v860, %v868
        %v888 = vunpack.c.l.s4 1934713408
        %v889 = vunpack.c.0.s8 %v888
        %v890 = vlaneseq
        %v891 = vshrl.u32 %v890, 7
        %v892 = vsub.s32 %v889, %v891
        %v893 = vrot.slane %v885, %v892
        %v895 = vunpack.c.l.s4 1934713408
        %v896 = vunpack.c.0.s8 %v895
        %v897 = vlaneseq
        %v898 = vshrl.u32 %v897, 7
        %v899 = vsub.s32 %v896, %v898
        %v900 = vrot.slane %v886, %v899
        %v901 = vcombine.low %v877, %v893
        %v902 = vcombine.high %v877, %v893
        %v903 = vcombine.low %v884, %v900
        %v904 = vcombine.high %v884, %v900
        %v905 = vpack.c.bf16 %v901, %v901
        %v906 = vpack.c.bf16 %v902, %v902
        %v907 = vpack.c.bf16 %v903, %v903
        %v908 = vpack.c.bf16 %v904, %v904
        %909 = vrot.lane.b32.xlu0 %v602, 64
        %v910 = vpop.permute.xlu0 %909
        %911 = vrot.lane.b32.xlu0 %v609, 64
        %v912 = vpop.permute.xlu0 %911
        %913 = vrot.lane.b32.xlu0 %v612, 64
        %v914 = vpop.permute.xlu0 %913
        %915 = vrot.lane.b32.xlu0 %v615, 64
        %v916 = vpop.permute.xlu0 %915
        %v921 = vcombine.low %v910, %v914
        %v922 = vcombine.high %v910, %v914
        %v924 = vunpack.c.l.s4 1983009808
        %v925 = vunpack.c.0.s8 %v924
        %v926 = vlaneseq
        %v927 = vshrl.u32 %v926, 7
        %v928 = vsub.s32 %v925, %v927
        %v929 = vrot.slane %v921, %v928
        %v931 = vunpack.c.l.s4 1983009808
        %v932 = vunpack.c.0.s8 %v931
        %v933 = vlaneseq
        %v934 = vshrl.u32 %v933, 7
        %v935 = vsub.s32 %v932, %v934
        %v936 = vrot.slane %v922, %v935
        %v937 = vcombine.low %v912, %v916
        %v938 = vcombine.high %v912, %v916
        %v940 = vunpack.c.l.s4 1983009808
        %v941 = vunpack.c.0.s8 %v940
        %v942 = vlaneseq
        %v943 = vshrl.u32 %v942, 7
        %v944 = vsub.s32 %v941, %v943
        %v945 = vrot.slane %v937, %v944
        %v947 = vunpack.c.l.s4 1983009808
        %v948 = vunpack.c.0.s8 %v947
        %v949 = vlaneseq
        %v950 = vshrl.u32 %v949, 7
        %v951 = vsub.s32 %v948, %v950
        %v952 = vrot.slane %v938, %v951
        %v953 = vcombine.low %v929, %v945
        %v954 = vcombine.high %v929, %v945
        %v956 = vunpack.c.l.s4 1934713408
        %v957 = vunpack.c.0.s8 %v956
        %v958 = vlaneseq
        %v959 = vshrl.u32 %v958, 7
        %v960 = vsub.s32 %v957, %v959
        %v961 = vrot.slane %v953, %v960
        %v963 = vunpack.c.l.s4 1934713408
        %v964 = vunpack.c.0.s8 %v963
        %v965 = vlaneseq
        %v966 = vshrl.u32 %v965, 7
        %v967 = vsub.s32 %v964, %v966
        %v968 = vrot.slane %v954, %v967
        %v969 = vcombine.low %v936, %v952
        %v970 = vcombine.high %v936, %v952
        %v972 = vunpack.c.l.s4 1934713408
        %v973 = vunpack.c.0.s8 %v972
        %v974 = vlaneseq
        %v975 = vshrl.u32 %v974, 7
        %v976 = vsub.s32 %v973, %v975
        %v977 = vrot.slane %v969, %v976
        %v979 = vunpack.c.l.s4 1934713408
        %v980 = vunpack.c.0.s8 %v979
        %v981 = vlaneseq
        %v982 = vshrl.u32 %v981, 7
        %v983 = vsub.s32 %v980, %v982
        %v984 = vrot.slane %v970, %v983
        %v985 = vcombine.high %v961, 0.0
        %v986 = vcombine.high %v968, 0.0
        %v987 = vcombine.high %v977, 0.0
        %v988 = vcombine.high %v984, 0.0
        %v989 = vcombine.low %v961, %v968
        %v991 = vunpack.c.l.s4 1983009808
        %v992 = vunpack.c.0.s8 %v991
        %v993 = vlaneseq
        %v994 = vshrl.u32 %v993, 7
        %v995 = vsub.s32 %v992, %v994
        %v996 = vrot.slane %v989, %v995
        %v997 = vcombine.low %v985, %v986
        %v999 = vunpack.c.l.s4 1983009808
        %v1000 = vunpack.c.0.s8 %v999
        %v1001 = vlaneseq
        %v1002 = vshrl.u32 %v1001, 7
        %v1003 = vsub.s32 %v1000, %v1002
        %v1004 = vrot.slane %v997, %v1003
        %v1005 = vcombine.low %v977, %v984
        %v1007 = vunpack.c.l.s4 1983009808
        %v1008 = vunpack.c.0.s8 %v1007
        %v1009 = vlaneseq
        %v1010 = vshrl.u32 %v1009, 7
        %v1011 = vsub.s32 %v1008, %v1010
        %v1012 = vrot.slane %v1005, %v1011
        %v1013 = vcombine.low %v987, %v988
        %v1015 = vunpack.c.l.s4 1983009808
        %v1016 = vunpack.c.0.s8 %v1015
        %v1017 = vlaneseq
        %v1018 = vshrl.u32 %v1017, 7
        %v1019 = vsub.s32 %v1016, %v1018
        %v1020 = vrot.slane %v1013, %v1019
        %v1021 = vcombine.low %v996, %v1004
        %v1022 = vcombine.high %v996, %v1004
        %v1024 = vunpack.c.l.s4 1934713408
        %v1025 = vunpack.c.0.s8 %v1024
        %v1026 = vlaneseq
        %v1027 = vshrl.u32 %v1026, 7
        %v1028 = vsub.s32 %v1025, %v1027
        %v1029 = vrot.slane %v1021, %v1028
        %v1031 = vunpack.c.l.s4 1934713408
        %v1032 = vunpack.c.0.s8 %v1031
        %v1033 = vlaneseq
        %v1034 = vshrl.u32 %v1033, 7
        %v1035 = vsub.s32 %v1032, %v1034
        %v1036 = vrot.slane %v1022, %v1035
        %v1037 = vcombine.low %v1012, %v1020
        %v1038 = vcombine.high %v1012, %v1020
        %v1040 = vunpack.c.l.s4 1934713408
        %v1041 = vunpack.c.0.s8 %v1040
        %v1042 = vlaneseq
        %v1043 = vshrl.u32 %v1042, 7
        %v1044 = vsub.s32 %v1041, %v1043
        %v1045 = vrot.slane %v1037, %v1044
        %v1047 = vunpack.c.l.s4 1934713408
        %v1048 = vunpack.c.0.s8 %v1047
        %v1049 = vlaneseq
        %v1050 = vshrl.u32 %v1049, 7
        %v1051 = vsub.s32 %v1048, %v1050
        %v1052 = vrot.slane %v1038, %v1051
        %v1053 = vcombine.low %v1029, %v1045
        %v1054 = vcombine.high %v1029, %v1045
        %v1055 = vcombine.low %v1036, %v1052
        %v1056 = vcombine.high %v1036, %v1052
        %v1057 = vpack.c.bf16 %v1053, %v1053
        %v1058 = vpack.c.bf16 %v1054, %v1054
        %v1059 = vpack.c.bf16 %v1055, %v1055
        %v1060 = vpack.c.bf16 %v1056, %v1056
        %vm1061 = vcmask 64512
        %v1063 = vsel %vm1061, %v753, 0
        %v1066 = vsel %vm1061, %v905, 0
        %1068 = vmatprep.subr.bf16.mxu0 0
        %1069 = vmatpush1.bf16.xpose.msra.mxu0 0
        %1070 = vmatprep.subr.bf16.mxu0 0
        %1071 = vmatpush1.bf16.xpose.msra.mxu0 0
        %1072 = vmatprep.subr.bf16.mxu0 0
        %1073 = vmatpush1.bf16.xpose.msra.mxu0 0
        %1074 = vmatprep.subr.bf16.mxu0 0
        %1075 = vmatpush1.bf16.xpose.msra.mxu0 0
        %1076 = vmatprep.subr.bf16.mxu0 0
        %1077 = vmatpush1.bf16.xpose.msra.mxu0 0
        %1078 = vmatprep.subr.bf16.mxu0 0
        %1079 = vmatpush1.bf16.xpose.msra.mxu0 0
        %1080 = vmatprep.subr.bf16.mxu0 0
        %1081 = vmatpush1.bf16.xpose.msra.mxu0 0
        %1082 = vmatprep.subr.bf16.mxu0 0
        %1083 = vmatpush1.bf16.xpose.msra.mxu0 %v1066
        %1084 = vmatprep.subr.bf16.mxu0 0
        %1085 = vmatpush2.bf16.xpose.msra.mxu0 0
        %1086 = vmatprep.subr.bf16.mxu0 0
        %1087 = vmatpush2.bf16.xpose.msra.mxu0 0
        %1088 = vmatprep.subr.bf16.mxu0 0
        %1089 = vmatpush2.bf16.xpose.msra.mxu0 0
        %1090 = vmatprep.subr.bf16.mxu0 0
        %1091 = vmatpush2.bf16.xpose.msra.mxu0 0
        %1092 = vmatprep.subr.bf16.mxu0 0
        %1093 = vmatpush2.bf16.xpose.msra.mxu0 0
        %1094 = vmatprep.subr.bf16.mxu0 0
        %1095 = vmatpush2.bf16.xpose.msra.mxu0 0
        %1096 = vmatprep.subr.bf16.mxu0 0
        %1097 = vmatpush2.bf16.xpose.msra.mxu0 0
        %1098 = vmatprep.subr.bf16.mxu0 0
        %1099 = vmatpush2.bf16.xpose.msra.mxu0 0
        %1100 = vmatprep.mubr.bf16.mxu0 0
        %1101 = vmatmul.mubr.bf16.gmra.mxu0 %v1063
        %v1102 = vpop.f32.mrf.mxu0
        %v1103 = vadd.f32 %v508, %v1102
        %v1104 = vpop.f32.mrf.mxu0
        %v1105 = vpop.f32.mrf.mxu0
        %v1106 = vpop.f32.mrf.mxu0
        %1107 = vdwg.mxu0
        %v1109 = vsel %vm1061, %v754, 0
        %v1112 = vsel %vm1061, %v906, 0
        %1114 = vmatprep.subr.bf16.mxu0 0
        %1115 = vmatpush1.bf16.xpose.msra.mxu0 0
        %1116 = vmatprep.subr.bf16.mxu0 0
        %1117 = vmatpush1.bf16.xpose.msra.mxu0 0
        %1118 = vmatprep.subr.bf16.mxu0 0
        %1119 = vmatpush1.bf16.xpose.msra.mxu0 0
        %1120 = vmatprep.subr.bf16.mxu0 0
        %1121 = vmatpush1.bf16.xpose.msra.mxu0 0
        %1122 = vmatprep.subr.bf16.mxu0 0
        %1123 = vmatpush1.bf16.xpose.msra.mxu0 0
        %1124 = vmatprep.subr.bf16.mxu0 0
        %1125 = vmatpush1.bf16.xpose.msra.mxu0 0
        %1126 = vmatprep.subr.bf16.mxu0 0
        %1127 = vmatpush1.bf16.xpose.msra.mxu0 0
        %1128 = vmatprep.subr.bf16.mxu0 0
        %1129 = vmatpush1.bf16.xpose.msra.mxu0 %v1112
        %1130 = vmatprep.subr.bf16.mxu0 0
        %1131 = vmatpush2.bf16.xpose.msra.mxu0 0
        %1132 = vmatprep.subr.bf16.mxu0 0
        %1133 = vmatpush2.bf16.xpose.msra.mxu0 0
        %1134 = vmatprep.subr.bf16.mxu0 0
        %1135 = vmatpush2.bf16.xpose.msra.mxu0 0
        %1136 = vmatprep.subr.bf16.mxu0 0
        %1137 = vmatpush2.bf16.xpose.msra.mxu0 0
        %1138 = vmatprep.subr.bf16.mxu0 0
        %1139 = vmatpush2.bf16.xpose.msra.mxu0 0
        %1140 = vmatprep.subr.bf16.mxu0 0
        %1141 = vmatpush2.bf16.xpose.msra.mxu0 0
        %1142 = vmatprep.subr.bf16.mxu0 0
        %1143 = vmatpush2.bf16.xpose.msra.mxu0 0
        %1144 = vmatprep.subr.bf16.mxu0 0
        %1145 = vmatpush2.bf16.xpose.msra.mxu0 0
        %1146 = vmatprep.mubr.bf16.mxu0 0
        %1147 = vmatmul.mubr.bf16.gmra.mxu0 %v1109
        %v1148 = vpop.f32.mrf.mxu0
        %v1149 = vadd.f32 %v508, %v1148
        %v1150 = vpop.f32.mrf.mxu0
        %v1151 = vpop.f32.mrf.mxu0
        %v1152 = vpop.f32.mrf.mxu0
        %1153 = vdwg.mxu0
        %v1155 = vsel %vm1061, %v755, 0
        %v1158 = vsel %vm1061, %v907, 0
        %1160 = vmatprep.subr.bf16.mxu0 0
        %1161 = vmatpush1.bf16.xpose.msra.mxu0 0
        %1162 = vmatprep.subr.bf16.mxu0 0
        %1163 = vmatpush1.bf16.xpose.msra.mxu0 0
        %1164 = vmatprep.subr.bf16.mxu0 0
        %1165 = vmatpush1.bf16.xpose.msra.mxu0 0
        %1166 = vmatprep.subr.bf16.mxu0 0
        %1167 = vmatpush1.bf16.xpose.msra.mxu0 0
        %1168 = vmatprep.subr.bf16.mxu0 0
        %1169 = vmatpush1.bf16.xpose.msra.mxu0 0
        %1170 = vmatprep.subr.bf16.mxu0 0
        %1171 = vmatpush1.bf16.xpose.msra.mxu0 0
        %1172 = vmatprep.subr.bf16.mxu0 0
        %1173 = vmatpush1.bf16.xpose.msra.mxu0 0
        %1174 = vmatprep.subr.bf16.mxu0 0
        %1175 = vmatpush1.bf16.xpose.msra.mxu0 %v1158
        %1176 = vmatprep.subr.bf16.mxu0 0
        %1177 = vmatpush2.bf16.xpose.msra.mxu0 0
        %1178 = vmatprep.subr.bf16.mxu0 0
        %1179 = vmatpush2.bf16.xpose.msra.mxu0 0
        %1180 = vmatprep.subr.bf16.mxu0 0
        %1181 = vmatpush2.bf16.xpose.msra.mxu0 0
        %1182 = vmatprep.subr.bf16.mxu0 0
        %1183 = vmatpush2.bf16.xpose.msra.mxu0 0
        %1184 = vmatprep.subr.bf16.mxu0 0
        %1185 = vmatpush2.bf16.xpose.msra.mxu0 0
        %1186 = vmatprep.subr.bf16.mxu0 0
        %1187 = vmatpush2.bf16.xpose.msra.mxu0 0
        %1188 = vmatprep.subr.bf16.mxu0 0
        %1189 = vmatpush2.bf16.xpose.msra.mxu0 0
        %1190 = vmatprep.subr.bf16.mxu0 0
        %1191 = vmatpush2.bf16.xpose.msra.mxu0 0
        %1192 = vmatprep.mubr.bf16.mxu0 0
        %1193 = vmatmul.mubr.bf16.gmra.mxu0 %v1155
        %v1194 = vpop.f32.mrf.mxu0
        %v1195 = vadd.f32 %v508, %v1194
        %v1196 = vpop.f32.mrf.mxu0
        %v1197 = vpop.f32.mrf.mxu0
        %v1198 = vpop.f32.mrf.mxu0
        %1199 = vdwg.mxu0
        %v1201 = vsel %vm1061, %v756, 0
        %v1204 = vsel %vm1061, %v908, 0
        %1206 = vmatprep.subr.bf16.mxu0 0
        %1207 = vmatpush1.bf16.xpose.msra.mxu0 0
        %1208 = vmatprep.subr.bf16.mxu0 0
        %1209 = vmatpush1.bf16.xpose.msra.mxu0 0
        %1210 = vmatprep.subr.bf16.mxu0 0
        %1211 = vmatpush1.bf16.xpose.msra.mxu0 0
        %1212 = vmatprep.subr.bf16.mxu0 0
        %1213 = vmatpush1.bf16.xpose.msra.mxu0 0
        %1214 = vmatprep.subr.bf16.mxu0 0
        %1215 = vmatpush1.bf16.xpose.msra.mxu0 0
        %1216 = vmatprep.subr.bf16.mxu0 0
        %1217 = vmatpush1.bf16.xpose.msra.mxu0 0
        %1218 = vmatprep.subr.bf16.mxu0 0
        %1219 = vmatpush1.bf16.xpose.msra.mxu0 0
        %1220 = vmatprep.subr.bf16.mxu0 0
        %1221 = vmatpush1.bf16.xpose.msra.mxu0 %v1204
        %1222 = vmatprep.subr.bf16.mxu0 0
        %1223 = vmatpush2.bf16.xpose.msra.mxu0 0
        %1224 = vmatprep.subr.bf16.mxu0 0
        %1225 = vmatpush2.bf16.xpose.msra.mxu0 0
        %1226 = vmatprep.subr.bf16.mxu0 0
        %1227 = vmatpush2.bf16.xpose.msra.mxu0 0
        %1228 = vmatprep.subr.bf16.mxu0 0
        %1229 = vmatpush2.bf16.xpose.msra.mxu0 0
        %1230 = vmatprep.subr.bf16.mxu0 0
        %1231 = vmatpush2.bf16.xpose.msra.mxu0 0
        %1232 = vmatprep.subr.bf16.mxu0 0
        %1233 = vmatpush2.bf16.xpose.msra.mxu0 0
        %1234 = vmatprep.subr.bf16.mxu0 0
        %1235 = vmatpush2.bf16.xpose.msra.mxu0 0
        %1236 = vmatprep.subr.bf16.mxu0 0
        %1237 = vmatpush2.bf16.xpose.msra.mxu0 0
        %1238 = vmatprep.mubr.bf16.mxu0 0
        %1239 = vmatmul.mubr.bf16.gmra.mxu0 %v1201
        %v1240 = vpop.f32.mrf.mxu0
        %v1241 = vadd.f32 %v508, %v1240
        %v1242 = vpop.f32.mrf.mxu0
        %v1243 = vpop.f32.mrf.mxu0
        %v1244 = vpop.f32.mrf.mxu0
        %1245 = vdwg.mxu0
        %v1246 = vsel %vm1061, %v1103, -inf
        %1247 = vmax.xlane.f32.xlu0 %v1246
        %v1248 = vpop.xlane.xlu0 %1247
        %v1249 = vsel %vm1061, %v1149, -inf
        %1250 = vmax.xlane.f32.xlu0 %v1249
        %v1251 = vpop.xlane.xlu0 %1250
        %v1252 = vsel %vm1061, %v1195, -inf
        %1253 = vmax.xlane.f32.xlu0 %v1252
        %v1254 = vpop.xlane.xlu0 %1253
        %v1255 = vsel %vm1061, %v1241, -inf
        %1256 = vmax.xlane.f32.xlu0 %v1255
        %v1257 = vpop.xlane.xlu0 %1256
        %v1258 = vsub.f32 %v1103, %v1248
        %v1259 = vsub.f32 %v1149, %v1251
        %v1260 = vsub.f32 %v1195, %v1254
        %v1261 = vsub.f32 %v1241, %v1257
        %v1262 = vmul.f32 %v1258, 1.442695
        %v1263 = vpow.pop %v1262
        %v1264 = vmul.f32 %v1259, 1.442695
        %v1265 = vpow.pop %v1264
        %v1266 = vmul.f32 %v1260, 1.442695
        %v1267 = vpow.pop %v1266
        %v1268 = vmul.f32 %v1261, 1.442695
        %v1269 = vpow.pop %v1268
        %v1270 = vsel %vm1061, %v1263, 0.0
        %1271 = vadd.xlane.f32.xlu0 %v1270
        %v1272 = vpop.xlane.xlu0 %1271
        %v1273 = vsel %vm1061, %v1265, 0.0
        %1274 = vadd.xlane.f32.xlu0 %v1273
        %v1275 = vpop.xlane.xlu0 %1274
        %v1276 = vsel %vm1061, %v1267, 0.0
        %1277 = vadd.xlane.f32.xlu0 %v1276
        %v1278 = vpop.xlane.xlu0 %1277
        %v1279 = vsel %vm1061, %v1269, 0.0
        %1280 = vadd.xlane.f32.xlu0 %v1279
        %v1281 = vpop.xlane.xlu0 %1280
        %v1282 = vpack.c.bf16 %v1263, %v1263
        %v1283 = vpack.c.bf16 %v1265, %v1265
        %v1284 = vpack.c.bf16 %v1267, %v1267
        %v1285 = vpack.c.bf16 %v1269, %v1269
        %v1287 = vsel %vm1061, %v1282, 0
        %vm1289 = vcmask 1043456
        %v1291 = vsel %vm1289, %v1057, 0
        %1293 = vmatprep.subr.bf16.mxu0 0
        %1294 = vmatpush1.bf16.msra.mxu0 0
        %1295 = vmatprep.subr.bf16.mxu0 0
        %1296 = vmatpush1.bf16.msra.mxu0 0
        %1297 = vmatprep.subr.bf16.mxu0 0
        %1298 = vmatpush1.bf16.msra.mxu0 0
        %1299 = vmatprep.subr.bf16.mxu0 0
        %1300 = vmatpush1.bf16.msra.mxu0 0
        %1301 = vmatprep.subr.bf16.mxu0 0
        %1302 = vmatpush1.bf16.msra.mxu0 0
        %1303 = vmatprep.subr.bf16.mxu0 0
        %1304 = vmatpush1.bf16.msra.mxu0 0
        %1305 = vmatprep.subr.bf16.mxu0 0
        %1306 = vmatpush1.bf16.msra.mxu0 0
        %1307 = vmatprep.subr.bf16.mxu0 0
        %1308 = vmatpush1.bf16.msra.mxu0 %v1291
        %1309 = vmatprep.subr.bf16.mxu0 0
        %1310 = vmatpush2.bf16.msra.mxu0 0
        %1311 = vmatprep.subr.bf16.mxu0 0
        %1312 = vmatpush2.bf16.msra.mxu0 0
        %1313 = vmatprep.subr.bf16.mxu0 0
        %1314 = vmatpush2.bf16.msra.mxu0 0
        %1315 = vmatprep.subr.bf16.mxu0 0
        %1316 = vmatpush2.bf16.msra.mxu0 0
        %1317 = vmatprep.subr.bf16.mxu0 0
        %1318 = vmatpush2.bf16.msra.mxu0 0
        %1319 = vmatprep.subr.bf16.mxu0 0
        %1320 = vmatpush2.bf16.msra.mxu0 0
        %1321 = vmatprep.subr.bf16.mxu0 0
        %1322 = vmatpush2.bf16.msra.mxu0 0
        %1323 = vmatprep.subr.bf16.mxu0 0
        %1324 = vmatpush2.bf16.msra.mxu0 0
        %1325 = vmatprep.mubr.bf16.mxu0 0
        %1326 = vmatmul.mubr.bf16.gmra.mxu0 %v1287
        %v1327 = vpop.f32.mrf.mxu0
        %v1328 = vadd.f32 0.0, %v1327
        %v1329 = vpop.f32.mrf.mxu0
        %v1330 = vpop.f32.mrf.mxu0
        %v1331 = vpop.f32.mrf.mxu0
        %1332 = vdwg.mxu0
        %v1334 = vsel %vm1061, %v1283, 0
        %v1337 = vsel %vm1289, %v1058, 0
        %1339 = vmatprep.subr.bf16.mxu0 0
        %1340 = vmatpush1.bf16.msra.mxu0 0
        %1341 = vmatprep.subr.bf16.mxu0 0
        %1342 = vmatpush1.bf16.msra.mxu0 0
        %1343 = vmatprep.subr.bf16.mxu0 0
        %1344 = vmatpush1.bf16.msra.mxu0 0
        %1345 = vmatprep.subr.bf16.mxu0 0
        %1346 = vmatpush1.bf16.msra.mxu0 0
        %1347 = vmatprep.subr.bf16.mxu0 0
        %1348 = vmatpush1.bf16.msra.mxu0 0
        %1349 = vmatprep.subr.bf16.mxu0 0
        %1350 = vmatpush1.bf16.msra.mxu0 0
        %1351 = vmatprep.subr.bf16.mxu0 0
        %1352 = vmatpush1.bf16.msra.mxu0 0
        %1353 = vmatprep.subr.bf16.mxu0 0
        %1354 = vmatpush1.bf16.msra.mxu0 %v1337
        %1355 = vmatprep.subr.bf16.mxu0 0
        %1356 = vmatpush2.bf16.msra.mxu0 0
        %1357 = vmatprep.subr.bf16.mxu0 0
        %1358 = vmatpush2.bf16.msra.mxu0 0
        %1359 = vmatprep.subr.bf16.mxu0 0
        %1360 = vmatpush2.bf16.msra.mxu0 0
        %1361 = vmatprep.subr.bf16.mxu0 0
        %1362 = vmatpush2.bf16.msra.mxu0 0
        %1363 = vmatprep.subr.bf16.mxu0 0
        %1364 = vmatpush2.bf16.msra.mxu0 0
        %1365 = vmatprep.subr.bf16.mxu0 0
        %1366 = vmatpush2.bf16.msra.mxu0 0
        %1367 = vmatprep.subr.bf16.mxu0 0
        %1368 = vmatpush2.bf16.msra.mxu0 0
        %1369 = vmatprep.subr.bf16.mxu0 0
        %1370 = vmatpush2.bf16.msra.mxu0 0
        %1371 = vmatprep.mubr.bf16.mxu0 0
        %1372 = vmatmul.mubr.bf16.gmra.mxu0 %v1334
        %v1373 = vpop.f32.mrf.mxu0
        %v1374 = vadd.f32 0.0, %v1373
        %v1375 = vpop.f32.mrf.mxu0
        %v1376 = vpop.f32.mrf.mxu0
        %v1377 = vpop.f32.mrf.mxu0
        %1378 = vdwg.mxu0
        %v1380 = vsel %vm1061, %v1284, 0
        %v1383 = vsel %vm1289, %v1059, 0
        %1385 = vmatprep.subr.bf16.mxu0 0
        %1386 = vmatpush1.bf16.msra.mxu0 0
        %1387 = vmatprep.subr.bf16.mxu0 0
        %1388 = vmatpush1.bf16.msra.mxu0 0
        %1389 = vmatprep.subr.bf16.mxu0 0
        %1390 = vmatpush1.bf16.msra.mxu0 0
        %1391 = vmatprep.subr.bf16.mxu0 0
        %1392 = vmatpush1.bf16.msra.mxu0 0
        %1393 = vmatprep.subr.bf16.mxu0 0
        %1394 = vmatpush1.bf16.msra.mxu0 0
        %1395 = vmatprep.subr.bf16.mxu0 0
        %1396 = vmatpush1.bf16.msra.mxu0 0
        %1397 = vmatprep.subr.bf16.mxu0 0
        %1398 = vmatpush1.bf16.msra.mxu0 0
        %1399 = vmatprep.subr.bf16.mxu0 0
        %1400 = vmatpush1.bf16.msra.mxu0 %v1383
        %1401 = vmatprep.subr.bf16.mxu0 0
        %1402 = vmatpush2.bf16.msra.mxu0 0
        %1403 = vmatprep.subr.bf16.mxu0 0
        %1404 = vmatpush2.bf16.msra.mxu0 0
        %1405 = vmatprep.subr.bf16.mxu0 0
        %1406 = vmatpush2.bf16.msra.mxu0 0
        %1407 = vmatprep.subr.bf16.mxu0 0
        %1408 = vmatpush2.bf16.msra.mxu0 0
        %1409 = vmatprep.subr.bf16.mxu0 0
        %1410 = vmatpush2.bf16.msra.mxu0 0
        %1411 = vmatprep.subr.bf16.mxu0 0
        %1412 = vmatpush2.bf16.msra.mxu0 0
        %1413 = vmatprep.subr.bf16.mxu0 0
        %1414 = vmatpush2.bf16.msra.mxu0 0
        %1415 = vmatprep.subr.bf16.mxu0 0
        %1416 = vmatpush2.bf16.msra.mxu0 0
        %1417 = vmatprep.mubr.bf16.mxu0 0
        %1418 = vmatmul.mubr.bf16.gmra.mxu0 %v1380
        %v1419 = vpop.f32.mrf.mxu0
        %v1420 = vadd.f32 0.0, %v1419
        %v1421 = vpop.f32.mrf.mxu0
        %v1422 = vpop.f32.mrf.mxu0
        %v1423 = vpop.f32.mrf.mxu0
        %1424 = vdwg.mxu0
        %v1426 = vsel %vm1061, %v1285, 0
        %v1429 = vsel %vm1289, %v1060, 0
        %1431 = vmatprep.subr.bf16.mxu0 0
        %1432 = vmatpush1.bf16.msra.mxu0 0
        %1433 = vmatprep.subr.bf16.mxu0 0
        %1434 = vmatpush1.bf16.msra.mxu0 0
        %1435 = vmatprep.subr.bf16.mxu0 0
        %1436 = vmatpush1.bf16.msra.mxu0 0
        %1437 = vmatprep.subr.bf16.mxu0 0
        %1438 = vmatpush1.bf16.msra.mxu0 0
        %1439 = vmatprep.subr.bf16.mxu0 0
        %1440 = vmatpush1.bf16.msra.mxu0 0
        %1441 = vmatprep.subr.bf16.mxu0 0
        %1442 = vmatpush1.bf16.msra.mxu0 0
        %1443 = vmatprep.subr.bf16.mxu0 0
        %1444 = vmatpush1.bf16.msra.mxu0 0
        %1445 = vmatprep.subr.bf16.mxu0 0
        %1446 = vmatpush1.bf16.msra.mxu0 %v1429
        %1447 = vmatprep.subr.bf16.mxu0 0
        %1448 = vmatpush2.bf16.msra.mxu0 0
        %1449 = vmatprep.subr.bf16.mxu0 0
        %1450 = vmatpush2.bf16.msra.mxu0 0
        %1451 = vmatprep.subr.bf16.mxu0 0
        %1452 = vmatpush2.bf16.msra.mxu0 0
        %1453 = vmatprep.subr.bf16.mxu0 0
        %1454 = vmatpush2.bf16.msra.mxu0 0
        %1455 = vmatprep.subr.bf16.mxu0 0
        %1456 = vmatpush2.bf16.msra.mxu0 0
        %1457 = vmatprep.subr.bf16.mxu0 0
        %1458 = vmatpush2.bf16.msra.mxu0 0
        %1459 = vmatprep.subr.bf16.mxu0 0
        %1460 = vmatpush2.bf16.msra.mxu0 0
        %1461 = vmatprep.subr.bf16.mxu0 0
        %1462 = vmatpush2.bf16.msra.mxu0 0
        %1463 = vmatprep.mubr.bf16.mxu0 0
        %1464 = vmatmul.mubr.bf16.gmra.mxu0 %v1426
        %v1465 = vpop.f32.mrf.mxu0
        %v1466 = vadd.f32 0.0, %v1465
        %v1467 = vpop.f32.mrf.mxu0
        %v1468 = vpop.f32.mrf.mxu0
        %v1469 = vpop.f32.mrf.mxu0
        %1470 = vdwg.mxu0
        %v1471 = vrcp.pop %v1272
        %v1472 = vrcp.pop %v1275
        %v1473 = vrcp.pop %v1278
        %v1474 = vrcp.pop %v1281
        %v1475 = vmul.f32 %v1328, %v1471
        %v1476 = vmul.f32 %v1374, %v1472
        %v1477 = vmul.f32 %v1420, %v1473
        %v1478 = vmul.f32 %v1466, %v1474
        %v1479 = vcombine.low %v1475, %v1477
        %v1480 = vcombine.high %v1475, %v1477
        %v1482 = vunpack.c.l.s4 1983009808
        %v1483 = vunpack.c.0.s8 %v1482
        %v1484 = vlaneseq
        %v1485 = vshrl.u32 %v1484, 7
        %v1486 = vsub.s32 %v1483, %v1485
        %v1487 = vrot.slane %v1479, %v1486
        %v1489 = vunpack.c.l.s4 1983009808
        %v1490 = vunpack.c.0.s8 %v1489
        %v1491 = vlaneseq
        %v1492 = vshrl.u32 %v1491, 7
        %v1493 = vsub.s32 %v1490, %v1492
        %v1494 = vrot.slane %v1480, %v1493
        %v1495 = vcombine.low %v1476, %v1478
        %v1496 = vcombine.high %v1476, %v1478
        %v1498 = vunpack.c.l.s4 1983009808
        %v1499 = vunpack.c.0.s8 %v1498
        %v1500 = vlaneseq
        %v1501 = vshrl.u32 %v1500, 7
        %v1502 = vsub.s32 %v1499, %v1501
        %v1503 = vrot.slane %v1495, %v1502
        %v1505 = vunpack.c.l.s4 1983009808
        %v1506 = vunpack.c.0.s8 %v1505
        %v1507 = vlaneseq
        %v1508 = vshrl.u32 %v1507, 7
        %v1509 = vsub.s32 %v1506, %v1508
        %v1510 = vrot.slane %v1496, %v1509
        %v1511 = vcombine.low %v1487, %v1503
        %v1512 = vcombine.high %v1487, %v1503
        %v1514 = vunpack.c.l.s4 1934713408
        %v1515 = vunpack.c.0.s8 %v1514
        %v1516 = vlaneseq
        %v1517 = vshrl.u32 %v1516, 7
        %v1518 = vsub.s32 %v1515, %v1517
        %v1519 = vrot.slane %v1511, %v1518
        %v1521 = vunpack.c.l.s4 1934713408
        %v1522 = vunpack.c.0.s8 %v1521
        %v1523 = vlaneseq
        %v1524 = vshrl.u32 %v1523, 7
        %v1525 = vsub.s32 %v1522, %v1524
        %v1526 = vrot.slane %v1512, %v1525
        %v1527 = vcombine.low %v1494, %v1510
        %v1528 = vcombine.high %v1494, %v1510
        %v1530 = vunpack.c.l.s4 1934713408
        %v1531 = vunpack.c.0.s8 %v1530
        %v1532 = vlaneseq
        %v1533 = vshrl.u32 %v1532, 7
        %v1534 = vsub.s32 %v1531, %v1533
        %v1535 = vrot.slane %v1527, %v1534
        %v1537 = vunpack.c.l.s4 1934713408
        %v1538 = vunpack.c.0.s8 %v1537
        %v1539 = vlaneseq
        %v1540 = vshrl.u32 %v1539, 7
        %v1541 = vsub.s32 %v1538, %v1540
        %v1542 = vrot.slane %v1528, %v1541
        %v1543 = vcombine.high %v1519, 0.0
        %v1544 = vcombine.high %v1526, 0.0
        %v1545 = vcombine.high %v1535, 0.0
        %v1546 = vcombine.high %v1542, 0.0
        %v1547 = vcombine.low %v1519, %v1526
        %v1549 = vunpack.c.l.s4 1983009808
        %v1550 = vunpack.c.0.s8 %v1549
        %v1551 = vlaneseq
        %v1552 = vshrl.u32 %v1551, 7
        %v1553 = vsub.s32 %v1550, %v1552
        %v1554 = vrot.slane %v1547, %v1553
        %v1555 = vcombine.low %v1543, %v1544
        %v1557 = vunpack.c.l.s4 1983009808
        %v1558 = vunpack.c.0.s8 %v1557
        %v1559 = vlaneseq
        %v1560 = vshrl.u32 %v1559, 7
        %v1561 = vsub.s32 %v1558, %v1560
        %v1562 = vrot.slane %v1555, %v1561
        %v1563 = vcombine.low %v1535, %v1542
        %v1565 = vunpack.c.l.s4 1983009808
        %v1566 = vunpack.c.0.s8 %v1565
        %v1567 = vlaneseq
        %v1568 = vshrl.u32 %v1567, 7
        %v1569 = vsub.s32 %v1566, %v1568
        %v1570 = vrot.slane %v1563, %v1569
        %v1571 = vcombine.low %v1545, %v1546
        %v1573 = vunpack.c.l.s4 1983009808
        %v1574 = vunpack.c.0.s8 %v1573
        %v1575 = vlaneseq
        %v1576 = vshrl.u32 %v1575, 7
        %v1577 = vsub.s32 %v1574, %v1576
        %v1578 = vrot.slane %v1571, %v1577
        %v1579 = vcombine.low %v1554, %v1562
        %v1580 = vcombine.high %v1554, %v1562
        %v1582 = vunpack.c.l.s4 1934713408
        %v1583 = vunpack.c.0.s8 %v1582
        %v1584 = vlaneseq
        %v1585 = vshrl.u32 %v1584, 7
        %v1586 = vsub.s32 %v1583, %v1585
        %v1587 = vrot.slane %v1579, %v1586
        %v1589 = vunpack.c.l.s4 1934713408
        %v1590 = vunpack.c.0.s8 %v1589
        %v1591 = vlaneseq
        %v1592 = vshrl.u32 %v1591, 7
        %v1593 = vsub.s32 %v1590, %v1592
        %v1594 = vrot.slane %v1580, %v1593
        %v1595 = vcombine.low %v1570, %v1578
        %v1596 = vcombine.high %v1570, %v1578
        %v1598 = vunpack.c.l.s4 1934713408
        %v1599 = vunpack.c.0.s8 %v1598
        %v1600 = vlaneseq
        %v1601 = vshrl.u32 %v1600, 7
        %v1602 = vsub.s32 %v1599, %v1601
        %v1603 = vrot.slane %v1595, %v1602
        %v1605 = vunpack.c.l.s4 1934713408
        %v1606 = vunpack.c.0.s8 %v1605
        %v1607 = vlaneseq
        %v1608 = vshrl.u32 %v1607, 7
        %v1609 = vsub.s32 %v1606, %v1608
        %v1610 = vrot.slane %v1596, %v1609
        %v1611 = vcombine.low %v1587, %v1603
        %v1612 = vcombine.high %v1587, %v1603
        %v1613 = vcombine.low %v1594, %v1610
        %v1614 = vcombine.high %v1594, %v1610
        %1616 = vrot.lane.b32.xlu0 %v1612, 8
        %v1617 = vpop.permute.xlu0 %1616
        %1620 = vrot.lane.b32.xlu0 %v1613, 16
        %v1621 = vpop.permute.xlu0 %1620
        %1624 = vrot.lane.b32.xlu0 %v1614, 24
        %v1625 = vpop.permute.xlu0 %1624
        %v1627 = vsel %vm1061, %v1611, %v1617
        %vm1628 = vcmask 130048
        %v1629 = vsel %vm1628, %v1627, %v1621
        %vm1630 = vcmask 195584
        %v1631 = vsel %vm1630, %v1629, %v1625
        %v1632 = vpack.c.bf16 %v1631, %v1631
        %v1633 = vld [vmem:[%s6] sm:$0xf]
        %v1634 = vld [vmem:[%s6 + $0x4] sm:$0xf]
        %v1635 = vld [vmem:[%s6 + $0x8] sm:$0xf]
        %v1636 = vld [vmem:[%s6 + $0xc] sm:$0xf]
        %v1637 = vld [vmem:[%s7] sm:$0x1]
        %v1639 = vlaneseq
        %v1640 = vshrl.u32 %v1639, 7
        %v1641 = vsub.s32 0, %v1640
        %v1642 = vrot.slane %v1637, %v1641
        %v1648 = vunpack.c.l.b16 %v1633
        %v1649 = vunpack.c.l.b16 %v1634
        %v1650 = vunpack.c.l.b16 %v1635
        %v1651 = vunpack.c.l.b16 %v1636
        %v1652 = vpack.c.b16 %v1649, %v1648
        %v1653 = vpack.c.b16 %v1651, %v1650
        %v1657 = vsel %vm511, %v1632, 0
        %1659 = vmatprep.subr.bf16.mxu0 0
        %1660 = vmatpush1.bf16.msra.mxu0 0
        %1661 = vmatprep.subr.bf16.mxu0 0
        %1662 = vmatpush1.bf16.msra.mxu0 0
        %1663 = vmatprep.subr.bf16.mxu0 0
        %1664 = vmatpush1.bf16.msra.mxu0 0
        %1665 = vmatprep.subr.bf16.mxu0 0
        %1666 = vmatpush1.bf16.msra.mxu0 0
        %1667 = vmatprep.subr.bf16.mxu0 0
        %1668 = vmatpush1.bf16.msra.mxu0 0
        %1669 = vmatprep.subr.bf16.mxu0 0
        %1670 = vmatpush1.bf16.msra.mxu0 0
        %1671 = vmatprep.subr.bf16.mxu0 0
        %1672 = vmatpush1.bf16.msra.mxu0 %v1653
        %1673 = vmatprep.subr.bf16.mxu0 0
        %1674 = vmatpush1.bf16.msra.mxu0 %v1652
        %1675 = vmatprep.subr.bf16.mxu0 0
        %1676 = vmatpush2.bf16.msra.mxu0 0
        %1677 = vmatprep.subr.bf16.mxu0 0
        %1678 = vmatpush2.bf16.msra.mxu0 0
        %1679 = vmatprep.subr.bf16.mxu0 0
        %1680 = vmatpush2.bf16.msra.mxu0 0
        %1681 = vmatprep.subr.bf16.mxu0 0
        %1682 = vmatpush2.bf16.msra.mxu0 0
        %1683 = vmatprep.subr.bf16.mxu0 0
        %1684 = vmatpush2.bf16.msra.mxu0 0
        %1685 = vmatprep.subr.bf16.mxu0 0
        %1686 = vmatpush2.bf16.msra.mxu0 0
        %1687 = vmatprep.subr.bf16.mxu0 0
        %1688 = vmatpush2.bf16.msra.mxu0 0
        %1689 = vmatprep.subr.bf16.mxu0 0
        %1690 = vmatpush2.bf16.msra.mxu0 0
        %1691 = vmatprep.mubr.bf16.mxu0 0
        %1692 = vmatmul.mubr.bf16.gmra.mxu0 %v1657
        %v1693 = vpop.f32.mrf.mxu0
        %v1694 = vadd.f32 %v1642, %v1693
        %v1695 = vpop.f32.mrf.mxu0
        %v1696 = vpop.f32.mrf.mxu0
        %v1697 = vpop.f32.mrf.mxu0
        %1698 = vdwg.mxu0
        %v1699 = vadd.f32 %v507, %v1694
        %v1700 = vld [vmem:[%s8] sm:$0x1]
        %v1701 = vld [vmem:[#allocation2] sm:$0x1]
        %v1702 = vsel %vm511, %v1699, 0.0
        %1703 = vadd.xlane.f32.xlu0 %v1702
        %v1704 = vpop.xlane.xlu0 %1703
        %v1705 = vmul.f32 %v1704, %v515
        %v1706 = vsub.f32 %v1699, %v1705
        %v1707 = vmul.f32 %v1706, %v1706
        %v1708 = vsel %vm511, %v1707, 0.0
        %1709 = vadd.xlane.f32.xlu0 %v1708
        %v1710 = vpop.xlane.xlu0 %1709
        %v1711 = vmul.f32 %v1710, %v515
        %v1712 = vadd.f32 %v1711, 1e-05
        %v1713 = vrsqrt.pop %v1712
        %v1714 = vmul.f32 %v1706, %v1713
        %v1716 = vlaneseq
        %v1717 = vshrl.u32 %v1716, 7
        %v1718 = vsub.s32 0, %v1717
        %v1719 = vrot.slane %v1700, %v1718
        %v1721 = vmul.f32 %v1714, %v1719
        %v1723 = vlaneseq
        %v1724 = vshrl.u32 %v1723, 7
        %v1725 = vsub.s32 0, %v1724
        %v1726 = vrot.slane %v1701, %v1725
        %v1728 = vadd.f32 %v1721, %v1726
        %v1729 = vpack.c.bf16 %v1728, %v1728
        %v1730 = vld [vmem:[%s10] sm:$0xf]
        %v1731 = vld [vmem:[%s10 + $0x4] sm:$0xf]
        %v1732 = vld [vmem:[%s10 + $0x8] sm:$0xf]
        %v1733 = vld [vmem:[%s10 + $0xc] sm:$0xf]
        %v1734 = vld [vmem:[#allocation5] sm:$0x1]
        %v1736 = vlaneseq
        %v1737 = vshrl.u32 %v1736, 7
        %v1738 = vsub.s32 0, %v1737
        %v1739 = vrot.slane %v1734, %v1738
        %v1745 = vunpack.c.l.b16 %v1730
        %v1746 = vunpack.c.l.b16 %v1731
        %v1747 = vunpack.c.l.b16 %v1732
        %v1748 = vunpack.c.l.b16 %v1733
        %v1749 = vpack.c.b16 %v1746, %v1745
        %v1750 = vpack.c.b16 %v1748, %v1747
        %v1754 = vsel %vm511, %v1729, 0
        %1756 = vmatprep.subr.bf16.mxu0 0
        %1757 = vmatpush1.bf16.msra.mxu0 0
        %1758 = vmatprep.subr.bf16.mxu0 0
        %1759 = vmatpush1.bf16.msra.mxu0 0
        %1760 = vmatprep.subr.bf16.mxu0 0
        %1761 = vmatpush1.bf16.msra.mxu0 0
        %1762 = vmatprep.subr.bf16.mxu0 0
        %1763 = vmatpush1.bf16.msra.mxu0 0
        %1764 = vmatprep.subr.bf16.mxu0 0
        %1765 = vmatpush1.bf16.msra.mxu0 0
        %1766 = vmatprep.subr.bf16.mxu0 0
        %1767 = vmatpush1.bf16.msra.mxu0 0
        %1768 = vmatprep.subr.bf16.mxu0 0
        %1769 = vmatpush1.bf16.msra.mxu0 %v1750
        %1770 = vmatprep.subr.bf16.mxu0 0
        %1771 = vmatpush1.bf16.msra.mxu0 %v1749
        %1772 = vmatprep.subr.bf16.mxu0 0
        %1773 = vmatpush2.bf16.msra.mxu0 0
        %1774 = vmatprep.subr.bf16.mxu0 0
        %1775 = vmatpush2.bf16.msra.mxu0 0
        %1776 = vmatprep.subr.bf16.mxu0 0
        %1777 = vmatpush2.bf16.msra.mxu0 0
        %1778 = vmatprep.subr.bf16.mxu0 0
        %1779 = vmatpush2.bf16.msra.mxu0 0
        %1780 = vmatprep.subr.bf16.mxu0 0
        %1781 = vmatpush2.bf16.msra.mxu0 0
        %1782 = vmatprep.subr.bf16.mxu0 0
        %1783 = vmatpush2.bf16.msra.mxu0 0
        %1784 = vmatprep.subr.bf16.mxu0 0
        %1785 = vmatpush2.bf16.msra.mxu0 0
        %1786 = vmatprep.subr.bf16.mxu0 0
        %1787 = vmatpush2.bf16.msra.mxu0 0
        %1788 = vmatprep.mubr.bf16.mxu0 0
        %1789 = vmatmul.mubr.bf16.gmra.mxu0 %v1754
        %v1790 = vpop.f32.mrf.mxu0
        %v1791 = vadd.f32 %v1739, %v1790
        %v1792 = vpop.f32.mrf.mxu0
        %v1793 = vpop.f32.mrf.mxu0
        %v1794 = vpop.f32.mrf.mxu0
        %1795 = vdwg.mxu0
        %v1796 = vmul.f32 %v1791, 1.702
        %v1797 = vxor.u32 %v1796, 2147483648
        %v1798 = vmul.f32 %v1797, 1.442695
        %v1799 = vpow.pop %v1798
        %v1800 = vadd.f32 %v1799, 1.0
        %v1801 = vrcp.pop %v1800
        %v1802 = vmul.f32 1.0, %v1801
        %v1803 = vmul.f32 %v1791, %v1802
        %v1804 = vpack.c.bf16 %v1803, %v1803
        %v1805 = vld [vmem:[%s12] sm:$0xf]
        %v1806 = vld [vmem:[%s12 + $0x4] sm:$0xf]
        %v1807 = vld [vmem:[%s12 + $0x8] sm:$0xf]
        %v1808 = vld [vmem:[%s12 + $0xc] sm:$0xf]
        %v1809 = vld [vmem:[%s12 + $0x10] sm:$0xf]
        %v1810 = vld [vmem:[%s12 + $0x14] sm:$0xf]
        %v1811 = vld [vmem:[%s12 + $0x18] sm:$0xf]
        %v1812 = vld [vmem:[%s12 + $0x1c] sm:$0xf]
        %v1813 = vld [vmem:[%s12 + $0x20] sm:$0xf]
        %v1814 = vld [vmem:[%s12 + $0x24] sm:$0xf]
        %v1815 = vld [vmem:[%s12 + $0x28] sm:$0xf]
        %v1816 = vld [vmem:[%s12 + $0x2c] sm:$0xf]
        %v1817 = vld [vmem:[%s12 + $0x30] sm:$0xf]
        %v1818 = vld [vmem:[%s12 + $0x34] sm:$0xf]
        %v1819 = vld [vmem:[%s12 + $0x38] sm:$0xf]
        %v1820 = vld [vmem:[%s12 + $0x3c] sm:$0xf]
        %v1821 = vld [vmem:[%s13] sm:$0x1]
        %v1823 = vlaneseq
        %v1824 = vshrl.u32 %v1823, 7
        %v1825 = vsub.s32 0, %v1824
        %v1826 = vrot.slane %v1821, %v1825
        %v1844 = vunpack.c.l.b16 %v1805
        %v1845 = vunpack.c.l.b16 %v1806
        %v1846 = vunpack.c.l.b16 %v1807
        %v1847 = vunpack.c.l.b16 %v1808
        %v1848 = vunpack.c.l.b16 %v1809
        %v1849 = vunpack.c.l.b16 %v1810
        %v1850 = vunpack.c.l.b16 %v1811
        %v1851 = vunpack.c.l.b16 %v1812
        %v1852 = vunpack.c.l.b16 %v1813
        %v1853 = vunpack.c.l.b16 %v1814
        %v1854 = vunpack.c.l.b16 %v1815
        %v1855 = vunpack.c.l.b16 %v1816
        %v1856 = vunpack.c.l.b16 %v1817
        %v1857 = vunpack.c.l.b16 %v1818
        %v1858 = vunpack.c.l.b16 %v1819
        %v1859 = vunpack.c.l.b16 %v1820
        %v1860 = vpack.c.b16 %v1845, %v1844
        %v1861 = vpack.c.b16 %v1847, %v1846
        %v1862 = vpack.c.b16 %v1849, %v1848
        %v1863 = vpack.c.b16 %v1851, %v1850
        %v1864 = vpack.c.b16 %v1853, %v1852
        %v1865 = vpack.c.b16 %v1855, %v1854
        %v1866 = vpack.c.b16 %v1857, %v1856
        %v1867 = vpack.c.b16 %v1859, %v1858
        %1876 = vmatprep.subr.bf16.mxu0 0
        %1877 = vmatpush1.bf16.msra.mxu0 %v1867
        %1878 = vmatprep.subr.bf16.mxu0 0
        %1879 = vmatpush1.bf16.msra.mxu0 %v1866
        %1880 = vmatprep.subr.bf16.mxu0 0
        %1881 = vmatpush1.bf16.msra.mxu0 %v1865
        %1882 = vmatprep.subr.bf16.mxu0 0
        %1883 = vmatpush1.bf16.msra.mxu0 %v1864
        %1884 = vmatprep.subr.bf16.mxu0 0
        %1885 = vmatpush1.bf16.msra.mxu0 %v1863
        %1886 = vmatprep.subr.bf16.mxu0 0
        %1887 = vmatpush1.bf16.msra.mxu0 %v1862
        %1888 = vmatprep.subr.bf16.mxu0 0
        %1889 = vmatpush1.bf16.msra.mxu0 %v1861
        %1890 = vmatprep.subr.bf16.mxu0 0
        %1891 = vmatpush1.bf16.msra.mxu0 %v1860
        %1892 = vmatprep.subr.bf16.mxu0 0
        %1893 = vmatpush2.bf16.msra.mxu0 0
        %1894 = vmatprep.subr.bf16.mxu0 0
        %1895 = vmatpush2.bf16.msra.mxu0 0
        %1896 = vmatprep.subr.bf16.mxu0 0
        %1897 = vmatpush2.bf16.msra.mxu0 0
        %1898 = vmatprep.subr.bf16.mxu0 0
        %1899 = vmatpush2.bf16.msra.mxu0 0
        %1900 = vmatprep.subr.bf16.mxu0 0
        %1901 = vmatpush2.bf16.msra.mxu0 0
        %1902 = vmatprep.subr.bf16.mxu0 0
        %1903 = vmatpush2.bf16.msra.mxu0 0
        %1904 = vmatprep.subr.bf16.mxu0 0
        %1905 = vmatpush2.bf16.msra.mxu0 0
        %1906 = vmatprep.subr.bf16.mxu0 0
        %1907 = vmatpush2.bf16.msra.mxu0 0
        %1908 = vmatprep.mubr.bf16.mxu0 0
        %1909 = vmatmul.mubr.bf16.gmra.mxu0 %v1804
        %v1910 = vpop.f32.mrf.mxu0
        %v1911 = vadd.f32 %v1826, %v1910
        %v1912 = vpop.f32.mrf.mxu0
        %v1913 = vpop.f32.mrf.mxu0
        %v1914 = vpop.f32.mrf.mxu0
        %1915 = vdwg.mxu0
        %v1916 = vadd.f32 %v1699, %v1911
        %1917 = vst.msk [vmem:[%s497] sm:$0xff] %vm511, %v1916
        %s1918 = sand.u32 %s342, 1
        %s1919 = scalar_lea.sflag [#allocation4], %s1918
        %s1920 = sand.u32 %s342, 1
        %s1921 = smul.addr %s1920, 8
        %s1922 = scalar_lea.vmem [#allocation7], %s1921
        // Predicated region
        $region85: #{tpu_custom_call.1} parent=75 // pred_check
          %p1923 = pneg %p352
        $region86: #{tpu_custom_call.1} parent=75 // pred_check_branch
          %1925 = sbr.rel (%p1923) target = $region88
        $region87: #{tpu_custom_call.1} parent=75 // pred_region
          %s1927 = ssub.s32 128, 128
          %1928 = vsyncadd %s1919, %s1927
          %s1929 = smul.addr %s30, 128
          %s1930 = scalar_lea.hbm %s14, %s1929
          %s1932 = sshll.u32 %s1922, 4
          %s1933 = int_to_ptr.vmem [resolvable:$true] %s1932
          %1935 = dma.vmem_to_hbm [thread:$0]  %s1933, 128, %s1930, %s1919
        $region88: #{tpu_custom_call.1} parent=75 // pred_fallthru
          _
      $region76: #{tpu_custom_call.1} parent=5 // pred_fallthru
        _
      %p1936 = scmp.le.s32.totalorder 2, %s25
      // Predicated region
      $region89: #{tpu_custom_call.1} parent=5 // pred_check
        %p1937 = pneg %p1936
      $region90: #{tpu_custom_call.1} parent=5 // pred_check_branch
        %1939 = sbr.rel (%p1937) target = $region92
      $region91: #{tpu_custom_call.1} parent=5 // pred_region
        %s1940 = ssub.s32 %s25, 2
        // Predicated region
        $region93: #{tpu_custom_call.1} parent=91 // pred_check
          %p1941 = pneg %p358
        $region94: #{tpu_custom_call.1} parent=91 // pred_check_branch
          %1943 = sbr.rel (%p1941) target = $region96
        $region95: #{tpu_custom_call.1} parent=91 // pred_region
          %s1944 = sand.u32 %s343, 1
          %s1945 = scalar_lea.sflag [#allocation4], %s1944
          %s1946 = sand.u32 %s343, 1
          %s1947 = smul.addr %s1946, 8
          %s1948 = scalar_lea.vmem [#allocation7], %s1947
          %1949 = dma.done %s1945, 128
        $region96: #{tpu_custom_call.1} parent=91 // pred_fallthru
          _
      $region92: #{tpu_custom_call.1} parent=5 // pred_fallthru
        _
    $region6: #{tpu_custom_call.1} parent=1 // loop_footer
      %s29 = sadd.s32 1, %s25
    $region7: #{tpu_custom_call.1} parent=1 // loop_footer_branch
      %24 = sbr.rel target = $region3
    $region8: #{tpu_custom_call.1} parent=1 // loop_exit
      _
    %1950 = vsyncpa [#allocation3], 1
    %s1951 = scalar_lea.sflag [#allocation3], 1
    %1952 = vsyncpa %s1951, 1
    %1953 = vsyncpa [#allocation6], 1
    %1954 = vsyncpa [#allocation4], 1
    %s1955 = scalar_lea.sflag [#allocation4], 1
    %1956 = vsyncpa %s1955, 1

// kernel: tpu_custom_call.1
$region0: #{tpu_custom_call.1}
  #allocation0 [shape = 'u32[]', space=smem, size = 0x4, offset = 0x4, fixed_abs, tag = 'smem constant byte address 0x4 - core index']
  #allocation1 [shape = 'u32[144,128]{1,0:T(1,128)}', space=vmem, size = 0x12000, scoped, tag = 'internal scratch']
  %s0 = inlined_call_operand.vmem [shape: f32[2,8,32], index: 0, kind: input, shape index: {}]
  %s1 = inlined_call_operand.vmem [shape: f32[2,8,8], index: 1, kind: input, shape index: {}]
  %s2 = inlined_call_operand.vmem [shape: f32[1,32], index: 2, kind: input, shape index: {}]
  %s3 = inlined_call_operand.vmem [shape: f32[1,32], index: 3, kind: input, shape index: {}]
  %s4 = inlined_call_operand.vmem [shape: bf16[32,96], index: 4, kind: input, shape index: {}]
  %s5 = inlined_call_operand.vmem [shape: f32[1,96], index: 5, kind: input, shape index: {}]
  %s6 = inlined_call_operand.vmem [shape: bf16[32,32], index: 6, kind: input, shape index: {}]
  %s7 = inlined_call_operand.vmem [shape: f32[1,32], index: 7, kind: input, shape index: {}]
  %s8 = inlined_call_operand.vmem [shape: f32[1,32], index: 8, kind: input, shape index: {}]
  %s9 = inlined_call_operand.hbm [shape: f32[1,32], index: 9, kind: input, shape index: {}]
  %s10 = inlined_call_operand.vmem [shape: bf16[32,128], index: 10, kind: input, shape index: {}]
  %s11 = inlined_call_operand.hbm [shape: f32[1,128], index: 11, kind: input, shape index: {}]
  %s12 = inlined_call_operand.vmem [shape: bf16[128,32], index: 12, kind: input, shape index: {}]
  %s13 = inlined_call_operand.vmem [shape: f32[1,32], index: 13, kind: input, shape index: {}]
  %s14 = inlined_call_operand.hbm [shape: f32[2,8,32], index: 14, kind: output, shape index: {}]
  %s15 = sld [smem:[#allocation0]]
  $region97: #{tpu_custom_call.1} parent=0
    _
  %s17 = ssub.s32 1, %s15
  %s18 = scalar_select 0, %s17, %s15
  $region1: #{tpu_custom_call.1} parent=0
    #allocation2 [shape = 'u8[512]{0}', space=vmem, size = 0x400, scoped, tag = 'input window, operand 9, single buffered']
    #allocation3 [shape = 's32[2]{0}', space=sflag, size = 0x8, scoped, tag = 'scoped memory for tpu_custom_call.1']
    #allocation4 [shape = 's32[2]{0}', space=sflag, size = 0x8, scoped, tag = 'scoped memory for tpu_custom_call.1']
    #allocation5 [shape = 'u8[512]{0}', space=vmem, size = 0x400, scoped, tag = 'input window, operand 11, single buffered']
    #allocation6 [shape = 's32[1]{0}', space=sflag, size = 0x4, scoped, tag = 'scoped memory for tpu_custom_call.1']
    #allocation7 [shape = 'u8[8192]{0}', space=vmem, size = 0x2000, scoped, tag = 'output window, operand 0']
    %19 = vsyncpa [#allocation3], 0
    %20 = vsyncpa [#allocation6], 0
    %21 = vsyncpa [#allocation4], 0
    %s22 = scalar_lea.sflag [#allocation4], 1
    %23 = vsyncpa %s22, 0
    loop: start=0, step=1, limit=4
    $region2: #{tpu_custom_call.1} parent=1 // loop_pre_header
      _
    $region3: #{tpu_custom_call.1} parent=1 // loop_header
      %s25 = sphi 0, %s29
      %p26 = scmp.ge.s32.totalorder %s25, 4
      %s35 = sphi 0, %s37
      %s38 = sphi 0, %s35
      %s39 = sphi 0, %s38
      %s55 = sphi 0, %s39
      %s61 = sphi 0, %s63
      %s64 = sphi 0, %s61
      %s65 = sphi 0, %s64
      %s81 = sphi 0, %s65
      %s85 = sphi 0, %s85
      %s87 = sphi 0, %s85
      %s88 = sphi 0, %s87
      %s102 = sphi 0, %s88
      %s106 = sphi 0, %s106
      %s108 = sphi 0, %s106
      %s109 = sphi 0, %s108
      %s123 = sphi 0, %s109
      %s127 = sphi 0, %s127
      %s129 = sphi 0, %s127
      %s130 = sphi 0, %s129
      %s144 = sphi 0, %s130
      %s148 = sphi 0, %s148
      %s150 = sphi 0, %s148
      %s151 = sphi 0, %s150
      %s165 = sphi 0, %s151
      %s169 = sphi 0, %s169
      %s171 = sphi 0, %s169
      %s172 = sphi 0, %s171
      %s186 = sphi 0, %s172
      %s190 = sphi 0, %s190
      %s192 = sphi 0, %s190
      %s193 = sphi 0, %s192
      %s207 = sphi 0, %s193
      %s211 = sphi 0, %s211
      %s213 = sphi 0, %s211
      %s214 = sphi 0, %s213
      %s228 = sphi 0, %s214
      %s232 = sphi 0, %s232
      %s234 = sphi 0, %s232
      %s235 = sphi 0, %s234
      %s249 = sphi 0, %s235
      %s253 = sphi 0, %s253
      %s255 = sphi 0, %s253
      %s256 = sphi 0, %s255
      %s270 = sphi 0, %s256
      %s274 = sphi 0, %s274
      %s276 = sphi 0, %s274
      %s277 = sphi 0, %s276
      %s291 = sphi 0, %s277
      %s295 = sphi 0, %s295
      %s297 = sphi 0, %s295
      %s298 = sphi 0, %s297
      %s312 = sphi 0, %s298
      %s316 = sphi 0, %s316
      %s318 = sphi 0, %s316
      %s319 = sphi 0, %s318
      %s333 = sphi 0, %s319
      %s339 = sphi 0, %s341
      %s342 = sphi 0, %s339
      %s343 = sphi 0, %s342
      %s359 = sphi 0, %s343
    $region4: #{tpu_custom_call.1} parent=1 // loop_header_branch
      %28 = sbr.rel (%p26) target = $region8
    $region5: #{tpu_custom_call.1} parent=1 // loop_body
      %s30 = ssub.s32 %s25, 1
      %s31 = ssub.s32 %s25, 2
      %s32 = sadd.s32 %s25, 1
      %s33 = ssub.s32 %s25, %s32
      %p34 = scmp.eq.s32.totalorder %s33, 0
      %s36 = sadd.s32 %s35, 1
      %s37 = scalar_select %p34, %s35, %s36
      %p40 = pneg %p34
      %p41 = scmp.eq.s32.totalorder %s25, 1
      %p42 = por %p40, %p41
      %p43 = scmp.ne.s32.totalorder %s35, %s38
      %p44 = scmp.eq.s32.totalorder %s25, 0
      %p45 = por %p43, %p44
      %p46 = scmp.ne.s32.totalorder %s35, %s38
      %p47 = scmp.eq.s32.totalorder %s30, 1
      %p48 = por %p46, %p47
      %p49 = scmp.ne.s32.totalorder %s38, %s39
      %p50 = scmp.eq.s32.totalorder %s30, 0
      %p51 = por %p49, %p50
      %p52 = scmp.ne.s32.totalorder %s38, %s39
      %p53 = scmp.eq.s32.totalorder %s31, 1
      %p54 = por %p52, %p53
      %p56 = scmp.ne.s32.totalorder %s39, %s55
      %p57 = scmp.eq.s32.totalorder %s31, 0
      %p58 = por %p56, %p57
      %s59 = ssub.s32 %s25, %s32
      %p60 = scmp.eq.s32.totalorder %s59, 0
      %s62 = sadd.s32 %s61, 1
      %s63 = scalar_select %p60, %s61, %s62
      %p66 = pneg %p60
      %p67 = scmp.eq.s32.totalorder %s25, 1
      %p68 = por %p66, %p67
      %p69 = scmp.ne.s32.totalorder %s61, %s64
      %p70 = scmp.eq.s32.totalorder %s25, 0
      %p71 = por %p69, %p70
      %p72 = scmp.ne.s32.totalorder %s61, %s64
      %p73 = scmp.eq.s32.totalorder %s30, 1
      %p74 = por %p72, %p73
      %p75 = scmp.ne.s32.totalorder %s64, %s65
      %p76 = scmp.eq.s32.totalorder %s30, 0
      %p77 = por %p75, %p76
      %p78 = scmp.ne.s32.totalorder %s64, %s65
      %p79 = scmp.eq.s32.totalorder %s31, 1
      %p80 = por %p78, %p79
      %p82 = scmp.ne.s32.totalorder %s65, %s81
      %p83 = scmp.eq.s32.totalorder %s31, 0
      %p84 = por %p82, %p83
      %s86 = sadd.s32 %s85, 1
      %p89 = scmp.eq.s32.totalorder %s25, 1
      %p90 = scmp.ne.s32.totalorder %s85, %s87
      %p91 = scmp.eq.s32.totalorder %s25, 0
      %p92 = por %p90, %p91
      %p93 = scmp.ne.s32.totalorder %s85, %s87
      %p94 = scmp.eq.s32.totalorder %s30, 1
      %p95 = por %p93, %p94
      %p96 = scmp.ne.s32.totalorder %s87, %s88
      %p97 = scmp.eq.s32.totalorder %s30, 0
      %p98 = por %p96, %p97
      %p99 = scmp.ne.s32.totalorder %s87, %s88
      %p100 = scmp.eq.s32.totalorder %s31, 1
      %p101 = por %p99, %p100
      %p103 = scmp.ne.s32.totalorder %s88, %s102
      %p104 = scmp.eq.s32.totalorder %s31, 0
      %p105 = por %p103, %p104
      %s107 = sadd.s32 %s106, 1
      %p110 = scmp.eq.s32.totalorder %s25, 1
      %p111 = scmp.ne.s32.totalorder %s106, %s108
      %p112 = scmp.eq.s32.totalorder %s25, 0
      %p113 = por %p111, %p112
      %p114 = scmp.ne.s32.totalorder %s106, %s108
      %p115 = scmp.eq.s32.totalorder %s30, 1
      %p116 = por %p114, %p115
      %p117 = scmp.ne.s32.totalorder %s108, %s109
      %p118 = scmp.eq.s32.totalorder %s30, 0
      %p119 = por %p117, %p118
      %p120 = scmp.ne.s32.totalorder %s108, %s109
      %p121 = scmp.eq.s32.totalorder %s31, 1
      %p122 = por %p120, %p121
      %p124 = scmp.ne.s32.totalorder %s109, %s123
      %p125 = scmp.eq.s32.totalorder %s31, 0
      %p126 = por %p124, %p125
      %s128 = sadd.s32 %s127, 1
      %p131 = scmp.eq.s32.totalorder %s25, 1
      %p132 = scmp.ne.s32.totalorder %s127, %s129
      %p133 = scmp.eq.s32.totalorder %s25, 0
      %p134 = por %p132, %p133
      %p135 = scmp.ne.s32.totalorder %s127, %s129
      %p136 = scmp.eq.s32.totalorder %s30, 1
      %p137 = por %p135, %p136
      %p138 = scmp.ne.s32.totalorder %s129, %s130
      %p139 = scmp.eq.s32.totalorder %s30, 0
      %p140 = por %p138, %p139
      %p141 = scmp.ne.s32.totalorder %s129, %s130
      %p142 = scmp.eq.s32.totalorder %s31, 1
      %p143 = por %p141, %p142
      %p145 = scmp.ne.s32.totalorder %s130, %s144
      %p146 = scmp.eq.s32.totalorder %s31, 0
      %p147 = por %p145, %p146
      %s149 = sadd.s32 %s148, 1
      %p152 = scmp.eq.s32.totalorder %s25, 1
      %p153 = scmp.ne.s32.totalorder %s148, %s150
      %p154 = scmp.eq.s32.totalorder %s25, 0
      %p155 = por %p153, %p154
      %p156 = scmp.ne.s32.totalorder %s148, %s150
      %p157 = scmp.eq.s32.totalorder %s30, 1
      %p158 = por %p156, %p157
      %p159 = scmp.ne.s32.totalorder %s150, %s151
      %p160 = scmp.eq.s32.totalorder %s30, 0
      %p161 = por %p159, %p160
      %p162 = scmp.ne.s32.totalorder %s150, %s151
      %p163 = scmp.eq.s32.totalorder %s31, 1
      %p164 = por %p162, %p163
      %p166 = scmp.ne.s32.totalorder %s151, %s165
      %p167 = scmp.eq.s32.totalorder %s31, 0
      %p168 = por %p166, %p167
      %s170 = sadd.s32 %s169, 1
      %p173 = scmp.eq.s32.totalorder %s25, 1
      %p174 = scmp.ne.s32.totalorder %s169, %s171
      %p175 = scmp.eq.s32.totalorder %s25, 0
      %p176 = por %p174, %p175
      %p177 = scmp.ne.s32.totalorder %s169, %s171
      %p178 = scmp.eq.s32.totalorder %s30, 1
      %p179 = por %p177, %p178
      %p180 = scmp.ne.s32.totalorder %s171, %s172
      %p181 = scmp.eq.s32.totalorder %s30, 0
      %p182 = por %p180, %p181
      %p183 = scmp.ne.s32.totalorder %s171, %s172
      %p184 = scmp.eq.s32.totalorder %s31, 1
      %p185 = por %p183, %p184
      %p187 = scmp.ne.s32.totalorder %s172, %s186
      %p188 = scmp.eq.s32.totalorder %s31, 0
      %p189 = por %p187, %p188
      %s191 = sadd.s32 %s190, 1
      %p194 = scmp.eq.s32.totalorder %s25, 1
      %p195 = scmp.ne.s32.totalorder %s190, %s192
      %p196 = scmp.eq.s32.totalorder %s25, 0
      %p197 = por %p195, %p196
      %p198 = scmp.ne.s32.totalorder %s190, %s192
      %p199 = scmp.eq.s32.totalorder %s30, 1
      %p200 = por %p198, %p199
      %p201 = scmp.ne.s32.totalorder %s192, %s193
      %p202 = scmp.eq.s32.totalorder %s30, 0
      %p203 = por %p201, %p202
      %p204 = scmp.ne.s32.totalorder %s192, %s193
      %p205 = scmp.eq.s32.totalorder %s31, 1
      %p206 = por %p204, %p205
      %p208 = scmp.ne.s32.totalorder %s193, %s207
      %p209 = scmp.eq.s32.totalorder %s31, 0
      %p210 = por %p208, %p209
      %s212 = sadd.s32 %s211, 1
      %p215 = scmp.eq.s32.totalorder %s25, 1
      %p216 = scmp.ne.s32.totalorder %s211, %s213
      %p217 = scmp.eq.s32.totalorder %s25, 0
      %p218 = por %p216, %p217
      %p219 = scmp.ne.s32.totalorder %s211, %s213
      %p220 = scmp.eq.s32.totalorder %s30, 1
      %p221 = por %p219, %p220
      %p222 = scmp.ne.s32.totalorder %s213, %s214
      %p223 = scmp.eq.s32.totalorder %s30, 0
      %p224 = por %p222, %p223
      %p225 = scmp.ne.s32.totalorder %s213, %s214
      %p226 = scmp.eq.s32.totalorder %s31, 1
      %p227 = por %p225, %p226
      %p229 = scmp.ne.s32.totalorder %s214, %s228
      %p230 = scmp.eq.s32.totalorder %s31, 0
      %p231 = por %p229, %p230
      %s233 = sadd.s32 %s232, 1
      %p236 = scmp.eq.s32.totalorder %s25, 1
      %p237 = scmp.ne.s32.totalorder %s232, %s234
      %p238 = scmp.eq.s32.totalorder %s25, 0
      %p239 = por %p237, %p238
      %p240 = scmp.ne.s32.totalorder %s232, %s234
      %p241 = scmp.eq.s32.totalorder %s30, 1
      %p242 = por %p240, %p241
      %p243 = scmp.ne.s32.totalorder %s234, %s235
      %p244 = scmp.eq.s32.totalorder %s30, 0
      %p245 = por %p243, %p244
      %p246 = scmp.ne.s32.totalorder %s234, %s235
      %p247 = scmp.eq.s32.totalorder %s31, 1
      %p248 = por %p246, %p247
      %p250 = scmp.ne.s32.totalorder %s235, %s249
      %p251 = scmp.eq.s32.totalorder %s31, 0
      %p252 = por %p250, %p251
      %s254 = sadd.s32 %s253, 1
      %p257 = scmp.eq.s32.totalorder %s25, 1
      %p258 = scmp.ne.s32.totalorder %s253, %s255
      %p259 = scmp.eq.s32.totalorder %s25, 0
      %p260 = por %p258, %p259
      %p261 = scmp.ne.s32.totalorder %s253, %s255
      %p262 = scmp.eq.s32.totalorder %s30, 1
      %p263 = por %p261, %p262
      %p264 = scmp.ne.s32.totalorder %s255, %s256
      %p265 = scmp.eq.s32.totalorder %s30, 0
      %p266 = por %p264, %p265
      %p267 = scmp.ne.s32.totalorder %s255, %s256
      %p268 = scmp.eq.s32.totalorder %s31, 1
      %p269 = por %p267, %p268
      %p271 = scmp.ne.s32.totalorder %s256, %s270
      %p272 = scmp.eq.s32.totalorder %s31, 0
      %p273 = por %p271, %p272
      %s275 = sadd.s32 %s274, 1
      %p278 = scmp.eq.s32.totalorder %s25, 1
      %p279 = scmp.ne.s32.totalorder %s274, %s276
      %p280 = scmp.eq.s32.totalorder %s25, 0
      %p281 = por %p279, %p280
      %p282 = scmp.ne.s32.totalorder %s274, %s276
      %p283 = scmp.eq.s32.totalorder %s30, 1
      %p284 = por %p282, %p283
      %p285 = scmp.ne.s32.totalorder %s276, %s277
      %p286 = scmp.eq.s32.totalorder %s30, 0
      %p287 = por %p285, %p286
      %p288 = scmp.ne.s32.totalorder %s276, %s277
      %p289 = scmp.eq.s32.totalorder %s31, 1
      %p290 = por %p288, %p289
      %p292 = scmp.ne.s32.totalorder %s277, %s291
      %p293 = scmp.eq.s32.totalorder %s31, 0
      %p294 = por %p292, %p293
      %s296 = sadd.s32 %s295, 1
      %p299 = scmp.eq.s32.totalorder %s25, 1
      %p300 = scmp.ne.s32.totalorder %s295, %s297
      %p301 = scmp.eq.s32.totalorder %s25, 0
      %p302 = por %p300, %p301
      %p303 = scmp.ne.s32.totalorder %s295, %s297
      %p304 = scmp.eq.s32.totalorder %s30, 1
      %p305 = por %p303, %p304
      %p306 = scmp.ne.s32.totalorder %s297, %s298
      %p307 = scmp.eq.s32.totalorder %s30, 0
      %p308 = por %p306, %p307
      %p309 = scmp.ne.s32.totalorder %s297, %s298
      %p310 = scmp.eq.s32.totalorder %s31, 1
      %p311 = por %p309, %p310
      %p313 = scmp.ne.s32.totalorder %s298, %s312
      %p314 = scmp.eq.s32.totalorder %s31, 0
      %p315 = por %p313, %p314
      %s317 = sadd.s32 %s316, 1
      %p320 = scmp.eq.s32.totalorder %s25, 1
      %p321 = scmp.ne.s32.totalorder %s316, %s318
      %p322 = scmp.eq.s32.totalorder %s25, 0
      %p323 = por %p321, %p322
      %p324 = scmp.ne.s32.totalorder %s316, %s318
      %p325 = scmp.eq.s32.totalorder %s30, 1
      %p326 = por %p324, %p325
      %p327 = scmp.ne.s32.totalorder %s318, %s319
      %p328 = scmp.eq.s32.totalorder %s30, 0
      %p329 = por %p327, %p328
      %p330 = scmp.ne.s32.totalorder %s318, %s319
      %p331 = scmp.eq.s32.totalorder %s31, 1
      %p332 = por %p330, %p331
      %p334 = scmp.ne.s32.totalorder %s319, %s333
      %p335 = scmp.eq.s32.totalorder %s31, 0
      %p336 = por %p334, %p335
      %s337 = ssub.s32 %s25, %s32
      %p338 = scmp.eq.s32.totalorder %s337, 0
      %s340 = sadd.s32 %s339, 1
      %s341 = scalar_select %p338, %s339, %s340
      %p344 = pneg %p338
      %p345 = scmp.eq.s32.totalorder %s25, 1
      %p346 = por %p344, %p345
      %p347 = scmp.ne.s32.totalorder %s339, %s342
      %p348 = scmp.eq.s32.totalorder %s25, 0
      %p349 = por %p347, %p348
      %p350 = scmp.ne.s32.totalorder %s339, %s342
      %p351 = scmp.eq.s32.totalorder %s30, 1
      %p352 = por %p350, %p351
      %p353 = scmp.ne.s32.totalorder %s342, %s343
      %p354 = scmp.eq.s32.totalorder %s30, 0
      %p355 = por %p353, %p354
      %p356 = scmp.ne.s32.totalorder %s342, %s343
      %p357 = scmp.eq.s32.totalorder %s31, 1
      %p358 = por %p356, %p357
      %p360 = scmp.ne.s32.totalorder %s343, %s359
      %p361 = scmp.eq.s32.totalorder %s31, 0
      %p362 = por %p360, %p361
      %p363 = scmp.le.s32.totalorder 1, %s25
      %p364 = scmp.lt.s32.totalorder %s25, 3
      %p365 = pnand %p363, %p364
      %p366 = pneg %p365
      // Predicated region
      $region9: #{tpu_custom_call.1} parent=5 // pred_check
        _
      $region10: #{tpu_custom_call.1} parent=5 // pred_check_branch
        %368 = sbr.rel (%p365) target = $region12
      $region11: #{tpu_custom_call.1} parent=5 // pred_region
        %s369 = ssub.s32 %s25, 1
        // Predicated region
        $region13: #{tpu_custom_call.1} parent=11 // pred_check
          %p370 = pneg %p98
        $region14: #{tpu_custom_call.1} parent=11 // pred_check_branch
          %372 = sbr.rel (%p370) target = $region16
        $region15: #{tpu_custom_call.1} parent=11 // pred_region
          _
        $region16: #{tpu_custom_call.1} parent=11 // pred_fallthru
          _
        // Predicated region
        $region17: #{tpu_custom_call.1} parent=11 // pred_check
          %p373 = pneg %p119
        $region18: #{tpu_custom_call.1} parent=11 // pred_check_branch
          %375 = sbr.rel (%p373) target = $region20
        $region19: #{tpu_custom_call.1} parent=11 // pred_region
          _
        $region20: #{tpu_custom_call.1} parent=11 // pred_fallthru
          _
        // Predicated region
        $region21: #{tpu_custom_call.1} parent=11 // pred_check
          %p376 = pneg %p140
        $region22: #{tpu_custom_call.1} parent=11 // pred_check_branch
          %378 = sbr.rel (%p376) target = $region24
        $region23: #{tpu_custom_call.1} parent=11 // pred_region
          _
        $region24: #{tpu_custom_call.1} parent=11 // pred_fallthru
          _
        // Predicated region
        $region25: #{tpu_custom_call.1} parent=11 // pred_check
          %p379 = pneg %p161
        $region26: #{tpu_custom_call.1} parent=11 // pred_check_branch
          %381 = sbr.rel (%p379) target = $region28
        $region27: #{tpu_custom_call.1} parent=11 // pred_region
          _
        $region28: #{tpu_custom_call.1} parent=11 // pred_fallthru
          _
        // Predicated region
        $region29: #{tpu_custom_call.1} parent=11 // pred_check
          %p382 = pneg %p182
        $region30: #{tpu_custom_call.1} parent=11 // pred_check_branch
          %384 = sbr.rel (%p382) target = $region32
        $region31: #{tpu_custom_call.1} parent=11 // pred_region
          _
        $region32: #{tpu_custom_call.1} parent=11 // pred_fallthru
          _
        // Predicated region
        $region33: #{tpu_custom_call.1} parent=11 // pred_check
          %p385 = pneg %p203
        $region34: #{tpu_custom_call.1} parent=11 // pred_check_branch
          %387 = sbr.rel (%p385) target = $region36
        $region35: #{tpu_custom_call.1} parent=11 // pred_region
          _
        $region36: #{tpu_custom_call.1} parent=11 // pred_fallthru
          _
        // Predicated region
        $region37: #{tpu_custom_call.1} parent=11 // pred_check
          %p388 = pneg %p224
        $region38: #{tpu_custom_call.1} parent=11 // pred_check_branch
          %390 = sbr.rel (%p388) target = $region40
        $region39: #{tpu_custom_call.1} parent=11 // pred_region
          _
        $region40: #{tpu_custom_call.1} parent=11 // pred_fallthru
          _
        // Predicated region
        $region41: #{tpu_custom_call.1} parent=11 // pred_check
          %p391 = pneg %p245
        $region42: #{tpu_custom_call.1} parent=11 // pred_check_branch
          %393 = sbr.rel (%p391) target = $region44
        $region43: #{tpu_custom_call.1} parent=11 // pred_region
          %s395 = ssub.s32 16, 16
          %396 = vsyncadd [#allocation3], %s395
          %s398 = sshll.u32 [#allocation2], 4
          %s399 = int_to_ptr.vmem [resolvable:$true] %s398
          %401 = dma.hbm_to_vmem [thread:$0]  %s9, 16, %s399, [#allocation3]
        $region44: #{tpu_custom_call.1} parent=11 // pred_fallthru
          _
        // Predicated region
        $region45: #{tpu_custom_call.1} parent=11 // pred_check
          %p402 = pneg %p266
        $region46: #{tpu_custom_call.1} parent=11 // pred_check_branch
          %404 = sbr.rel (%p402) target = $region48
        $region47: #{tpu_custom_call.1} parent=11 // pred_region
          _
        $region48: #{tpu_custom_call.1} parent=11 // pred_fallthru
          _
        // Predicated region
        $region49: #{tpu_custom_call.1} parent=11 // pred_check
          %p405 = pneg %p287
        $region50: #{tpu_custom_call.1} parent=11 // pred_check_branch
          %407 = sbr.rel (%p405) target = $region52
        $region51: #{tpu_custom_call.1} parent=11 // pred_region
          %s409 = ssub.s32 16, 16
          %410 = vsyncadd [#allocation6], %s409
          %s412 = sshll.u32 [#allocation5], 4
          %s413 = int_to_ptr.vmem [resolvable:$true] %s412
          %415 = dma.hbm_to_vmem [thread:$0]  %s11, 16, %s413, [#allocation6]
        $region52: #{tpu_custom_call.1} parent=11 // pred_fallthru
          _
        // Predicated region
        $region53: #{tpu_custom_call.1} parent=11 // pred_check
          %p416 = pneg %p308
        $region54: #{tpu_custom_call.1} parent=11 // pred_check_branch
          %418 = sbr.rel (%p416) target = $region56
        $region55: #{tpu_custom_call.1} parent=11 // pred_region
          _
        $region56: #{tpu_custom_call.1} parent=11 // pred_fallthru
          _
        // Predicated region
        $region57: #{tpu_custom_call.1} parent=11 // pred_check
          %p419 = pneg %p329
        $region58: #{tpu_custom_call.1} parent=11 // pred_check_branch
          %421 = sbr.rel (%p419) target = $region60
        $region59: #{tpu_custom_call.1} parent=11 // pred_region
          _
        $region60: #{tpu_custom_call.1} parent=11 // pred_fallthru
          _
      $region12: #{tpu_custom_call.1} parent=5 // pred_fallthru
        _
      %p422 = scmp.lt.s32.totalorder %s25, 2
      // Predicated region
      $region61: #{tpu_custom_call.1} parent=5 // pred_check
        %p423 = pneg %p422
      $region62: #{tpu_custom_call.1} parent=5 // pred_check_branch
        %425 = sbr.rel (%p423) target = $region64
      $region63: #{tpu_custom_call.1} parent=5 // pred_region
        // Predicated region
        $region65: #{tpu_custom_call.1} parent=63 // pred_check
          %p426 = pneg %p45
        $region66: #{tpu_custom_call.1} parent=63 // pred_check_branch
          %428 = sbr.rel (%p426) target = $region68
        $region67: #{tpu_custom_call.1} parent=63 // pred_region
          %p429 = scmp.lt.s32.totalorder %s25, 1
          %s430 = scalar_select %p429, %s25, 1
          %s431 = smul.addr %s430, 8
          %s432 = scalar_lea.vmem %s0, %s431
        $region68: #{tpu_custom_call.1} parent=63 // pred_fallthru
          _
        // Predicated region
        $region69: #{tpu_custom_call.1} parent=63 // pred_check
          %p433 = pneg %p71
        $region70: #{tpu_custom_call.1} parent=63 // pred_check_branch
          %435 = sbr.rel (%p433) target = $region72
        $region71: #{tpu_custom_call.1} parent=63 // pred_region
          %p436 = scmp.lt.s32.totalorder %s25, 1
          %s437 = scalar_select %p436, %s25, 1
          %s438 = smul.addr %s437, 8
          %s439 = scalar_lea.vmem %s1, %s438
        $region72: #{tpu_custom_call.1} parent=63 // pred_fallthru
          _
      $region64: #{tpu_custom_call.1} parent=5 // pred_fallthru
        _
      %p440 = scmp.le.s32.totalorder 1, %s25
      %p441 = scmp.lt.s32.totalorder %s25, 3
      %p442 = pnand %p440, %p441
      %p443 = pneg %p442
      // Predicated region
      $region73: #{tpu_custom_call.1} parent=5 // pred_check
        _
      $region74: #{tpu_custom_call.1} parent=5 // pred_check_branch
        %445 = sbr.rel (%p442) target = $region76
      $region75: #{tpu_custom_call.1} parent=5 // pred_region
        %s446 = ssub.s32 %s25, 1
        // Predicated region
        $region77: #{tpu_custom_call.1} parent=75 // pred_check
          %p447 = pneg %p245
        $region78: #{tpu_custom_call.1} parent=75 // pred_check_branch
          %449 = sbr.rel (%p447) target = $region80
        $region79: #{tpu_custom_call.1} parent=75 // pred_region
          %450 = dma.done [#allocation3], 16
        $region80: #{tpu_custom_call.1} parent=75 // pred_fallthru
          _
        // Predicated region
        $region81: #{tpu_custom_call.1} parent=75 // pred_check
          %p451 = pneg %p287
        $region82: #{tpu_custom_call.1} parent=75 // pred_check_branch
          %453 = sbr.rel (%p451) target = $region84
        $region83: #{tpu_custom_call.1} parent=75 // pred_region
          %454 = dma.done [#allocation6], 16
        $region84: #{tpu_custom_call.1} parent=75 // pred_fallthru
          _
        %p455 = scmp.lt.s32.totalorder %s30, 1
        %s456 = scalar_select %p455, %s30, 1
        %s457 = smul.addr %s456, 8
        %s458 = scalar_lea.vmem %s0, %s457
        %p459 = pneg %p51
        %p460 = pneg %p48
        %p461 = scmp.lt.s32.totalorder %s30, 1
        %s462 = scalar_select %p461, %s30, 1
        %s463 = smul.addr %s462, 8
        %s464 = scalar_lea.vmem %s1, %s463
        %p465 = pneg %p77
        %p466 = pneg %p74
        %p467 = pneg %p98
        %p468 = pneg %p95
        %p469 = pneg %p119
        %p470 = pneg %p116
        %p471 = pneg %p140
        %p472 = pneg %p137
        %p473 = pneg %p161
        %p474 = pneg %p158
        %p475 = pneg %p182
        %p476 = pneg %p179
        %p477 = pneg %p203
        %p478 = pneg %p200
        %p479 = pneg %p224
        %p480 = pneg %p221
        %p481 = pneg %p245
        %p482 = pneg %p242
        %p483 = pneg %p266
        %p484 = pneg %p263
        %p485 = pneg %p287
        %p486 = pneg %p284
        %p487 = pneg %p308
        %p488 = pneg %p305
        %p489 = pneg %p329
        %p490 = pneg %p326
        %p491 = pneg %p355
        %p492 = pneg %p352
        %s493 = sand.u32 %s342, 1
        %s494 = scalar_lea.sflag [#allocation4], %s493
        %s495 = sand.u32 %s342, 1
        %s496 = smul.addr %s495, 8
        %s497 = scalar_lea.vmem [#allocation7], %s496
        %p498 = scmp.lt.s32.totalorder %s30, 1
        %s499 = scalar_select %p498, %s30, 1
        %s500 = smul.addr %s499, 8
        %s501 = scalar_lea.vmem %s0, %s500
        %p502 = scmp.lt.s32.totalorder %s30, 1
        %s503 = scalar_select %p502, %s30, 1
        %s504 = smul.addr %s503, 8
        %s505 = scalar_lea.vmem %s1, %s504
        %v507 = vld [vmem:[%s501] sm:$0xff]
        %v508 = vld [vmem:[%s505] sm:$0xff]
        %v509 = vld [vmem:[%s2] sm:$0x1]
        %v510 = vld [vmem:[%s3] sm:$0x1]
        %vm511 = vcmask 261120
        %v512 = vsel %vm511, %v507, 0.0
        %513 = vadd.xlane.f32.xlu0 %v512
        %v514 = vpop.xlane.xlu0 %513
        %v515 = vrcp.pop 32.0
        %v516 = vmul.f32 %v514, %v515
        %v517 = vsub.f32 %v507, %v516
        %v518 = vmul.f32 %v517, %v517
        %v519 = vsel %vm511, %v518, 0.0
        %520 = vadd.xlane.f32.xlu0 %v519
        %v521 = vpop.xlane.xlu0 %520
        %v522 = vmul.f32 %v521, %v515
        %v523 = vadd.f32 %v522, 1e-05
        %v524 = vrsqrt.pop %v523
        %v525 = vmul.f32 %v517, %v524
        %v527 = vlaneseq
        %v528 = vshrl.u32 %v527, 7
        %v529 = vsub.s32 0, %v528
        %v530 = vrot.slane %v509, %v529
        %v532 = vmul.f32 %v525, %v530
        %v534 = vlaneseq
        %v535 = vshrl.u32 %v534, 7
        %v536 = vsub.s32 0, %v535
        %v537 = vrot.slane %v510, %v536
        %v539 = vadd.f32 %v532, %v537
        %v540 = vpack.c.bf16 %v539, %v539
        %v541 = vld [vmem:[%s4] sm:$0xf]
        %v542 = vld [vmem:[%s4 + $0x4] sm:$0xf]
        %v543 = vld [vmem:[%s4 + $0x8] sm:$0xf]
        %v544 = vld [vmem:[%s4 + $0xc] sm:$0xf]
        %v545 = vld [vmem:[%s5] sm:$0x1]
        %v547 = vlaneseq
        %v548 = vshrl.u32 %v547, 7
        %v549 = vsub.s32 0, %v548
        %v550 = vrot.slane %v545, %v549
        %v556 = vunpack.c.l.b16 %v541
        %v557 = vunpack.c.l.b16 %v542
        %v558 = vunpack.c.l.b16 %v543
        %v559 = vunpack.c.l.b16 %v544
        %v560 = vpack.c.b16 %v557, %v556
        %v561 = vpack.c.b16 %v559, %v558
        %v565 = vsel %vm511, %v540, 0
        %567 = vmatprep.subr.bf16.mxu0 0
        %568 = vmatpush1.bf16.msra.mxu0 0
        %569 = vmatprep.subr.bf16.mxu0 0
        %570 = vmatpush1.bf16.msra.mxu0 0
        %571 = vmatprep.subr.bf16.mxu0 0
        %572 = vmatpush1.bf16.msra.mxu0 0
        %573 = vmatprep.subr.bf16.mxu0 0
        %574 = vmatpush1.bf16.msra.mxu0 0
        %575 = vmatprep.subr.bf16.mxu0 0
        %576 = vmatpush1.bf16.msra.mxu0 0
        %577 = vmatprep.subr.bf16.mxu0 0
        %578 = vmatpush1.bf16.msra.mxu0 0
        %579 = vmatprep.subr.bf16.mxu0 0
        %580 = vmatpush1.bf16.msra.mxu0 %v561
        %581 = vmatprep.subr.bf16.mxu0 0
        %582 = vmatpush1.bf16.msra.mxu0 %v560
        %583 = vmatprep.subr.bf16.mxu0 0
        %584 = vmatpush2.bf16.msra.mxu0 0
        %585 = vmatprep.subr.bf16.mxu0 0
        %586 = vmatpush2.bf16.msra.mxu0 0
        %587 = vmatprep.subr.bf16.mxu0 0
        %588 = vmatpush2.bf16.msra.mxu0 0
        %589 = vmatprep.subr.bf16.mxu0 0
        %590 = vmatpush2.bf16.msra.mxu0 0
        %591 = vmatprep.subr.bf16.mxu0 0
        %592 = vmatpush2.bf16.msra.mxu0 0
        %593 = vmatprep.subr.bf16.mxu0 0
        %594 = vmatpush2.bf16.msra.mxu0 0
        %595 = vmatprep.subr.bf16.mxu0 0
        %596 = vmatpush2.bf16.msra.mxu0 0
        %597 = vmatprep.subr.bf16.mxu0 0
        %598 = vmatpush2.bf16.msra.mxu0 0
        %599 = vmatprep.mubr.bf16.mxu0 0
        %600 = vmatmul.mubr.bf16.gmra.mxu0 %v565
        %v601 = vpop.f32.mrf.mxu0
        %v602 = vadd.f32 %v550, %v601
        %v603 = vpop.f32.mrf.mxu0
        %v604 = vpop.f32.mrf.mxu0
        %v605 = vpop.f32.mrf.mxu0
        %606 = vdwg.mxu0
        %608 = vrot.lane.b32.xlu0 %v602, 120
        %v609 = vpop.permute.xlu0 %608
        %611 = vrot.lane.b32.xlu0 %v602, 112
        %v612 = vpop.permute.xlu0 %611
        %614 = vrot.lane.b32.xlu0 %v602, 104
        %v615 = vpop.permute.xlu0 %614
        %v617 = vcombine.low %v602, %v612
        %v618 = vcombine.high %v602, %v612
        %v620 = vunpack.c.l.s4 1983009808
        %v621 = vunpack.c.0.s8 %v620
        %v622 = vlaneseq
        %v623 = vshrl.u32 %v622, 7
        %v624 = vsub.s32 %v621, %v623
        %v625 = vrot.slane %v617, %v624
        %v627 = vunpack.c.l.s4 1983009808
        %v628 = vunpack.c.0.s8 %v627
        %v629 = vlaneseq
        %v630 = vshrl.u32 %v629, 7
        %v631 = vsub.s32 %v628, %v630
        %v632 = vrot.slane %v618, %v631
        %v633 = vcombine.low %v609, %v615
        %v634 = vcombine.high %v609, %v615
        %v636 = vunpack.c.l.s4 1983009808
        %v637 = vunpack.c.0.s8 %v636
        %v638 = vlaneseq
        %v639 = vshrl.u32 %v638, 7
        %v640 = vsub.s32 %v637, %v639
        %v641 = vrot.slane %v633, %v640
        %v643 = vunpack.c.l.s4 1983009808
        %v644 = vunpack.c.0.s8 %v643
        %v645 = vlaneseq
        %v646 = vshrl.u32 %v645, 7
        %v647 = vsub.s32 %v644, %v646
        %v648 = vrot.slane %v634, %v647
        %v649 = vcombine.low %v625, %v641
        %v650 = vcombine.high %v625, %v641
        %v652 = vunpack.c.l.s4 1934713408
        %v653 = vunpack.c.0.s8 %v652
        %v654 = vlaneseq
        %v655 = vshrl.u32 %v654, 7
        %v656 = vsub.s32 %v653, %v655
        %v657 = vrot.slane %v649, %v656
        %v659 = vunpack.c.l.s4 1934713408
        %v660 = vunpack.c.0.s8 %v659
        %v661 = vlaneseq
        %v662 = vshrl.u32 %v661, 7
        %v663 = vsub.s32 %v660, %v662
        %v664 = vrot.slane %v650, %v663
        %v665 = vcombine.low %v632, %v648
        %v666 = vcombine.high %v632, %v648
        %v668 = vunpack.c.l.s4 1934713408
        %v669 = vunpack.c.0.s8 %v668
        %v670 = vlaneseq
        %v671 = vshrl.u32 %v670, 7
        %v672 = vsub.s32 %v669, %v671
        %v673 = vrot.slane %v665, %v672
        %v675 = vunpack.c.l.s4 1934713408
        %v676 = vunpack.c.0.s8 %v675
        %v677 = vlaneseq
        %v678 = vshrl.u32 %v677, 7
        %v679 = vsub.s32 %v676, %v678
        %v680 = vrot.slane %v666, %v679
        %v681 = vcombine.high %v657, 0.0
        %v682 = vcombine.high %v664, 0.0
        %v683 = vcombine.high %v673, 0.0
        %v684 = vcombine.high %v680, 0.0
        %v685 = vcombine.low %v657, %v664
        %v687 = vunpack.c.l.s4 1983009808
        %v688 = vunpack.c.0.s8 %v687
        %v689 = vlaneseq
        %v690 = vshrl.u32 %v689, 7
        %v691 = vsub.s32 %v688, %v690
        %v692 = vrot.slane %v685, %v691
        %v693 = vcombine.low %v681, %v682
        %v695 = vunpack.c.l.s4 1983009808
        %v696 = vunpack.c.0.s8 %v695
        %v697 = vlaneseq
        %v698 = vshrl.u32 %v697, 7
        %v699 = vsub.s32 %v696, %v698
        %v700 = vrot.slane %v693, %v699
        %v701 = vcombine.low %v673, %v680
        %v703 = vunpack.c.l.s4 1983009808
        %v704 = vunpack.c.0.s8 %v703
        %v705 = vlaneseq
        %v706 = vshrl.u32 %v705, 7
        %v707 = vsub.s32 %v704, %v706
        %v708 = vrot.slane %v701, %v707
        %v709 = vcombine.low %v683, %v684
        %v711 = vunpack.c.l.s4 1983009808
        %v712 = vunpack.c.0.s8 %v711
        %v713 = vlaneseq
        %v714 = vshrl.u32 %v713, 7
        %v715 = vsub.s32 %v712, %v714
        %v716 = vrot.slane %v709, %v715
        %v717 = vcombine.low %v692, %v700
        %v718 = vcombine.high %v692, %v700
        %v720 = vunpack.c.l.s4 1934713408
        %v721 = vunpack.c.0.s8 %v720
        %v722 = vlaneseq
        %v723 = vshrl.u32 %v722, 7
        %v724 = vsub.s32 %v721, %v723
        %v725 = vrot.slane %v717, %v724
        %v727 = vunpack.c.l.s4 1934713408
        %v728 = vunpack.c.0.s8 %v727
        %v729 = vlaneseq
        %v730 = vshrl.u32 %v729, 7
        %v731 = vsub.s32 %v728, %v730
        %v732 = vrot.slane %v718, %v731
        %v733 = vcombine.low %v708, %v716
        %v734 = vcombine.high %v708, %v716
        %v736 = vunpack.c.l.s4 1934713408
        %v737 = vunpack.c.0.s8 %v736
        %v738 = vlaneseq
        %v739 = vshrl.u32 %v738, 7
        %v740 = vsub.s32 %v737, %v739
        %v741 = vrot.slane %v733, %v740
        %v743 = vunpack.c.l.s4 1934713408
        %v744 = vunpack.c.0.s8 %v743
        %v745 = vlaneseq
        %v746 = vshrl.u32 %v745, 7
        %v747 = vsub.s32 %v744, %v746
        %v748 = vrot.slane %v734, %v747
        %v749 = vcombine.low %v725, %v741
        %v750 = vcombine.high %v725, %v741
        %v751 = vcombine.low %v732, %v748
        %v752 = vcombine.high %v732, %v748
        %v753 = vpack.c.bf16 %v749, %v749
        %v754 = vpack.c.bf16 %v750, %v750
        %v755 = vpack.c.bf16 %v751, %v751
        %v756 = vpack.c.bf16 %v752, %v752
        %757 = vrot.lane.b32.xlu0 %v602, 96
        %v758 = vpop.permute.xlu0 %757
        %759 = vrot.lane.b32.xlu0 %v609, 96
        %v760 = vpop.permute.xlu0 %759
        %761 = vrot.lane.b32.xlu0 %v612, 96
        %v762 = vpop.permute.xlu0 %761
        %763 = vrot.lane.b32.xlu0 %v615, 96
        %v764 = vpop.permute.xlu0 %763
        %v769 = vcombine.low %v758, %v762
        %v770 = vcombine.high %v758, %v762
        %v772 = vunpack.c.l.s4 1983009808
        %v773 = vunpack.c.0.s8 %v772
        %v774 = vlaneseq
        %v775 = vshrl.u32 %v774, 7
        %v776 = vsub.s32 %v773, %v775
        %v777 = vrot.slane %v769, %v776
        %v779 = vunpack.c.l.s4 1983009808
        %v780 = vunpack.c.0.s8 %v779
        %v781 = vlaneseq
        %v782 = vshrl.u32 %v781, 7
        %v783 = vsub.s32 %v780, %v782
        %v784 = vrot.slane %v770, %v783
        %v785 = vcombine.low %v760, %v764
        %v786 = vcombine.high %v760, %v764
        %v788 = vunpack.c.l.s4 1983009808
        %v789 = vunpack.c.0.s8 %v788
        %v790 = vlaneseq
        %v791 = vshrl.u32 %v790, 7
        %v792 = vsub.s32 %v789, %v791
        %v793 = vrot.slane %v785, %v792
        %v795 = vunpack.c.l.s4 1983009808
        %v796 = vunpack.c.0.s8 %v795
        %v797 = vlaneseq
        %v798 = vshrl.u32 %v797, 7
        %v799 = vsub.s32 %v796, %v798
        %v800 = vrot.slane %v786, %v799
        %v801 = vcombine.low %v777, %v793
        %v802 = vcombine.high %v777, %v793
        %v804 = vunpack.c.l.s4 1934713408
        %v805 = vunpack.c.0.s8 %v804
        %v806 = vlaneseq
        %v807 = vshrl.u32 %v806, 7
        %v808 = vsub.s32 %v805, %v807
        %v809 = vrot.slane %v801, %v808
        %v811 = vunpack.c.l.s4 1934713408
        %v812 = vunpack.c.0.s8 %v811
        %v813 = vlaneseq
        %v814 = vshrl.u32 %v813, 7
        %v815 = vsub.s32 %v812, %v814
        %v816 = vrot.slane %v802, %v815
        %v817 = vcombine.low %v784, %v800
        %v818 = vcombine.high %v784, %v800
        %v820 = vunpack.c.l.s4 1934713408
        %v821 = vunpack.c.0.s8 %v820
        %v822 = vlaneseq
        %v823 = vshrl.u32 %v822, 7
        %v824 = vsub.s32 %v821, %v823
        %v825 = vrot.slane %v817, %v824
        %v827 = vunpack.c.l.s4 1934713408
        %v828 = vunpack.c.0.s8 %v827
        %v829 = vlaneseq
        %v830 = vshrl.u32 %v829, 7
        %v831 = vsub.s32 %v828, %v830
        %v832 = vrot.slane %v818, %v831
        %v833 = vcombine.high %v809, 0.0
        %v834 = vcombine.high %v816, 0.0
        %v835 = vcombine.high %v825, 0.0
        %v836 = vcombine.high %v832, 0.0
        %v837 = vcombine.low %v809, %v816
        %v839 = vunpack.c.l.s4 1983009808
        %v840 = vunpack.c.0.s8 %v839
        %v841 = vlaneseq
        %v842 = vshrl.u32 %v841, 7
        %v843 = vsub.s32 %v840, %v842
        %v844 = vrot.slane %v837, %v843
        %v845 = vcombine.low %v833, %v834
        %v847 = vunpack.c.l.s4 1983009808
        %v848 = vunpack.c.0.s8 %v847
        %v849 = vlaneseq
        %v850 = vshrl.u32 %v849, 7
        %v851 = vsub.s32 %v848, %v850
        %v852 = vrot.slane %v845, %v851
        %v853 = vcombine.low %v825, %v832
        %v855 = vunpack.c.l.s4 1983009808
        %v856 = vunpack.c.0.s8 %v855
        %v857 = vlaneseq
        %v858 = vshrl.u32 %v857, 7
        %v859 = vsub.s32 %v856, %v858
        %v860 = vrot.slane %v853, %v859
        %v861 = vcombine.low %v835, %v836
        %v863 = vunpack.c.l.s4 1983009808
        %v864 = vunpack.c.0.s8 %v863
        %v865 = vlaneseq
        %v866 = vshrl.u32 %v865, 7
        %v867 = vsub.s32 %v864, %v866
        %v868 = vrot.slane %v861, %v867
        %v869 = vcombine.low %v844, %v852
        %v870 = vcombine.high %v844, %v852
        %v872 = vunpack.c.l.s4 1934713408
        %v873 = vunpack.c.0.s8 %v872
        %v874 = vlaneseq
        %v875 = vshrl.u32 %v874, 7
        %v876 = vsub.s32 %v873, %v875
        %v877 = vrot.slane %v869, %v876
        %v879 = vunpack.c.l.s4 1934713408
        %v880 = vunpack.c.0.s8 %v879
        %v881 = vlaneseq
        %v882 = vshrl.u32 %v881, 7
        %v883 = vsub.s32 %v880, %v882
        %v884 = vrot.slane %v870, %v883
        %v885 = vcombine.low %v860, %v868
        %v886 = vcombine.high %v860, %v868
        %v888 = vunpack.c.l.s4 1934713408
        %v889 = vunpack.c.0.s8 %v888
        %v890 = vlaneseq
        %v891 = vshrl.u32 %v890, 7
        %v892 = vsub.s32 %v889, %v891
        %v893 = vrot.slane %v885, %v892
        %v895 = vunpack.c.l.s4 1934713408
        %v896 = vunpack.c.0.s8 %v895
        %v897 = vlaneseq
        %v898 = vshrl.u32 %v897, 7
        %v899 = vsub.s32 %v896, %v898
        %v900 = vrot.slane %v886, %v899
        %v901 = vcombine.low %v877, %v893
        %v902 = vcombine.high %v877, %v893
        %v903 = vcombine.low %v884, %v900
        %v904 = vcombine.high %v884, %v900
        %v905 = vpack.c.bf16 %v901, %v901
        %v906 = vpack.c.bf16 %v902, %v902
        %v907 = vpack.c.bf16 %v903, %v903
        %v908 = vpack.c.bf16 %v904, %v904
        %909 = vrot.lane.b32.xlu0 %v602, 64
        %v910 = vpop.permute.xlu0 %909
        %911 = vrot.lane.b32.xlu0 %v609, 64
        %v912 = vpop.permute.xlu0 %911
        %913 = vrot.lane.b32.xlu0 %v612, 64
        %v914 = vpop.permute.xlu0 %913
        %915 = vrot.lane.b32.xlu0 %v615, 64
        %v916 = vpop.permute.xlu0 %915
        %v921 = vcombine.low %v910, %v914
        %v922 = vcombine.high %v910, %v914
        %v924 = vunpack.c.l.s4 1983009808
        %v925 = vunpack.c.0.s8 %v924
        %v926 = vlaneseq
        %v927 = vshrl.u32 %v926, 7
        %v928 = vsub.s32 %v925, %v927
        %v929 = vrot.slane %v921, %v928
        %v931 = vunpack.c.l.s4 1983009808
        %v932 = vunpack.c.0.s8 %v931
        %v933 = vlaneseq
        %v934 = vshrl.u32 %v933, 7
        %v935 = vsub.s32 %v932, %v934
        %v936 = vrot.slane %v922, %v935
        %v937 = vcombine.low %v912, %v916
        %v938 = vcombine.high %v912, %v916
        %v940 = vunpack.c.l.s4 1983009808
        %v941 = vunpack.c.0.s8 %v940
        %v942 = vlaneseq
        %v943 = vshrl.u32 %v942, 7
        %v944 = vsub.s32 %v941, %v943
        %v945 = vrot.slane %v937, %v944
        %v947 = vunpack.c.l.s4 1983009808
        %v948 = vunpack.c.0.s8 %v947
        %v949 = vlaneseq
        %v950 = vshrl.u32 %v949, 7
        %v951 = vsub.s32 %v948, %v950
        %v952 = vrot.slane %v938, %v951
        %v953 = vcombine.low %v929, %v945
        %v954 = vcombine.high %v929, %v945
        %v956 = vunpack.c.l.s4 1934713408
        %v957 = vunpack.c.0.s8 %v956
        %v958 = vlaneseq
        %v959 = vshrl.u32 %v958, 7
        %v960 = vsub.s32 %v957, %v959
        %v961 = vrot.slane %v953, %v960
        %v963 = vunpack.c.l.s4 1934713408
        %v964 = vunpack.c.0.s8 %v963
        %v965 = vlaneseq
        %v966 = vshrl.u32 %v965, 7
        %v967 = vsub.s32 %v964, %v966
        %v968 = vrot.slane %v954, %v967
        %v969 = vcombine.low %v936, %v952
        %v970 = vcombine.high %v936, %v952
        %v972 = vunpack.c.l.s4 1934713408
        %v973 = vunpack.c.0.s8 %v972
        %v974 = vlaneseq
        %v975 = vshrl.u32 %v974, 7
        %v976 = vsub.s32 %v973, %v975
        %v977 = vrot.slane %v969, %v976
        %v979 = vunpack.c.l.s4 1934713408
        %v980 = vunpack.c.0.s8 %v979
        %v981 = vlaneseq
        %v982 = vshrl.u32 %v981, 7
        %v983 = vsub.s32 %v980, %v982
        %v984 = vrot.slane %v970, %v983
        %v985 = vcombine.high %v961, 0.0
        %v986 = vcombine.high %v968, 0.0
        %v987 = vcombine.high %v977, 0.0
        %v988 = vcombine.high %v984, 0.0
        %v989 = vcombine.low %v961, %v968
        %v991 = vunpack.c.l.s4 1983009808
        %v992 = vunpack.c.0.s8 %v991
        %v993 = vlaneseq
        %v994 = vshrl.u32 %v993, 7
        %v995 = vsub.s32 %v992, %v994
        %v996 = vrot.slane %v989, %v995
        %v997 = vcombine.low %v985, %v986
        %v999 = vunpack.c.l.s4 1983009808
        %v1000 = vunpack.c.0.s8 %v999
        %v1001 = vlaneseq
        %v1002 = vshrl.u32 %v1001, 7
        %v1003 = vsub.s32 %v1000, %v1002
        %v1004 = vrot.slane %v997, %v1003
        %v1005 = vcombine.low %v977, %v984
        %v1007 = vunpack.c.l.s4 1983009808
        %v1008 = vunpack.c.0.s8 %v1007
        %v1009 = vlaneseq
        %v1010 = vshrl.u32 %v1009, 7
        %v1011 = vsub.s32 %v1008, %v1010
        %v1012 = vrot.slane %v1005, %v1011
        %v1013 = vcombine.low %v987, %v988
        %v1015 = vunpack.c.l.s4 1983009808
        %v1016 = vunpack.c.0.s8 %v1015
        %v1017 = vlaneseq
        %v1018 = vshrl.u32 %v1017, 7
        %v1019 = vsub.s32 %v1016, %v1018
        %v1020 = vrot.slane %v1013, %v1019
        %v1021 = vcombine.low %v996, %v1004
        %v1022 = vcombine.high %v996, %v1004
        %v1024 = vunpack.c.l.s4 1934713408
        %v1025 = vunpack.c.0.s8 %v1024
        %v1026 = vlaneseq
        %v1027 = vshrl.u32 %v1026, 7
        %v1028 = vsub.s32 %v1025, %v1027
        %v1029 = vrot.slane %v1021, %v1028
        %v1031 = vunpack.c.l.s4 1934713408
        %v1032 = vunpack.c.0.s8 %v1031
        %v1033 = vlaneseq
        %v1034 = vshrl.u32 %v1033, 7
        %v1035 = vsub.s32 %v1032, %v1034
        %v1036 = vrot.slane %v1022, %v1035
        %v1037 = vcombine.low %v1012, %v1020
        %v1038 = vcombine.high %v1012, %v1020
        %v1040 = vunpack.c.l.s4 1934713408
        %v1041 = vunpack.c.0.s8 %v1040
        %v1042 = vlaneseq
        %v1043 = vshrl.u32 %v1042, 7
        %v1044 = vsub.s32 %v1041, %v1043
        %v1045 = vrot.slane %v1037, %v1044
        %v1047 = vunpack.c.l.s4 1934713408
        %v1048 = vunpack.c.0.s8 %v1047
        %v1049 = vlaneseq
        %v1050 = vshrl.u32 %v1049, 7
        %v1051 = vsub.s32 %v1048, %v1050
        %v1052 = vrot.slane %v1038, %v1051
        %v1053 = vcombine.low %v1029, %v1045
        %v1054 = vcombine.high %v1029, %v1045
        %v1055 = vcombine.low %v1036, %v1052
        %v1056 = vcombine.high %v1036, %v1052
        %v1057 = vpack.c.bf16 %v1053, %v1053
        %v1058 = vpack.c.bf16 %v1054, %v1054
        %v1059 = vpack.c.bf16 %v1055, %v1055
        %v1060 = vpack.c.bf16 %v1056, %v1056
        %vm1061 = vcmask 64512
        %v1063 = vsel %vm1061, %v753, 0
        %v1066 = vsel %vm1061, %v905, 0
        %1068 = vmatprep.subr.bf16.mxu0 0
        %1069 = vmatpush1.bf16.xpose.msra.mxu0 0
        %1070 = vmatprep.subr.bf16.mxu0 0
        %1071 = vmatpush1.bf16.xpose.msra.mxu0 0
        %1072 = vmatprep.subr.bf16.mxu0 0
        %1073 = vmatpush1.bf16.xpose.msra.mxu0 0
        %1074 = vmatprep.subr.bf16.mxu0 0
        %1075 = vmatpush1.bf16.xpose.msra.mxu0 0
        %1076 = vmatprep.subr.bf16.mxu0 0
        %1077 = vmatpush1.bf16.xpose.msra.mxu0 0
        %1078 = vmatprep.subr.bf16.mxu0 0
        %1079 = vmatpush1.bf16.xpose.msra.mxu0 0
        %1080 = vmatprep.subr.bf16.mxu0 0
        %1081 = vmatpush1.bf16.xpose.msra.mxu0 0
        %1082 = vmatprep.subr.bf16.mxu0 0
        %1083 = vmatpush1.bf16.xpose.msra.mxu0 %v1066
        %1084 = vmatprep.subr.bf16.mxu0 0
        %1085 = vmatpush2.bf16.xpose.msra.mxu0 0
        %1086 = vmatprep.subr.bf16.mxu0 0
        %1087 = vmatpush2.bf16.xpose.msra.mxu0 0
        %1088 = vmatprep.subr.bf16.mxu0 0
        %1089 = vmatpush2.bf16.xpose.msra.mxu0 0
        %1090 = vmatprep.subr.bf16.mxu0 0
        %1091 = vmatpush2.bf16.xpose.msra.mxu0 0
        %1092 = vmatprep.subr.bf16.mxu0 0
        %1093 = vmatpush2.bf16.xpose.msra.mxu0 0
        %1094 = vmatprep.subr.bf16.mxu0 0
        %1095 = vmatpush2.bf16.xpose.msra.mxu0 0
        %1096 = vmatprep.subr.bf16.mxu0 0
        %1097 = vmatpush2.bf16.xpose.msra.mxu0 0
        %1098 = vmatprep.subr.bf16.mxu0 0
        %1099 = vmatpush2.bf16.xpose.msra.mxu0 0
        %1100 = vmatprep.mubr.bf16.mxu0 0
        %1101 = vmatmul.mubr.bf16.gmra.mxu0 %v1063
        %v1102 = vpop.f32.mrf.mxu0
        %v1103 = vadd.f32 %v508, %v1102
        %v1104 = vpop.f32.mrf.mxu0
        %v1105 = vpop.f32.mrf.mxu0
        %v1106 = vpop.f32.mrf.mxu0
        %1107 = vdwg.mxu0
        %v1109 = vsel %vm1061, %v754, 0
        %v1112 = vsel %vm1061, %v906, 0
        %1114 = vmatprep.subr.bf16.mxu0 0
        %1115 = vmatpush1.bf16.xpose.msra.mxu0 0
        %1116 = vmatprep.subr.bf16.mxu0 0
        %1117 = vmatpush1.bf16.xpose.msra.mxu0 0
        %1118 = vmatprep.subr.bf16.mxu0 0
        %1119 = vmatpush1.bf16.xpose.msra.mxu0 0
        %1120 = vmatprep.subr.bf16.mxu0 0
        %1121 = vmatpush1.bf16.xpose.msra.mxu0 0
        %1122 = vmatprep.subr.bf16.mxu0 0
        %1123 = vmatpush1.bf16.xpose.msra.mxu0 0
        %1124 = vmatprep.subr.bf16.mxu0 0
        %1125 = vmatpush1.bf16.xpose.msra.mxu0 0
        %1126 = vmatprep.subr.bf16.mxu0 0
        %1127 = vmatpush1.bf16.xpose.msra.mxu0 0
        %1128 = vmatprep.subr.bf16.mxu0 0
        %1129 = vmatpush1.bf16.xpose.msra.mxu0 %v1112
        %1130 = vmatprep.subr.bf16.mxu0 0
        %1131 = vmatpush2.bf16.xpose.msra.mxu0 0
        %1132 = vmatprep.subr.bf16.mxu0 0
        %1133 = vmatpush2.bf16.xpose.msra.mxu0 0
        %1134 = vmatprep.subr.bf16.mxu0 0
        %1135 = vmatpush2.bf16.xpose.msra.mxu0 0
        %1136 = vmatprep.subr.bf16.mxu0 0
        %1137 = vmatpush2.bf16.xpose.msra.mxu0 0
        %1138 = vmatprep.subr.bf16.mxu0 0
        %1139 = vmatpush2.bf16.xpose.msra.mxu0 0
        %1140 = vmatprep.subr.bf16.mxu0 0
        %1141 = vmatpush2.bf16.xpose.msra.mxu0 0
        %1142 = vmatprep.subr.bf16.mxu0 0
        %1143 = vmatpush2.bf16.xpose.msra.mxu0 0
        %1144 = vmatprep.subr.bf16.mxu0 0
        %1145 = vmatpush2.bf16.xpose.msra.mxu0 0
        %1146 = vmatprep.mubr.bf16.mxu0 0
        %1147 = vmatmul.mubr.bf16.gmra.mxu0 %v1109
        %v1148 = vpop.f32.mrf.mxu0
        %v1149 = vadd.f32 %v508, %v1148
        %v1150 = vpop.f32.mrf.mxu0
        %v1151 = vpop.f32.mrf.mxu0
        %v1152 = vpop.f32.mrf.mxu0
        %1153 = vdwg.mxu0
        %v1155 = vsel %vm1061, %v755, 0
        %v1158 = vsel %vm1061, %v907, 0
        %1160 = vmatprep.subr.bf16.mxu0 0
        %1161 = vmatpush1.bf16.xpose.msra.mxu0 0
        %1162 = vmatprep.subr.bf16.mxu0 0
        %1163 = vmatpush1.bf16.xpose.msra.mxu0 0
        %1164 = vmatprep.subr.bf16.mxu0 0
        %1165 = vmatpush1.bf16.xpose.msra.mxu0 0
        %1166 = vmatprep.subr.bf16.mxu0 0
        %1167 = vmatpush1.bf16.xpose.msra.mxu0 0
        %1168 = vmatprep.subr.bf16.mxu0 0
        %1169 = vmatpush1.bf16.xpose.msra.mxu0 0
        %1170 = vmatprep.subr.bf16.mxu0 0
        %1171 = vmatpush1.bf16.xpose.msra.mxu0 0
        %1172 = vmatprep.subr.bf16.mxu0 0
        %1173 = vmatpush1.bf16.xpose.msra.mxu0 0
        %1174 = vmatprep.subr.bf16.mxu0 0
        %1175 = vmatpush1.bf16.xpose.msra.mxu0 %v1158
        %1176 = vmatprep.subr.bf16.mxu0 0
        %1177 = vmatpush2.bf16.xpose.msra.mxu0 0
        %1178 = vmatprep.subr.bf16.mxu0 0
        %1179 = vmatpush2.bf16.xpose.msra.mxu0 0
        %1180 = vmatprep.subr.bf16.mxu0 0
        %1181 = vmatpush2.bf16.xpose.msra.mxu0 0
        %1182 = vmatprep.subr.bf16.mxu0 0
        %1183 = vmatpush2.bf16.xpose.msra.mxu0 0
        %1184 = vmatprep.subr.bf16.mxu0 0
        %1185 = vmatpush2.bf16.xpose.msra.mxu0 0
        %1186 = vmatprep.subr.bf16.mxu0 0
        %1187 = vmatpush2.bf16.xpose.msra.mxu0 0
        %1188 = vmatprep.subr.bf16.mxu0 0
        %1189 = vmatpush2.bf16.xpose.msra.mxu0 0
        %1190 = vmatprep.subr.bf16.mxu0 0
        %1191 = vmatpush2.bf16.xpose.msra.mxu0 0
        %1192 = vmatprep.mubr.bf16.mxu0 0
        %1193 = vmatmul.mubr.bf16.gmra.mxu0 %v1155
        %v1194 = vpop.f32.mrf.mxu0
        %v1195 = vadd.f32 %v508, %v1194
        %v1196 = vpop.f32.mrf.mxu0
        %v1197 = vpop.f32.mrf.mxu0
        %v1198 = vpop.f32.mrf.mxu0
        %1199 = vdwg.mxu0
        %v1201 = vsel %vm1061, %v756, 0
        %v1204 = vsel %vm1061, %v908, 0
        %1206 = vmatprep.subr.bf16.mxu0 0
        %1207 = vmatpush1.bf16.xpose.msra.mxu0 0
        %1208 = vmatprep.subr.bf16.mxu0 0
        %1209 = vmatpush1.bf16.xpose.msra.mxu0 0
        %1210 = vmatprep.subr.bf16.mxu0 0
        %1211 = vmatpush1.bf16.xpose.msra.mxu0 0
        %1212 = vmatprep.subr.bf16.mxu0 0
        %1213 = vmatpush1.bf16.xpose.msra.mxu0 0
        %1214 = vmatprep.subr.bf16.mxu0 0
        %1215 = vmatpush1.bf16.xpose.msra.mxu0 0
        %1216 = vmatprep.subr.bf16.mxu0 0
        %1217 = vmatpush1.bf16.xpose.msra.mxu0 0
        %1218 = vmatprep.subr.bf16.mxu0 0
        %1219 = vmatpush1.bf16.xpose.msra.mxu0 0
        %1220 = vmatprep.subr.bf16.mxu0 0
        %1221 = vmatpush1.bf16.xpose.msra.mxu0 %v1204
        %1222 = vmatprep.subr.bf16.mxu0 0
        %1223 = vmatpush2.bf16.xpose.msra.mxu0 0
        %1224 = vmatprep.subr.bf16.mxu0 0
        %1225 = vmatpush2.bf16.xpose.msra.mxu0 0
        %1226 = vmatprep.subr.bf16.mxu0 0
        %1227 = vmatpush2.bf16.xpose.msra.mxu0 0
        %1228 = vmatprep.subr.bf16.mxu0 0
        %1229 = vmatpush2.bf16.xpose.msra.mxu0 0
        %1230 = vmatprep.subr.bf16.mxu0 0
        %1231 = vmatpush2.bf16.xpose.msra.mxu0 0
        %1232 = vmatprep.subr.bf16.mxu0 0
        %1233 = vmatpush2.bf16.xpose.msra.mxu0 0
        %1234 = vmatprep.subr.bf16.mxu0 0
        %1235 = vmatpush2.bf16.xpose.msra.mxu0 0
        %1236 = vmatprep.subr.bf16.mxu0 0
        %1237 = vmatpush2.bf16.xpose.msra.mxu0 0
        %1238 = vmatprep.mubr.bf16.mxu0 0
        %1239 = vmatmul.mubr.bf16.gmra.mxu0 %v1201
        %v1240 = vpop.f32.mrf.mxu0
        %v1241 = vadd.f32 %v508, %v1240
        %v1242 = vpop.f32.mrf.mxu0
        %v1243 = vpop.f32.mrf.mxu0
        %v1244 = vpop.f32.mrf.mxu0
        %1245 = vdwg.mxu0
        %v1246 = vsel %vm1061, %v1103, -inf
        %1247 = vmax.xlane.f32.xlu0 %v1246
        %v1248 = vpop.xlane.xlu0 %1247
        %v1249 = vsel %vm1061, %v1149, -inf
        %1250 = vmax.xlane.f32.xlu0 %v1249
        %v1251 = vpop.xlane.xlu0 %1250
        %v1252 = vsel %vm1061, %v1195, -inf
        %1253 = vmax.xlane.f32.xlu0 %v1252
        %v1254 = vpop.xlane.xlu0 %1253
        %v1255 = vsel %vm1061, %v1241, -inf
        %1256 = vmax.xlane.f32.xlu0 %v1255
        %v1257 = vpop.xlane.xlu0 %1256
        %v1258 = vsub.f32 %v1103, %v1248
        %v1259 = vsub.f32 %v1149, %v1251
        %v1260 = vsub.f32 %v1195, %v1254
        %v1261 = vsub.f32 %v1241, %v1257
        %v1262 = vmul.f32 %v1258, 1.442695
        %v1263 = vpow.pop %v1262
        %v1264 = vmul.f32 %v1259, 1.442695
        %v1265 = vpow.pop %v1264
        %v1266 = vmul.f32 %v1260, 1.442695
        %v1267 = vpow.pop %v1266
        %v1268 = vmul.f32 %v1261, 1.442695
        %v1269 = vpow.pop %v1268
        %v1270 = vsel %vm1061, %v1263, 0.0
        %1271 = vadd.xlane.f32.xlu0 %v1270
        %v1272 = vpop.xlane.xlu0 %1271
        %v1273 = vsel %vm1061, %v1265, 0.0
        %1274 = vadd.xlane.f32.xlu0 %v1273
        %v1275 = vpop.xlane.xlu0 %1274
        %v1276 = vsel %vm1061, %v1267, 0.0
        %1277 = vadd.xlane.f32.xlu0 %v1276
        %v1278 = vpop.xlane.xlu0 %1277
        %v1279 = vsel %vm1061, %v1269, 0.0
        %1280 = vadd.xlane.f32.xlu0 %v1279
        %v1281 = vpop.xlane.xlu0 %1280
        %v1282 = vpack.c.bf16 %v1263, %v1263
        %v1283 = vpack.c.bf16 %v1265, %v1265
        %v1284 = vpack.c.bf16 %v1267, %v1267
        %v1285 = vpack.c.bf16 %v1269, %v1269
        %v1287 = vsel %vm1061, %v1282, 0
        %vm1289 = vcmask 1043456
        %v1291 = vsel %vm1289, %v1057, 0
        %1293 = vmatprep.subr.bf16.mxu0 0
        %1294 = vmatpush1.bf16.msra.mxu0 0
        %1295 = vmatprep.subr.bf16.mxu0 0
        %1296 = vmatpush1.bf16.msra.mxu0 0
        %1297 = vmatprep.subr.bf16.mxu0 0
        %1298 = vmatpush1.bf16.msra.mxu0 0
        %1299 = vmatprep.subr.bf16.mxu0 0
        %1300 = vmatpush1.bf16.msra.mxu0 0
        %1301 = vmatprep.subr.bf16.mxu0 0
        %1302 = vmatpush1.bf16.msra.mxu0 0
        %1303 = vmatprep.subr.bf16.mxu0 0
        %1304 = vmatpush1.bf16.msra.mxu0 0
        %1305 = vmatprep.subr.bf16.mxu0 0
        %1306 = vmatpush1.bf16.msra.mxu0 0
        %1307 = vmatprep.subr.bf16.mxu0 0
        %1308 = vmatpush1.bf16.msra.mxu0 %v1291
        %1309 = vmatprep.subr.bf16.mxu0 0
        %1310 = vmatpush2.bf16.msra.mxu0 0
        %1311 = vmatprep.subr.bf16.mxu0 0
        %1312 = vmatpush2.bf16.msra.mxu0 0
        %1313 = vmatprep.subr.bf16.mxu0 0
        %1314 = vmatpush2.bf16.msra.mxu0 0
        %1315 = vmatprep.subr.bf16.mxu0 0
        %1316 = vmatpush2.bf16.msra.mxu0 0
        %1317 = vmatprep.subr.bf16.mxu0 0
        %1318 = vmatpush2.bf16.msra.mxu0 0
        %1319 = vmatprep.subr.bf16.mxu0 0
        %1320 = vmatpush2.bf16.msra.mxu0 0
        %1321 = vmatprep.subr.bf16.mxu0 0
        %1322 = vmatpush2.bf16.msra.mxu0 0
        %1323 = vmatprep.subr.bf16.mxu0 0
        %1324 = vmatpush2.bf16.msra.mxu0 0
        %1325 = vmatprep.mubr.bf16.mxu0 0
        %1326 = vmatmul.mubr.bf16.gmra.mxu0 %v1287
        %v1327 = vpop.f32.mrf.mxu0
        %v1328 = vadd.f32 0.0, %v1327
        %v1329 = vpop.f32.mrf.mxu0
        %v1330 = vpop.f32.mrf.mxu0
        %v1331 = vpop.f32.mrf.mxu0
        %1332 = vdwg.mxu0
        %v1334 = vsel %vm1061, %v1283, 0
        %v1337 = vsel %vm1289, %v1058, 0
        %1339 = vmatprep.subr.bf16.mxu0 0
        %1340 = vmatpush1.bf16.msra.mxu0 0
        %1341 = vmatprep.subr.bf16.mxu0 0
        %1342 = vmatpush1.bf16.msra.mxu0 0
        %1343 = vmatprep.subr.bf16.mxu0 0
        %1344 = vmatpush1.bf16.msra.mxu0 0
        %1345 = vmatprep.subr.bf16.mxu0 0
        %1346 = vmatpush1.bf16.msra.mxu0 0
        %1347 = vmatprep.subr.bf16.mxu0 0
        %1348 = vmatpush1.bf16.msra.mxu0 0
        %1349 = vmatprep.subr.bf16.mxu0 0
        %1350 = vmatpush1.bf16.msra.mxu0 0
        %1351 = vmatprep.subr.bf16.mxu0 0
        %1352 = vmatpush1.bf16.msra.mxu0 0
        %1353 = vmatprep.subr.bf16.mxu0 0
        %1354 = vmatpush1.bf16.msra.mxu0 %v1337
        %1355 = vmatprep.subr.bf16.mxu0 0
        %1356 = vmatpush2.bf16.msra.mxu0 0
        %1357 = vmatprep.subr.bf16.mxu0 0
        %1358 = vmatpush2.bf16.msra.mxu0 0
        %1359 = vmatprep.subr.bf16.mxu0 0
        %1360 = vmatpush2.bf16.msra.mxu0 0
        %1361 = vmatprep.subr.bf16.mxu0 0
        %1362 = vmatpush2.bf16.msra.mxu0 0
        %1363 = vmatprep.subr.bf16.mxu0 0
        %1364 = vmatpush2.bf16.msra.mxu0 0
        %1365 = vmatprep.subr.bf16.mxu0 0
        %1366 = vmatpush2.bf16.msra.mxu0 0
        %1367 = vmatprep.subr.bf16.mxu0 0
        %1368 = vmatpush2.bf16.msra.mxu0 0
        %1369 = vmatprep.subr.bf16.mxu0 0
        %1370 = vmatpush2.bf16.msra.mxu0 0
        %1371 = vmatprep.mubr.bf16.mxu0 0
        %1372 = vmatmul.mubr.bf16.gmra.mxu0 %v1334
        %v1373 = vpop.f32.mrf.mxu0
        %v1374 = vadd.f32 0.0, %v1373
        %v1375 = vpop.f32.mrf.mxu0
        %v1376 = vpop.f32.mrf.mxu0
        %v1377 = vpop.f32.mrf.mxu0
        %1378 = vdwg.mxu0
        %v1380 = vsel %vm1061, %v1284, 0
        %v1383 = vsel %vm1289, %v1059, 0
        %1385 = vmatprep.subr.bf16.mxu0 0
        %1386 = vmatpush1.bf16.msra.mxu0 0
        %1387 = vmatprep.subr.bf16.mxu0 0
        %1388 = vmatpush1.bf16.msra.mxu0 0
        %1389 = vmatprep.subr.bf16.mxu0 0
        %1390 = vmatpush1.bf16.msra.mxu0 0
        %1391 = vmatprep.subr.bf16.mxu0 0
        %1392 = vmatpush1.bf16.msra.mxu0 0
        %1393 = vmatprep.subr.bf16.mxu0 0
        %1394 = vmatpush1.bf16.msra.mxu0 0
        %1395 = vmatprep.subr.bf16.mxu0 0
        %1396 = vmatpush1.bf16.msra.mxu0 0
        %1397 = vmatprep.subr.bf16.mxu0 0
        %1398 = vmatpush1.bf16.msra.mxu0 0
        %1399 = vmatprep.subr.bf16.mxu0 0
        %1400 = vmatpush1.bf16.msra.mxu0 %v1383
        %1401 = vmatprep.subr.bf16.mxu0 0
        %1402 = vmatpush2.bf16.msra.mxu0 0
        %1403 = vmatprep.subr.bf16.mxu0 0
        %1404 = vmatpush2.bf16.msra.mxu0 0
        %1405 = vmatprep.subr.bf16.mxu0 0
        %1406 = vmatpush2.bf16.msra.mxu0 0
        %1407 = vmatprep.subr.bf16.mxu0 0
        %1408 = vmatpush2.bf16.msra.mxu0 0
        %1409 = vmatprep.subr.bf16.mxu0 0
        %1410 = vmatpush2.bf16.msra.mxu0 0
        %1411 = vmatprep.subr.bf16.mxu0 0
        %1412 = vmatpush2.bf16.msra.mxu0 0
        %1413 = vmatprep.subr.bf16.mxu0 0
        %1414 = vmatpush2.bf16.msra.mxu0 0
        %1415 = vmatprep.subr.bf16.mxu0 0
        %1416 = vmatpush2.bf16.msra.mxu0 0
        %1417 = vmatprep.mubr.bf16.mxu0 0
        %1418 = vmatmul.mubr.bf16.gmra.mxu0 %v1380
        %v1419 = vpop.f32.mrf.mxu0
        %v1420 = vadd.f32 0.0, %v1419
        %v1421 = vpop.f32.mrf.mxu0
        %v1422 = vpop.f32.mrf.mxu0
        %v1423 = vpop.f32.mrf.mxu0
        %1424 = vdwg.mxu0
        %v1426 = vsel %vm1061, %v1285, 0
        %v1429 = vsel %vm1289, %v1060, 0
        %1431 = vmatprep.subr.bf16.mxu0 0
        %1432 = vmatpush1.bf16.msra.mxu0 0
        %1433 = vmatprep.subr.bf16.mxu0 0
        %1434 = vmatpush1.bf16.msra.mxu0 0
        %1435 = vmatprep.subr.bf16.mxu0 0
        %1436 = vmatpush1.bf16.msra.mxu0 0
        %1437 = vmatprep.subr.bf16.mxu0 0
        %1438 = vmatpush1.bf16.msra.mxu0 0
        %1439 = vmatprep.subr.bf16.mxu0 0
        %1440 = vmatpush1.bf16.msra.mxu0 0
        %1441 = vmatprep.subr.bf16.mxu0 0
        %1442 = vmatpush1.bf16.msra.mxu0 0
        %1443 = vmatprep.subr.bf16.mxu0 0
        %1444 = vmatpush1.bf16.msra.mxu0 0
        %1445 = vmatprep.subr.bf16.mxu0 0
        %1446 = vmatpush1.bf16.msra.mxu0 %v1429
        %1447 = vmatprep.subr.bf16.mxu0 0
        %1448 = vmatpush2.bf16.msra.mxu0 0
        %1449 = vmatprep.subr.bf16.mxu0 0
        %1450 = vmatpush2.bf16.msra.mxu0 0
        %1451 = vmatprep.subr.bf16.mxu0 0
        %1452 = vmatpush2.bf16.msra.mxu0 0
        %1453 = vmatprep.subr.bf16.mxu0 0
        %1454 = vmatpush2.bf16.msra.mxu0 0
        %1455 = vmatprep.subr.bf16.mxu0 0
        %1456 = vmatpush2.bf16.msra.mxu0 0
        %1457 = vmatprep.subr.bf16.mxu0 0
        %1458 = vmatpush2.bf16.msra.mxu0 0
        %1459 = vmatprep.subr.bf16.mxu0 0
        %1460 = vmatpush2.bf16.msra.mxu0 0
        %1461 = vmatprep.subr.bf16.mxu0 0
        %1462 = vmatpush2.bf16.msra.mxu0 0
        %1463 = vmatprep.mubr.bf16.mxu0 0
        %1464 = vmatmul.mubr.bf16.gmra.mxu0 %v1426
        %v1465 = vpop.f32.mrf.mxu0
        %v1466 = vadd.f32 0.0, %v1465
        %v1467 = vpop.f32.mrf.mxu0
        %v1468 = vpop.f32.mrf.mxu0
        %v1469 = vpop.f32.mrf.mxu0
        %1470 = vdwg.mxu0
        %v1471 = vrcp.pop %v1272
        %v1472 = vrcp.pop %v1275
        %v1473 = vrcp.pop %v1278
        %v1474 = vrcp.pop %v1281
        %v1475 = vmul.f32 %v1328, %v1471
        %v1476 = vmul.f32 %v1374, %v1472
        %v1477 = vmul.f32 %v1420, %v1473
        %v1478 = vmul.f32 %v1466, %v1474
        %v1479 = vcombine.low %v1475, %v1477
        %v1480 = vcombine.high %v1475, %v1477
        %v1482 = vunpack.c.l.s4 1983009808
        %v1483 = vunpack.c.0.s8 %v1482
        %v1484 = vlaneseq
        %v1485 = vshrl.u32 %v1484, 7
        %v1486 = vsub.s32 %v1483, %v1485
        %v1487 = vrot.slane %v1479, %v1486
        %v1489 = vunpack.c.l.s4 1983009808
        %v1490 = vunpack.c.0.s8 %v1489
        %v1491 = vlaneseq
        %v1492 = vshrl.u32 %v1491, 7
        %v1493 = vsub.s32 %v1490, %v1492
        %v1494 = vrot.slane %v1480, %v1493
        %v1495 = vcombine.low %v1476, %v1478
        %v1496 = vcombine.high %v1476, %v1478
        %v1498 = vunpack.c.l.s4 1983009808
        %v1499 = vunpack.c.0.s8 %v1498
        %v1500 = vlaneseq
        %v1501 = vshrl.u32 %v1500, 7
        %v1502 = vsub.s32 %v1499, %v1501
        %v1503 = vrot.slane %v1495, %v1502
        %v1505 = vunpack.c.l.s4 1983009808
        %v1506 = vunpack.c.0.s8 %v1505
        %v1507 = vlaneseq
        %v1508 = vshrl.u32 %v1507, 7
        %v1509 = vsub.s32 %v1506, %v1508
        %v1510 = vrot.slane %v1496, %v1509
        %v1511 = vcombine.low %v1487, %v1503
        %v1512 = vcombine.high %v1487, %v1503
        %v1514 = vunpack.c.l.s4 1934713408
        %v1515 = vunpack.c.0.s8 %v1514
        %v1516 = vlaneseq
        %v1517 = vshrl.u32 %v1516, 7
        %v1518 = vsub.s32 %v1515, %v1517
        %v1519 = vrot.slane %v1511, %v1518
        %v1521 = vunpack.c.l.s4 1934713408
        %v1522 = vunpack.c.0.s8 %v1521
        %v1523 = vlaneseq
        %v1524 = vshrl.u32 %v1523, 7
        %v1525 = vsub.s32 %v1522, %v1524
        %v1526 = vrot.slane %v1512, %v1525
        %v1527 = vcombine.low %v1494, %v1510
        %v1528 = vcombine.high %v1494, %v1510
        %v1530 = vunpack.c.l.s4 1934713408
        %v1531 = vunpack.c.0.s8 %v1530
        %v1532 = vlaneseq
        %v1533 = vshrl.u32 %v1532, 7
        %v1534 = vsub.s32 %v1531, %v1533
        %v1535 = vrot.slane %v1527, %v1534
        %v1537 = vunpack.c.l.s4 1934713408
        %v1538 = vunpack.c.0.s8 %v1537
        %v1539 = vlaneseq
        %v1540 = vshrl.u32 %v1539, 7
        %v1541 = vsub.s32 %v1538, %v1540
        %v1542 = vrot.slane %v1528, %v1541
        %v1543 = vcombine.high %v1519, 0.0
        %v1544 = vcombine.high %v1526, 0.0
        %v1545 = vcombine.high %v1535, 0.0
        %v1546 = vcombine.high %v1542, 0.0
        %v1547 = vcombine.low %v1519, %v1526
        %v1549 = vunpack.c.l.s4 1983009808
        %v1550 = vunpack.c.0.s8 %v1549
        %v1551 = vlaneseq
        %v1552 = vshrl.u32 %v1551, 7
        %v1553 = vsub.s32 %v1550, %v1552
        %v1554 = vrot.slane %v1547, %v1553
        %v1555 = vcombine.low %v1543, %v1544
        %v1557 = vunpack.c.l.s4 1983009808
        %v1558 = vunpack.c.0.s8 %v1557
        %v1559 = vlaneseq
        %v1560 = vshrl.u32 %v1559, 7
        %v1561 = vsub.s32 %v1558, %v1560
        %v1562 = vrot.slane %v1555, %v1561
        %v1563 = vcombine.low %v1535, %v1542
        %v1565 = vunpack.c.l.s4 1983009808
        %v1566 = vunpack.c.0.s8 %v1565
        %v1567 = vlaneseq
        %v1568 = vshrl.u32 %v1567, 7
        %v1569 = vsub.s32 %v1566, %v1568
        %v1570 = vrot.slane %v1563, %v1569
        %v1571 = vcombine.low %v1545, %v1546
        %v1573 = vunpack.c.l.s4 1983009808
        %v1574 = vunpack.c.0.s8 %v1573
        %v1575 = vlaneseq
        %v1576 = vshrl.u32 %v1575, 7
        %v1577 = vsub.s32 %v1574, %v1576
        %v1578 = vrot.slane %v1571, %v1577
        %v1579 = vcombine.low %v1554, %v1562
        %v1580 = vcombine.high %v1554, %v1562
        %v1582 = vunpack.c.l.s4 1934713408
        %v1583 = vunpack.c.0.s8 %v1582
        %v1584 = vlaneseq
        %v1585 = vshrl.u32 %v1584, 7
        %v1586 = vsub.s32 %v1583, %v1585
        %v1587 = vrot.slane %v1579, %v1586
        %v1589 = vunpack.c.l.s4 1934713408
        %v1590 = vunpack.c.0.s8 %v1589
        %v1591 = vlaneseq
        %v1592 = vshrl.u32 %v1591, 7
        %v1593 = vsub.s32 %v1590, %v1592
        %v1594 = vrot.slane %v1580, %v1593
        %v1595 = vcombine.low %v1570, %v1578
        %v1596 = vcombine.high %v1570, %v1578
        %v1598 = vunpack.c.l.s4 1934713408
        %v1599 = vunpack.c.0.s8 %v1598
        %v1600 = vlaneseq
        %v1601 = vshrl.u32 %v1600, 7
        %v1602 = vsub.s32 %v1599, %v1601
        %v1603 = vrot.slane %v1595, %v1602
        %v1605 = vunpack.c.l.s4 1934713408
        %v1606 = vunpack.c.0.s8 %v1605
        %v1607 = vlaneseq
        %v1608 = vshrl.u32 %v1607, 7
        %v1609 = vsub.s32 %v1606, %v1608
        %v1610 = vrot.slane %v1596, %v1609
        %v1611 = vcombine.low %v1587, %v1603
        %v1612 = vcombine.high %v1587, %v1603
        %v1613 = vcombine.low %v1594, %v1610
        %v1614 = vcombine.high %v1594, %v1610
        %1616 = vrot.lane.b32.xlu0 %v1612, 8
        %v1617 = vpop.permute.xlu0 %1616
        %1620 = vrot.lane.b32.xlu0 %v1613, 16
        %v1621 = vpop.permute.xlu0 %1620
        %1624 = vrot.lane.b32.xlu0 %v1614, 24
        %v1625 = vpop.permute.xlu0 %1624
        %v1627 = vsel %vm1061, %v1611, %v1617
        %vm1628 = vcmask 130048
        %v1629 = vsel %vm1628, %v1627, %v1621
        %vm1630 = vcmask 195584
        %v1631 = vsel %vm1630, %v1629, %v1625
        %v1632 = vpack.c.bf16 %v1631, %v1631
        %v1633 = vld [vmem:[%s6] sm:$0xf]
        %v1634 = vld [vmem:[%s6 + $0x4] sm:$0xf]
        %v1635 = vld [vmem:[%s6 + $0x8] sm:$0xf]
        %v1636 = vld [vmem:[%s6 + $0xc] sm:$0xf]
        %v1637 = vld [vmem:[%s7] sm:$0x1]
        %v1639 = vlaneseq
        %v1640 = vshrl.u32 %v1639, 7
        %v1641 = vsub.s32 0, %v1640
        %v1642 = vrot.slane %v1637, %v1641
        %v1648 = vunpack.c.l.b16 %v1633
        %v1649 = vunpack.c.l.b16 %v1634
        %v1650 = vunpack.c.l.b16 %v1635
        %v1651 = vunpack.c.l.b16 %v1636
        %v1652 = vpack.c.b16 %v1649, %v1648
        %v1653 = vpack.c.b16 %v1651, %v1650
        %v1657 = vsel %vm511, %v1632, 0
        %1659 = vmatprep.subr.bf16.mxu0 0
        %1660 = vmatpush1.bf16.msra.mxu0 0
        %1661 = vmatprep.subr.bf16.mxu0 0
        %1662 = vmatpush1.bf16.msra.mxu0 0
        %1663 = vmatprep.subr.bf16.mxu0 0
        %1664 = vmatpush1.bf16.msra.mxu0 0
        %1665 = vmatprep.subr.bf16.mxu0 0
        %1666 = vmatpush1.bf16.msra.mxu0 0
        %1667 = vmatprep.subr.bf16.mxu0 0
        %1668 = vmatpush1.bf16.msra.mxu0 0
        %1669 = vmatprep.subr.bf16.mxu0 0
        %1670 = vmatpush1.bf16.msra.mxu0 0
        %1671 = vmatprep.subr.bf16.mxu0 0
        %1672 = vmatpush1.bf16.msra.mxu0 %v1653
        %1673 = vmatprep.subr.bf16.mxu0 0
        %1674 = vmatpush1.bf16.msra.mxu0 %v1652
        %1675 = vmatprep.subr.bf16.mxu0 0
        %1676 = vmatpush2.bf16.msra.mxu0 0
        %1677 = vmatprep.subr.bf16.mxu0 0
        %1678 = vmatpush2.bf16.msra.mxu0 0
        %1679 = vmatprep.subr.bf16.mxu0 0
        %1680 = vmatpush2.bf16.msra.mxu0 0
        %1681 = vmatprep.subr.bf16.mxu0 0
        %1682 = vmatpush2.bf16.msra.mxu0 0
        %1683 = vmatprep.subr.bf16.mxu0 0
        %1684 = vmatpush2.bf16.msra.mxu0 0
        %1685 = vmatprep.subr.bf16.mxu0 0
        %1686 = vmatpush2.bf16.msra.mxu0 0
        %1687 = vmatprep.subr.bf16.mxu0 0
        %1688 = vmatpush2.bf16.msra.mxu0 0
        %1689 = vmatprep.subr.bf16.mxu0 0
        %1690 = vmatpush2.bf16.msra.mxu0 0
        %1691 = vmatprep.mubr.bf16.mxu0 0
        %1692 = vmatmul.mubr.bf16.gmra.mxu0 %v1657
        %v1693 = vpop.f32.mrf.mxu0
        %v1694 = vadd.f32 %v1642, %v1693
        %v1695 = vpop.f32.mrf.mxu0
        %v1696 = vpop.f32.mrf.mxu0
        %v1697 = vpop.f32.mrf.mxu0
        %1698 = vdwg.mxu0
        %v1699 = vadd.f32 %v507, %v1694
        %v1700 = vld [vmem:[%s8] sm:$0x1]
        %v1701 = vld [vmem:[#allocation2] sm:$0x1]
        %v1702 = vsel %vm511, %v1699, 0.0
        %1703 = vadd.xlane.f32.xlu0 %v1702
        %v1704 = vpop.xlane.xlu0 %1703
        %v1705 = vmul.f32 %v1704, %v515
        %v1706 = vsub.f32 %v1699, %v1705
        %v1707 = vmul.f32 %v1706, %v1706
        %v1708 = vsel %vm511, %v1707, 0.0
        %1709 = vadd.xlane.f32.xlu0 %v1708
        %v1710 = vpop.xlane.xlu0 %1709
        %v1711 = vmul.f32 %v1710, %v515
        %v1712 = vadd.f32 %v1711, 1e-05
        %v1713 = vrsqrt.pop %v1712
        %v1714 = vmul.f32 %v1706, %v1713
        %v1716 = vlaneseq
        %v1717 = vshrl.u32 %v1716, 7
        %v1718 = vsub.s32 0, %v1717
        %v1719 = vrot.slane %v1700, %v1718
        %v1721 = vmul.f32 %v1714, %v1719
        %v1723 = vlaneseq
        %v1724 = vshrl.u32 %v1723, 7
        %v1725 = vsub.s32 0, %v1724
        %v1726 = vrot.slane %v1701, %v1725
        %v1728 = vadd.f32 %v1721, %v1726
        %v1729 = vpack.c.bf16 %v1728, %v1728
        %v1730 = vld [vmem:[%s10] sm:$0xf]
        %v1731 = vld [vmem:[%s10 + $0x4] sm:$0xf]
        %v1732 = vld [vmem:[%s10 + $0x8] sm:$0xf]
        %v1733 = vld [vmem:[%s10 + $0xc] sm:$0xf]
        %v1734 = vld [vmem:[#allocation5] sm:$0x1]
        %v1736 = vlaneseq
        %v1737 = vshrl.u32 %v1736, 7
        %v1738 = vsub.s32 0, %v1737
        %v1739 = vrot.slane %v1734, %v1738
        %v1745 = vunpack.c.l.b16 %v1730
        %v1746 = vunpack.c.l.b16 %v1731
        %v1747 = vunpack.c.l.b16 %v1732
        %v1748 = vunpack.c.l.b16 %v1733
        %v1749 = vpack.c.b16 %v1746, %v1745
        %v1750 = vpack.c.b16 %v1748, %v1747
        %v1754 = vsel %vm511, %v1729, 0
        %1756 = vmatprep.subr.bf16.mxu0 0
        %1757 = vmatpush1.bf16.msra.mxu0 0
        %1758 = vmatprep.subr.bf16.mxu0 0
        %1759 = vmatpush1.bf16.msra.mxu0 0
        %1760 = vmatprep.subr.bf16.mxu0 0
        %1761 = vmatpush1.bf16.msra.mxu0 0
        %1762 = vmatprep.subr.bf16.mxu0 0
        %1763 = vmatpush1.bf16.msra.mxu0 0
        %1764 = vmatprep.subr.bf16.mxu0 0
        %1765 = vmatpush1.bf16.msra.mxu0 0
        %1766 = vmatprep.subr.bf16.mxu0 0
        %1767 = vmatpush1.bf16.msra.mxu0 0
        %1768 = vmatprep.subr.bf16.mxu0 0
        %1769 = vmatpush1.bf16.msra.mxu0 %v1750
        %1770 = vmatprep.subr.bf16.mxu0 0
        %1771 = vmatpush1.bf16.msra.mxu0 %v1749
        %1772 = vmatprep.subr.bf16.mxu0 0
        %1773 = vmatpush2.bf16.msra.mxu0 0
        %1774 = vmatprep.subr.bf16.mxu0 0
        %1775 = vmatpush2.bf16.msra.mxu0 0
        %1776 = vmatprep.subr.bf16.mxu0 0
        %1777 = vmatpush2.bf16.msra.mxu0 0
        %1778 = vmatprep.subr.bf16.mxu0 0
        %1779 = vmatpush2.bf16.msra.mxu0 0
        %1780 = vmatprep.subr.bf16.mxu0 0
        %1781 = vmatpush2.bf16.msra.mxu0 0
        %1782 = vmatprep.subr.bf16.mxu0 0
        %1783 = vmatpush2.bf16.msra.mxu0 0
        %1784 = vmatprep.subr.bf16.mxu0 0
        %1785 = vmatpush2.bf16.msra.mxu0 0
        %1786 = vmatprep.subr.bf16.mxu0 0
        %1787 = vmatpush2.bf16.msra.mxu0 0
        %1788 = vmatprep.mubr.bf16.mxu0 0
        %1789 = vmatmul.mubr.bf16.gmra.mxu0 %v1754
        %v1790 = vpop.f32.mrf.mxu0
        %v1791 = vadd.f32 %v1739, %v1790
        %v1792 = vpop.f32.mrf.mxu0
        %v1793 = vpop.f32.mrf.mxu0
        %v1794 = vpop.f32.mrf.mxu0
        %1795 = vdwg.mxu0
        %v1796 = vmul.f32 %v1791, 1.702
        %v1797 = vxor.u32 %v1796, 2147483648
        %v1798 = vmul.f32 %v1797, 1.442695
        %v1799 = vpow.pop %v1798
        %v1800 = vadd.f32 %v1799, 1.0
        %v1801 = vrcp.pop %v1800
        %v1802 = vmul.f32 1.0, %v1801
        %v1803 = vmul.f32 %v1791, %v1802
        %v1804 = vpack.c.bf16 %v1803, %v1803
        %v1805 = vld [vmem:[%s12] sm:$0xf]
        %v1806 = vld [vmem:[%s12 + $0x4] sm:$0xf]
        %v1807 = vld [vmem:[%s12 + $0x8] sm:$0xf]
        %v1808 = vld [vmem:[%s12 + $0xc] sm:$0xf]
        %v1809 = vld [vmem:[%s12 + $0x10] sm:$0xf]
        %v1810 = vld [vmem:[%s12 + $0x14] sm:$0xf]
        %v1811 = vld [vmem:[%s12 + $0x18] sm:$0xf]
        %v1812 = vld [vmem:[%s12 + $0x1c] sm:$0xf]
        %v1813 = vld [vmem:[%s12 + $0x20] sm:$0xf]
        %v1814 = vld [vmem:[%s12 + $0x24] sm:$0xf]
        %v1815 = vld [vmem:[%s12 + $0x28] sm:$0xf]
        %v1816 = vld [vmem:[%s12 + $0x2c] sm:$0xf]
        %v1817 = vld [vmem:[%s12 + $0x30] sm:$0xf]
        %v1818 = vld [vmem:[%s12 + $0x34] sm:$0xf]
        %v1819 = vld [vmem:[%s12 + $0x38] sm:$0xf]
        %v1820 = vld [vmem:[%s12 + $0x3c] sm:$0xf]
        %v1821 = vld [vmem:[%s13] sm:$0x1]
        %v1823 = vlaneseq
        %v1824 = vshrl.u32 %v1823, 7
        %v1825 = vsub.s32 0, %v1824
        %v1826 = vrot.slane %v1821, %v1825
        %v1844 = vunpack.c.l.b16 %v1805
        %v1845 = vunpack.c.l.b16 %v1806
        %v1846 = vunpack.c.l.b16 %v1807
        %v1847 = vunpack.c.l.b16 %v1808
        %v1848 = vunpack.c.l.b16 %v1809
        %v1849 = vunpack.c.l.b16 %v1810
        %v1850 = vunpack.c.l.b16 %v1811
        %v1851 = vunpack.c.l.b16 %v1812
        %v1852 = vunpack.c.l.b16 %v1813
        %v1853 = vunpack.c.l.b16 %v1814
        %v1854 = vunpack.c.l.b16 %v1815
        %v1855 = vunpack.c.l.b16 %v1816
        %v1856 = vunpack.c.l.b16 %v1817
        %v1857 = vunpack.c.l.b16 %v1818
        %v1858 = vunpack.c.l.b16 %v1819
        %v1859 = vunpack.c.l.b16 %v1820
        %v1860 = vpack.c.b16 %v1845, %v1844
        %v1861 = vpack.c.b16 %v1847, %v1846
        %v1862 = vpack.c.b16 %v1849, %v1848
        %v1863 = vpack.c.b16 %v1851, %v1850
        %v1864 = vpack.c.b16 %v1853, %v1852
        %v1865 = vpack.c.b16 %v1855, %v1854
        %v1866 = vpack.c.b16 %v1857, %v1856
        %v1867 = vpack.c.b16 %v1859, %v1858
        %1876 = vmatprep.subr.bf16.mxu0 0
        %1877 = vmatpush1.bf16.msra.mxu0 %v1867
        %1878 = vmatprep.subr.bf16.mxu0 0
        %1879 = vmatpush1.bf16.msra.mxu0 %v1866
        %1880 = vmatprep.subr.bf16.mxu0 0
        %1881 = vmatpush1.bf16.msra.mxu0 %v1865
        %1882 = vmatprep.subr.bf16.mxu0 0
        %1883 = vmatpush1.bf16.msra.mxu0 %v1864
        %1884 = vmatprep.subr.bf16.mxu0 0
        %1885 = vmatpush1.bf16.msra.mxu0 %v1863
        %1886 = vmatprep.subr.bf16.mxu0 0
        %1887 = vmatpush1.bf16.msra.mxu0 %v1862
        %1888 = vmatprep.subr.bf16.mxu0 0
        %1889 = vmatpush1.bf16.msra.mxu0 %v1861
        %1890 = vmatprep.subr.bf16.mxu0 0
        %1891 = vmatpush1.bf16.msra.mxu0 %v1860
        %1892 = vmatprep.subr.bf16.mxu0 0
        %1893 = vmatpush2.bf16.msra.mxu0 0
        %1894 = vmatprep.subr.bf16.mxu0 0
        %1895 = vmatpush2.bf16.msra.mxu0 0
        %1896 = vmatprep.subr.bf16.mxu0 0
        %1897 = vmatpush2.bf16.msra.mxu0 0
        %1898 = vmatprep.subr.bf16.mxu0 0
        %1899 = vmatpush2.bf16.msra.mxu0 0
        %1900 = vmatprep.subr.bf16.mxu0 0
        %1901 = vmatpush2.bf16.msra.mxu0 0
        %1902 = vmatprep.subr.bf16.mxu0 0
        %1903 = vmatpush2.bf16.msra.mxu0 0
        %1904 = vmatprep.subr.bf16.mxu0 0
        %1905 = vmatpush2.bf16.msra.mxu0 0
        %1906 = vmatprep.subr.bf16.mxu0 0
        %1907 = vmatpush2.bf16.msra.mxu0 0
        %1908 = vmatprep.mubr.bf16.mxu0 0
        %1909 = vmatmul.mubr.bf16.gmra.mxu0 %v1804
        %v1910 = vpop.f32.mrf.mxu0
        %v1911 = vadd.f32 %v1826, %v1910
        %v1912 = vpop.f32.mrf.mxu0
        %v1913 = vpop.f32.mrf.mxu0
        %v1914 = vpop.f32.mrf.mxu0
        %1915 = vdwg.mxu0
        %v1916 = vadd.f32 %v1699, %v1911
        %1917 = vst.msk [vmem:[%s497] sm:$0xff] %vm511, %v1916
        %s1918 = sand.u32 %s342, 1
        %s1919 = scalar_lea.sflag [#allocation4], %s1918
        %s1920 = sand.u32 %s342, 1
        %s1921 = smul.addr %s1920, 8
        %s1922 = scalar_lea.vmem [#allocation7], %s1921
        // Predicated region
        $region85: #{tpu_custom_call.1} parent=75 // pred_check
          %p1923 = pneg %p352
        $region86: #{tpu_custom_call.1} parent=75 // pred_check_branch
          %1925 = sbr.rel (%p1923) target = $region88
        $region87: #{tpu_custom_call.1} parent=75 // pred_region
          %s1927 = ssub.s32 128, 128
          %1928 = vsyncadd %s1919, %s1927
          %s1929 = smul.addr %s30, 128
          %s1930 = scalar_lea.hbm %s14, %s1929
          %s1932 = sshll.u32 %s1922, 4
          %s1933 = int_to_ptr.vmem [resolvable:$true] %s1932
          %1935 = dma.vmem_to_hbm [thread:$0]  %s1933, 128, %s1930, %s1919
        $region88: #{tpu_custom_call.1} parent=75 // pred_fallthru
          _
      $region76: #{tpu_custom_call.1} parent=5 // pred_fallthru
        _
      %p1936 = scmp.le.s32.totalorder 2, %s25
      // Predicated region
      $region89: #{tpu_custom_call.1} parent=5 // pred_check
        %p1937 = pneg %p1936
      $region90: #{tpu_custom_call.1} parent=5 // pred_check_branch
        %1939 = sbr.rel (%p1937) target = $region92
      $region91: #{tpu_custom_call.1} parent=5 // pred_region
        %s1940 = ssub.s32 %s25, 2
        // Predicated region
        $region93: #{tpu_custom_call.1} parent=91 // pred_check
          %p1941 = pneg %p358
        $region94: #{tpu_custom_call.1} parent=91 // pred_check_branch
          %1943 = sbr.rel (%p1941) target = $region96
        $region95: #{tpu_custom_call.1} parent=91 // pred_region
          %s1944 = sand.u32 %s343, 1
          %s1945 = scalar_lea.sflag [#allocation4], %s1944
          %s1946 = sand.u32 %s343, 1
          %s1947 = smul.addr %s1946, 8
          %s1948 = scalar_lea.vmem [#allocation7], %s1947
          %1949 = dma.done %s1945, 128
        $region96: #{tpu_custom_call.1} parent=91 // pred_fallthru
          _
      $region92: #{tpu_custom_call.1} parent=5 // pred_fallthru
        _
    $region6: #{tpu_custom_call.1} parent=1 // loop_footer
      %s29 = sadd.s32 1, %s25
    $region7: #{tpu_custom_call.1} parent=1 // loop_footer_branch
      %24 = sbr.rel target = $region3
    $region8: #{tpu_custom_call.1} parent=1 // loop_exit
      _
    %1950 = vsyncpa [#allocation3], 1
    %s1951 = scalar_lea.sflag [#allocation3], 1
    %1952 = vsyncpa %s1951, 1
    %1953 = vsyncpa [#allocation6], 1
    %1954 = vsyncpa [#allocation4], 1
    %s1955 = scalar_lea.sflag [#allocation4], 1
    %1956 = vsyncpa %s1955, 1

</llo_original>
